<compile_context>
chip_gen: v5e
topology: v5e:2x2
jax: 0.10.0
libtpu: 0.0.40
codegen_flags: <defaults>
</compile_context>

<pallas_src>
import functools

import jax
import jax.numpy as jnp
from jax.experimental import pallas as pl
from jax.experimental.pallas import tpu as pltpu


# ----------------------------------------------------------------------------
# Pallas kernel: whole-array  Y = act(X @ W + b)   (single block, no grid)
# ----------------------------------------------------------------------------
def matmul_bias_kernel(x_ref, w_ref, b_ref, o_ref, *, relu):
    y = jnp.dot(x_ref[...], w_ref[...], preferred_element_type=jnp.float32)
    y = y + b_ref[...]
    if relu:
        y = jnp.maximum(y, 0.0)
    o_ref[...] = y.astype(o_ref.dtype)


def matmul_bias(x, w, b, *, relu):
    """x: (M, K), w: (K, N), b: (1, N) or (1, 1) -> (M, N) f32."""
    M, N = x.shape[0], w.shape[1]
    return pl.pallas_call(
        functools.partial(matmul_bias_kernel, relu=relu),
        out_shape=jax.ShapeDtypeStruct((M, N), jnp.float32),
        compiler_params=pltpu.CompilerParams(
            vmem_limit_bytes=32 * 1024 * 1024),
    )(x, w, b)


# ----------------------------------------------------------------------------
# XLA glue (outside the kernels): im2col / phase packing / depth-to-space
# ----------------------------------------------------------------------------
def phase_im2col(x):
    """x: (B,H,W,C) NHWC -> (B*(H+1)*(W+1), 4*C).

    The 2x2 taps (sy, sx) of the 1-zero-padded input, shared by all four
    output phases of a stride-2 / kernel-4 transpose conv.
    K ordered (sy, sx, ci); rows ordered (b, qy, qx).
    """
    B, H, W, C = x.shape
    Ho, Wo = H + 1, W + 1
    xp = jnp.pad(x, ((0, 0), (1, 1), (1, 1), (0, 0)))
    cols = [xp[:, sy:sy + Ho, sx:sx + Wo, :].reshape(B * Ho * Wo, C)
            for sy in range(2) for sx in range(2)]
    return jnp.concatenate(cols, axis=1)


def depth_to_space2(y, B, Ho, Wo, Cout):
    """(B*Ho*Wo, 4*Cout) with N ordered (py, px, co) -> (B, 2Ho, 2Wo, Cout)."""
    y = y.reshape(B, Ho, Wo, 2, 2, Cout)
    y = jnp.transpose(y, (0, 1, 3, 2, 4, 5))
    return y.reshape(B, 2 * Ho, 2 * Wo, Cout)


def conv_transpose_s2k4_relu(x, w_all, b_all):
    """ConvTranspose2d(kernel=4, stride=2) + ReLU via phase decomposition."""
    B, H, W, _ = x.shape
    Cout = w_all.shape[1] // 4
    Ho, Wo = H + 1, W + 1
    xcols = phase_im2col(x)                              # (B*Ho*Wo, 4*Cin)
    y = matmul_bias(xcols, w_all, b_all, relu=True)      # (B*Ho*Wo, 4*Cout)
    return depth_to_space2(y, B, Ho, Wo, Cout)


def conv7_im2col_t(x):
    """x: (B,H,W,C) -> (7*7*C, B*(H-6)*(W-6)).

    Transposed im2col for a 7x7 VALID conv: rows ordered (kh, kw, ci),
    columns ordered (b, oy, ox).
    """
    B, H, W, C = x.shape
    Ho, Wo = H - 6, W - 6
    rows = [jnp.transpose(x[:, kh:kh + Ho, kw:kw + Wo, :],
                          (3, 0, 1, 2)).reshape(C, B * Ho * Wo)
            for kh in range(7) for kw in range(7)]
    return jnp.concatenate(rows, axis=0)


# ----------------------------------------------------------------------------
# Full Generator forward
# ----------------------------------------------------------------------------
def generator_forward(z, params):
    B = z.shape[0]

    # fc + ReLU (weight columns pre-permuted so the output is NHWC-flat)
    h = matmul_bias(z, params["fc_w"], params["fc_b"], relu=True)      # (B, 3136)
    x = h.reshape(B, 7, 7, 64)                                         # NHWC

    # conv1 / conv2: ConvTranspose2d(4, stride=2) + ReLU, one matmul each
    x = conv_transpose_s2k4_relu(x, params["c1_w"], params["c1_b"])    # (B,16,16,32)
    x = conv_transpose_s2k4_relu(x, params["c2_w"], params["c2_b"])    # (B,34,34,16)

    # conv3: Conv2d(16, 1, 7), valid.  Lane-dense transposed matmul.
    xcols = conv7_im2col_t(x)                                          # (784, B*784)
    y = matmul_bias(params["c3_w"], xcols, params["c3_b"], relu=False)  # (1, B*784)
    return y.reshape(B, 28, 28)[:, None, :, :]                          # NCHW


# ----------------------------------------------------------------------------
# Parameter packing (PyTorch layouts -> kernel layouts)
# ----------------------------------------------------------------------------
def pack_convt_phase_weights(w_t):
    """PyTorch ConvTranspose2d weight (Cin, Cout, 4, 4), stride 2
    -> (4*Cin, 4*Cout).

    Per axis:  y[2q + p] = sum_{s in {0,1}} xpad[q + s] * w[..., p + 2*(1-s)]
    with xpad = input zero-padded by 1.  Rows ordered (sy, sx, ci) to match
    phase_im2col; cols ordered (py, px, co) to match depth_to_space2.
    """
    rows = []
    for sy in range(2):
        for sx in range(2):
            cols = [w_t[:, :, py + 2 * (1 - sy), px + 2 * (1 - sx)]
                    for py in range(2) for px in range(2)]
            rows.append(jnp.concatenate(cols, axis=1))    # (Cin, 4*Cout)
    return jnp.concatenate(rows, axis=0)                  # (4*Cin, 4*Cout)


# ----------------------------------------------------------------------------
# Plain-JAX reference (lax convs) for a correctness check
# ----------------------------------------------------------------------------
def reference_forward(z, tparams):
    dn = ("NCHW", "OIHW", "NCHW")

    def conv_t(x, w_t, b, k, s):
        w = jnp.transpose(w_t, (1, 0, 2, 3))[:, :, ::-1, ::-1]
        y = jax.lax.conv_general_dilated(
            x, w, window_strides=(1, 1),
            padding=[(k - 1, k - 1)] * 2,
            lhs_dilation=(s, s), dimension_numbers=dn)
        return y + b.reshape(1, -1, 1, 1)

    h = jnp.maximum(z @ tparams["fc_w_t"].T + tparams["fc_b"], 0.0)
    x = h.reshape(-1, 64, 7, 7)
    x = jnp.maximum(conv_t(x, tparams["c1_w_t"], tparams["c1_b"], 4, 2), 0.0)
    x = jnp.maximum(conv_t(x, tparams["c2_w_t"], tparams["c2_b"], 4, 2), 0.0)
    x = jax.lax.conv_general_dilated(
        x, tparams["c3_w_t"], (1, 1), "VALID", dimension_numbers=dn
    ) + tparams["c3_b"].reshape(1, -1, 1, 1)
    return x


# ----------------------------------------------------------------------------
# Main
# ----------------------------------------------------------------------------
if __name__ == "__main__":
    latent_dim = 32
    batch = 2

    key = jax.random.PRNGKey(0)
    ks = jax.random.split(key, 9)

    def uinit(k, shape, fan_in):
        bound = 1.0 / (fan_in ** 0.5)
        return jax.random.uniform(k, shape, jnp.float32, -bound, bound)

    # Parameters in PyTorch layouts (deterministic synthetic init)
    fc_w_t = uinit(ks[0], (7 * 7 * 64, latent_dim), latent_dim)   # (out, in)
    fc_b = uinit(ks[1], (7 * 7 * 64,), latent_dim)
    c1_w_t = uinit(ks[2], (64, 32, 4, 4), 32 * 4 * 4)             # ConvT: (Cin,Cout,KH,KW)
    c1_b = uinit(ks[3], (32,), 32 * 4 * 4)
    c2_w_t = uinit(ks[4], (32, 16, 4, 4), 16 * 4 * 4)
    c2_b = uinit(ks[5], (16,), 16 * 4 * 4)
    c3_w_t = uinit(ks[6], (1, 16, 7, 7), 16 * 7 * 7)              # Conv: (Cout,Cin,KH,KW)
    c3_b = uinit(ks[7], (1,), 16 * 7 * 7)

    # Convert to the layouts the Pallas kernels consume
    params = {
        # fc weight columns permuted from (c, y, x) to NHWC-flat (y, x, c)
        "fc_w": fc_w_t.T.reshape(latent_dim, 64, 7, 7)
                        .transpose(0, 2, 3, 1).reshape(latent_dim, -1),
        "fc_b": fc_b.reshape(64, 7, 7).transpose(1, 2, 0).reshape(1, -1),
        # transpose convs: phase-packed (4*Cin, 4*Cout), phase-tiled bias
        "c1_w": pack_convt_phase_weights(c1_w_t),
        "c1_b": jnp.tile(c1_b, 4).reshape(1, -1),
        "c2_w": pack_convt_phase_weights(c2_w_t),
        "c2_b": jnp.tile(c2_b, 4).reshape(1, -1),
        # conv3: flattened filter row (1, 7*7*16), order (kh, kw, ci)
        "c3_w": jnp.transpose(c3_w_t[0], (1, 2, 0)).reshape(1, -1),
        "c3_b": c3_b.reshape(1, 1),
    }
    tparams = {
        "fc_w_t": fc_w_t, "fc_b": fc_b,
        "c1_w_t": c1_w_t, "c1_b": c1_b,
        "c2_w_t": c2_w_t, "c2_b": c2_b,
        "c3_w_t": c3_w_t, "c3_b": c3_b,
    }

    z = jax.random.normal(ks[8], (batch, latent_dim), jnp.float32)

    fwd = jax.jit(generator_forward)
    out = jax.block_until_ready(fwd(z, params))
    assert out.shape == (batch, 1, 28, 28), out.shape

    ref = jax.block_until_ready(reference_forward(z, tparams))
    assert jnp.allclose(out, ref, rtol=1e-3, atol=1e-3), (
        float(jnp.max(jnp.abs(out - ref)))
    )

    print("KERNEL_OK")
</pallas_src>

<mosaic_0001>
module attributes {stable_mosaic.version = 11 : i64} {
  func.func @matmul_bias_kernel(%arg0: memref<2x32xf32, #tpu.memory_space<vmem>>, %arg1: memref<32x3136xf32, #tpu.memory_space<vmem>>, %arg2: memref<1x3136xf32, #tpu.memory_space<vmem>>, %arg3: memref<2x3136xf32, #tpu.memory_space<vmem>>) attributes {dimension_semantics = [], scalar_prefetch = 0 : i64, scratch_operands = 0 : i64, tpu.core_type = #tpu.core_type<tc>} {
    %c0 = arith.constant 0 : index
    %c0_0 = arith.constant 0 : index
    %0 = vector.load %arg0[%c0, %c0_0] : memref<2x32xf32, #tpu.memory_space<vmem>>, vector<2x32xf32>
    %c0_1 = arith.constant 0 : index
    %c0_2 = arith.constant 0 : index
    %1 = vector.load %arg1[%c0_1, %c0_2] : memref<32x3136xf32, #tpu.memory_space<vmem>>, vector<32x3136xf32>
    %cst = arith.constant dense<0.000000e+00> : vector<2x3136xf32>
    %2 = tpu.matmul %0, %1, %cst {dimension_numbers = #tpu.dot_dimension_numbers<[1], [0], [0], [1], [0, 0, 1, 1], [], []>} : vector<2x32xf32>, vector<32x3136xf32>, vector<2x3136xf32> -> vector<2x3136xf32>
    %c0_3 = arith.constant 0 : index
    %c0_4 = arith.constant 0 : index
    %3 = vector.load %arg2[%c0_3, %c0_4] : memref<1x3136xf32, #tpu.memory_space<vmem>>, vector<1x3136xf32>
    %4 = vector.broadcast %3 : vector<1x3136xf32> to vector<2x3136xf32>
    %5 = arith.addf %2, %4 : vector<2x3136xf32>
    %cst_5 = arith.constant 0.000000e+00 : f32
    %6 = vector.broadcast %cst_5 : f32 to vector<2x3136xf32>
    %7 = arith.maximumf %5, %6 : vector<2x3136xf32>
    %c0_6 = arith.constant 0 : index
    %c0_7 = arith.constant 0 : index
    %8 = vector.load %arg3[%c0_6, %c0_7] : memref<2x3136xf32, #tpu.memory_space<vmem>>, vector<2x3136xf32>
    tpu.vector_store %arg3[%c0_6, %c0_7], %7 {strides = array<i32>} : memref<2x3136xf32, #tpu.memory_space<vmem>>, vector<2x3136xf32>,
    return
  }
}

module attributes {stable_mosaic.version = 11 : i64} {
  func.func @matmul_bias_kernel(%arg0: memref<128x256xf32, #tpu.memory_space<vmem>>, %arg1: memref<256x128xf32, #tpu.memory_space<vmem>>, %arg2: memref<1x128xf32, #tpu.memory_space<vmem>>, %arg3: memref<128x128xf32, #tpu.memory_space<vmem>>) attributes {dimension_semantics = [], scalar_prefetch = 0 : i64, scratch_operands = 0 : i64, tpu.core_type = #tpu.core_type<tc>} {
    %c0 = arith.constant 0 : index
    %c0_0 = arith.constant 0 : index
    %0 = vector.load %arg0[%c0, %c0_0] : memref<128x256xf32, #tpu.memory_space<vmem>>, vector<128x256xf32>
    %c0_1 = arith.constant 0 : index
    %c0_2 = arith.constant 0 : index
    %1 = vector.load %arg1[%c0_1, %c0_2] : memref<256x128xf32, #tpu.memory_space<vmem>>, vector<256x128xf32>
    %cst = arith.constant dense<0.000000e+00> : vector<128x128xf32>
    %2 = tpu.matmul %0, %1, %cst {dimension_numbers = #tpu.dot_dimension_numbers<[1], [0], [0], [1], [0, 0, 1, 1], [], []>} : vector<128x256xf32>, vector<256x128xf32>, vector<128x128xf32> -> vector<128x128xf32>
    %c0_3 = arith.constant 0 : index
    %c0_4 = arith.constant 0 : index
    %3 = vector.load %arg2[%c0_3, %c0_4] : memref<1x128xf32, #tpu.memory_space<vmem>>, vector<1x128xf32>
    %4 = vector.broadcast %3 : vector<1x128xf32> to vector<128x128xf32>
    %5 = arith.addf %2, %4 : vector<128x128xf32>
    %cst_5 = arith.constant 0.000000e+00 : f32
    %6 = vector.broadcast %cst_5 : f32 to vector<128x128xf32>
    %7 = arith.maximumf %5, %6 : vector<128x128xf32>
    %c0_6 = arith.constant 0 : index
    %c0_7 = arith.constant 0 : index
    %8 = vector.load %arg3[%c0_6, %c0_7] : memref<128x128xf32, #tpu.memory_space<vmem>>, vector<128x128xf32>
    tpu.vector_store %arg3[%c0_6, %c0_7], %7 {strides = array<i32>} : memref<128x128xf32, #tpu.memory_space<vmem>>, vector<128x128xf32>,
    return
  }
}

module attributes {stable_mosaic.version = 11 : i64} {
  func.func @matmul_bias_kernel(%arg0: memref<578x128xf32, #tpu.memory_space<vmem>>, %arg1: memref<128x64xf32, #tpu.memory_space<vmem>>, %arg2: memref<1x64xf32, #tpu.memory_space<vmem>>, %arg3: memref<578x64xf32, #tpu.memory_space<vmem>>) attributes {dimension_semantics = [], scalar_prefetch = 0 : i64, scratch_operands = 0 : i64, tpu.core_type = #tpu.core_type<tc>} {
    %c0 = arith.constant 0 : index
    %c0_0 = arith.constant 0 : index
    %0 = vector.load %arg0[%c0, %c0_0] : memref<578x128xf32, #tpu.memory_space<vmem>>, vector<578x128xf32>
    %c0_1 = arith.constant 0 : index
    %c0_2 = arith.constant 0 : index
    %1 = vector.load %arg1[%c0_1, %c0_2] : memref<128x64xf32, #tpu.memory_space<vmem>>, vector<128x64xf32>
    %cst = arith.constant dense<0.000000e+00> : vector<578x64xf32>
    %2 = tpu.matmul %0, %1, %cst {dimension_numbers = #tpu.dot_dimension_numbers<[1], [0], [0], [1], [0, 0, 1, 1], [], []>} : vector<578x128xf32>, vector<128x64xf32>, vector<578x64xf32> -> vector<578x64xf32>
    %c0_3 = arith.constant 0 : index
    %c0_4 = arith.constant 0 : index
    %3 = vector.load %arg2[%c0_3, %c0_4] : memref<1x64xf32, #tpu.memory_space<vmem>>, vector<1x64xf32>
    %4 = vector.broadcast %3 : vector<1x64xf32> to vector<578x64xf32>
    %5 = arith.addf %2, %4 : vector<578x64xf32>
    %cst_5 = arith.constant 0.000000e+00 : f32
    %6 = vector.broadcast %cst_5 : f32 to vector<578x64xf32>
    %7 = arith.maximumf %5, %6 : vector<578x64xf32>
    %c0_6 = arith.constant 0 : index
    %c0_7 = arith.constant 0 : index
    %8 = vector.load %arg3[%c0_6, %c0_7] : memref<578x64xf32, #tpu.memory_space<vmem>>, vector<578x64xf32>
    tpu.vector_store %arg3[%c0_6, %c0_7], %7 {strides = array<i32>} : memref<578x64xf32, #tpu.memory_space<vmem>>, vector<578x64xf32>,
    return
  }
}

module attributes {stable_mosaic.version = 11 : i64} {
  func.func @matmul_bias_kernel(%arg0: memref<1x784xf32, #tpu.memory_space<vmem>>, %arg1: memref<784x1568xf32, #tpu.memory_space<vmem>>, %arg2: memref<1x1xf32, #tpu.memory_space<vmem>>, %arg3: memref<1x1568xf32, #tpu.memory_space<vmem>>) attributes {dimension_semantics = [], scalar_prefetch = 0 : i64, scratch_operands = 0 : i64, tpu.core_type = #tpu.core_type<tc>} {
    %c0 = arith.constant 0 : index
    %c0_0 = arith.constant 0 : index
    %0 = vector.load %arg0[%c0, %c0_0] : memref<1x784xf32, #tpu.memory_space<vmem>>, vector<1x784xf32>
    %c0_1 = arith.constant 0 : index
    %c0_2 = arith.constant 0 : index
    %1 = vector.load %arg1[%c0_1, %c0_2] : memref<784x1568xf32, #tpu.memory_space<vmem>>, vector<784x1568xf32>
    %cst = arith.constant dense<0.000000e+00> : vector<1x1568xf32>
    %2 = tpu.matmul %0, %1, %cst {dimension_numbers = #tpu.dot_dimension_numbers<[1], [0], [0], [1], [0, 0, 1, 1], [], []>} : vector<1x784xf32>, vector<784x1568xf32>, vector<1x1568xf32> -> vector<1x1568xf32>
    %c0_3 = arith.constant 0 : index
    %c0_4 = arith.constant 0 : index
    %3 = vector.load %arg2[%c0_3, %c0_4] : memref<1x1xf32, #tpu.memory_space<vmem>>, vector<1x1xf32>
    %4 = vector.broadcast %3 : vector<1x1xf32> to vector<1x1568xf32>
    %5 = arith.addf %2, %4 : vector<1x1568xf32>
    %c0_5 = arith.constant 0 : index
    %c0_6 = arith.constant 0 : index
    %6 = vector.load %arg3[%c0_5, %c0_6] : memref<1x1568xf32, #tpu.memory_space<vmem>>, vector<1x1568xf32>
    tpu.vector_store %arg3[%c0_5, %c0_6], %5 {strides = array<i32>} : memref<1x1568xf32, #tpu.memory_space<vmem>>, vector<1x1568xf32>,
    return
  }
}

</mosaic_0001>

<llo_original>
// kernel: generator_forward.5
$region0: #{generator_forward.5}
  #allocation0 [shape = 'u32[]', space=smem, size = 0x4, offset = 0x4, fixed_abs, tag = 'smem constant byte address 0x4 - core index']
  #allocation1 [shape = 'u32[72,128]{1,0:T(1,128)}', space=vmem, size = 0x9000, scoped, tag = 'internal scratch']
  %s0 = inlined_call_operand.vmem [shape: f32[128,256], index: 0, kind: input, shape index: {}]
  %s1 = inlined_call_operand.hbm [shape: f32[256,128], index: 1, kind: input, shape index: {}]
  %s2 = inlined_call_operand.hbm [shape: f32[1,128], index: 2, kind: input, shape index: {}]
  %s3 = inlined_call_operand.vmem [shape: f32[128,128], index: 3, kind: output, shape index: {}]
  %s4 = sld [smem:[#allocation0]]
  $region30: #{generator_forward.5} parent=0
    _
  %s6 = ssub.s32 1, %s4
  %s7 = scalar_select 0, %s6, %s4
  $region1: #{generator_forward.5} parent=0
    #allocation2 [shape = 'u8[131072]{0}', space=vmem, size = 0x20000, scoped, tag = 'input window, operand 1, single buffered']
    #allocation3 [shape = 's32[1]{0}', space=sflag, size = 0x4, scoped, tag = 'scoped memory for generator_forward.5']
    #allocation4 [shape = 'u8[512]{0}', space=vmem, size = 0x400, scoped, tag = 'input window, operand 2, single buffered']
    #allocation5 [shape = 's32[1]{0}', space=sflag, size = 0x4, scoped, tag = 'scoped memory for generator_forward.5']
    %8 = vsyncpa [#allocation3], 0
    %9 = vsyncpa [#allocation5], 0
    // Predicated region
    $region2: #{generator_forward.5} parent=1 // pred_check
      _
    $region3: #{generator_forward.5} parent=1 // pred_check_branch
      %11 = sbr.rel (0) target = $region5
    $region4: #{generator_forward.5} parent=1 // pred_region
      _
    $region5: #{generator_forward.5} parent=1 // pred_fallthru
      _
    // Predicated region
    $region6: #{generator_forward.5} parent=1 // pred_check
      _
    $region7: #{generator_forward.5} parent=1 // pred_check_branch
      %13 = sbr.rel (0) target = $region9
    $region8: #{generator_forward.5} parent=1 // pred_region
      %15 = vsyncadd [#allocation3], 0
      %s16 = sshll.u32 %s1, 4
      %s17 = int_to_ptr.hbm [resolvable:$true] %s16
      %s18 = sshll.u32 [#allocation2], 4
      %s19 = int_to_ptr.vmem [resolvable:$true] %s18
      %24 = dma.hbm_to_vmem [thread:$0]  %s17, 4096, %s19, [#allocation3], 128, 128, 8
    $region9: #{generator_forward.5} parent=1 // pred_fallthru
      _
    // Predicated region
    $region10: #{generator_forward.5} parent=1 // pred_check
      _
    $region11: #{generator_forward.5} parent=1 // pred_check_branch
      %26 = sbr.rel (0) target = $region13
    $region12: #{generator_forward.5} parent=1 // pred_region
      %28 = vsyncadd [#allocation5], 0
      %s30 = sshll.u32 %s2, 4
      %s31 = int_to_ptr.hbm [resolvable:$true] %s30
      %s32 = sshll.u32 [#allocation4], 4
      %s33 = int_to_ptr.vmem [resolvable:$true] %s32
      %35 = dma.hbm_to_vmem [thread:$0]  %s31, 16, %s33, [#allocation5]
    $region13: #{generator_forward.5} parent=1 // pred_fallthru
      _
    // Predicated region
    $region14: #{generator_forward.5} parent=1 // pred_check
      _
    $region15: #{generator_forward.5} parent=1 // pred_check_branch
      %37 = sbr.rel (0) target = $region17
    $region16: #{generator_forward.5} parent=1 // pred_region
      %39 = dma.done [#allocation3], 4096
    $region17: #{generator_forward.5} parent=1 // pred_fallthru
      _
    // Predicated region
    $region18: #{generator_forward.5} parent=1 // pred_check
      _
    $region19: #{generator_forward.5} parent=1 // pred_check_branch
      %41 = sbr.rel (0) target = $region21
    $region20: #{generator_forward.5} parent=1 // pred_region
      %43 = dma.done [#allocation5], 16
    $region21: #{generator_forward.5} parent=1 // pred_fallthru
      _
    %v44 = vld [vmem:[%s0] sm:$0xff]
    %v45 = vld [vmem:[%s0 + $0x8] sm:$0xff]
    %v46 = vld [vmem:[%s0 + $0x10] sm:$0xff]
    %v47 = vld [vmem:[%s0 + $0x18] sm:$0xff]
    %v48 = vld [vmem:[%s0 + $0x20] sm:$0xff]
    %v49 = vld [vmem:[%s0 + $0x28] sm:$0xff]
    %v50 = vld [vmem:[%s0 + $0x30] sm:$0xff]
    %v51 = vld [vmem:[%s0 + $0x38] sm:$0xff]
    %v52 = vld [vmem:[%s0 + $0x40] sm:$0xff]
    %v53 = vld [vmem:[%s0 + $0x48] sm:$0xff]
    %v54 = vld [vmem:[%s0 + $0x50] sm:$0xff]
    %v55 = vld [vmem:[%s0 + $0x58] sm:$0xff]
    %v56 = vld [vmem:[%s0 + $0x60] sm:$0xff]
    %v57 = vld [vmem:[%s0 + $0x68] sm:$0xff]
    %v58 = vld [vmem:[%s0 + $0x70] sm:$0xff]
    %v59 = vld [vmem:[%s0 + $0x78] sm:$0xff]
    %v60 = vld [vmem:[%s0 + $0x80] sm:$0xff]
    %v61 = vld [vmem:[%s0 + $0x88] sm:$0xff]
    %v62 = vld [vmem:[%s0 + $0x90] sm:$0xff]
    %v63 = vld [vmem:[%s0 + $0x98] sm:$0xff]
    %v64 = vld [vmem:[%s0 + $0xa0] sm:$0xff]
    %v65 = vld [vmem:[%s0 + $0xa8] sm:$0xff]
    %v66 = vld [vmem:[%s0 + $0xb0] sm:$0xff]
    %v67 = vld [vmem:[%s0 + $0xb8] sm:$0xff]
    %v68 = vld [vmem:[%s0 + $0xc0] sm:$0xff]
    %v69 = vld [vmem:[%s0 + $0xc8] sm:$0xff]
    %v70 = vld [vmem:[%s0 + $0xd0] sm:$0xff]
    %v71 = vld [vmem:[%s0 + $0xd8] sm:$0xff]
    %v72 = vld [vmem:[%s0 + $0xe0] sm:$0xff]
    %v73 = vld [vmem:[%s0 + $0xe8] sm:$0xff]
    %v74 = vld [vmem:[%s0 + $0xf0] sm:$0xff]
    %v75 = vld [vmem:[%s0 + $0xf8] sm:$0xff]
    %v76 = vld [vmem:[#allocation2] sm:$0xff]
    %v77 = vld [vmem:[#allocation2 + $0x8] sm:$0xff]
    %v78 = vld [vmem:[#allocation2 + $0x10] sm:$0xff]
    %v79 = vld [vmem:[#allocation2 + $0x18] sm:$0xff]
    %v80 = vld [vmem:[#allocation2 + $0x20] sm:$0xff]
    %v81 = vld [vmem:[#allocation2 + $0x28] sm:$0xff]
    %v82 = vld [vmem:[#allocation2 + $0x30] sm:$0xff]
    %v83 = vld [vmem:[#allocation2 + $0x38] sm:$0xff]
    %v84 = vld [vmem:[#allocation2 + $0x40] sm:$0xff]
    %v85 = vld [vmem:[#allocation2 + $0x48] sm:$0xff]
    %v86 = vld [vmem:[#allocation2 + $0x50] sm:$0xff]
    %v87 = vld [vmem:[#allocation2 + $0x58] sm:$0xff]
    %v88 = vld [vmem:[#allocation2 + $0x60] sm:$0xff]
    %v89 = vld [vmem:[#allocation2 + $0x68] sm:$0xff]
    %v90 = vld [vmem:[#allocation2 + $0x70] sm:$0xff]
    %v91 = vld [vmem:[#allocation2 + $0x78] sm:$0xff]
    %v92 = vld [vmem:[#allocation2 + $0x80] sm:$0xff]
    %v93 = vld [vmem:[#allocation2 + $0x88] sm:$0xff]
    %v94 = vld [vmem:[#allocation2 + $0x90] sm:$0xff]
    %v95 = vld [vmem:[#allocation2 + $0x98] sm:$0xff]
    %v96 = vld [vmem:[#allocation2 + $0xa0] sm:$0xff]
    %v97 = vld [vmem:[#allocation2 + $0xa8] sm:$0xff]
    %v98 = vld [vmem:[#allocation2 + $0xb0] sm:$0xff]
    %v99 = vld [vmem:[#allocation2 + $0xb8] sm:$0xff]
    %v100 = vld [vmem:[#allocation2 + $0xc0] sm:$0xff]
    %v101 = vld [vmem:[#allocation2 + $0xc8] sm:$0xff]
    %v102 = vld [vmem:[#allocation2 + $0xd0] sm:$0xff]
    %v103 = vld [vmem:[#allocation2 + $0xd8] sm:$0xff]
    %v104 = vld [vmem:[#allocation2 + $0xe0] sm:$0xff]
    %v105 = vld [vmem:[#allocation2 + $0xe8] sm:$0xff]
    %v106 = vld [vmem:[#allocation2 + $0xf0] sm:$0xff]
    %v107 = vld [vmem:[#allocation2 + $0xf8] sm:$0xff]
    %v108 = vld [vmem:[#allocation4] sm:$0x1]
    %v110 = vperm.slane %v108, 0
    %112 = vmatpush.msra.mxu0 %v91
    %113 = vmatpush.msra.mxu0 %v90
    %114 = vmatpush.msra.mxu0 %v89
    %115 = vmatpush.msra.mxu0 %v88
    %116 = vmatpush.msra.mxu0 %v87
    %117 = vmatpush.msra.mxu0 %v86
    %118 = vmatpush.msra.mxu0 %v85
    %119 = vmatpush.msra.mxu0 %v84
    %120 = vmatpush.msra.mxu0 %v83
    %121 = vmatpush.msra.mxu0 %v82
    %122 = vmatpush.msra.mxu0 %v81
    %123 = vmatpush.msra.mxu0 %v80
    %124 = vmatpush.msra.mxu0 %v79
    %125 = vmatpush.msra.mxu0 %v78
    %126 = vmatpush.msra.mxu0 %v77
    %127 = vmatpush.msra.mxu0 %v76
    %128 = vmatmul.f32.gmra.mxu0 %v44
    %v129 = vpop.f32.mrf.mxu0
    %v130 = vadd.f32 %v110, %v129
    %131 = vmatmul.f32.gmra.mxu0 %v46
    %v132 = vpop.f32.mrf.mxu0
    %v133 = vadd.f32 %v110, %v132
    %134 = vmatmul.f32.gmra.mxu0 %v48
    %v135 = vpop.f32.mrf.mxu0
    %v136 = vadd.f32 %v110, %v135
    %137 = vmatmul.f32.gmra.mxu0 %v50
    %v138 = vpop.f32.mrf.mxu0
    %v139 = vadd.f32 %v110, %v138
    %140 = vmatmul.f32.gmra.mxu0 %v52
    %v141 = vpop.f32.mrf.mxu0
    %v142 = vadd.f32 %v110, %v141
    %143 = vmatmul.f32.gmra.mxu0 %v54
    %v144 = vpop.f32.mrf.mxu0
    %v145 = vadd.f32 %v110, %v144
    %146 = vmatmul.f32.gmra.mxu0 %v56
    %v147 = vpop.f32.mrf.mxu0
    %v148 = vadd.f32 %v110, %v147
    %149 = vmatmul.f32.gmra.mxu0 %v58
    %v150 = vpop.f32.mrf.mxu0
    %v151 = vadd.f32 %v110, %v150
    %152 = vmatmul.f32.gmra.mxu0 %v60
    %v153 = vpop.f32.mrf.mxu0
    %v154 = vadd.f32 %v110, %v153
    %155 = vmatmul.f32.gmra.mxu0 %v62
    %v156 = vpop.f32.mrf.mxu0
    %v157 = vadd.f32 %v110, %v156
    %158 = vmatmul.f32.gmra.mxu0 %v64
    %v159 = vpop.f32.mrf.mxu0
    %v160 = vadd.f32 %v110, %v159
    %161 = vmatmul.f32.gmra.mxu0 %v66
    %v162 = vpop.f32.mrf.mxu0
    %v163 = vadd.f32 %v110, %v162
    %164 = vmatmul.f32.gmra.mxu0 %v68
    %v165 = vpop.f32.mrf.mxu0
    %v166 = vadd.f32 %v110, %v165
    %167 = vmatmul.f32.gmra.mxu0 %v70
    %v168 = vpop.f32.mrf.mxu0
    %v169 = vadd.f32 %v110, %v168
    %170 = vmatmul.f32.gmra.mxu0 %v72
    %v171 = vpop.f32.mrf.mxu0
    %v172 = vadd.f32 %v110, %v171
    %173 = vmatmul.f32.gmra.mxu0 %v74
    %v174 = vpop.f32.mrf.mxu0
    %v175 = vadd.f32 %v110, %v174
    %176 = vdwg.mxu0
    %177 = vmatpush.msra.mxu0 %v107
    %178 = vmatpush.msra.mxu0 %v106
    %179 = vmatpush.msra.mxu0 %v105
    %180 = vmatpush.msra.mxu0 %v104
    %181 = vmatpush.msra.mxu0 %v103
    %182 = vmatpush.msra.mxu0 %v102
    %183 = vmatpush.msra.mxu0 %v101
    %184 = vmatpush.msra.mxu0 %v100
    %185 = vmatpush.msra.mxu0 %v99
    %186 = vmatpush.msra.mxu0 %v98
    %187 = vmatpush.msra.mxu0 %v97
    %188 = vmatpush.msra.mxu0 %v96
    %189 = vmatpush.msra.mxu0 %v95
    %190 = vmatpush.msra.mxu0 %v94
    %191 = vmatpush.msra.mxu0 %v93
    %192 = vmatpush.msra.mxu0 %v92
    %193 = vmatmul.f32.gmra.mxu0 %v45
    %v194 = vpop.f32.mrf.mxu0
    %v195 = vadd.f32 %v130, %v194
    %196 = vmatmul.f32.gmra.mxu0 %v47
    %v197 = vpop.f32.mrf.mxu0
    %v198 = vadd.f32 %v133, %v197
    %199 = vmatmul.f32.gmra.mxu0 %v49
    %v200 = vpop.f32.mrf.mxu0
    %v201 = vadd.f32 %v136, %v200
    %202 = vmatmul.f32.gmra.mxu0 %v51
    %v203 = vpop.f32.mrf.mxu0
    %v204 = vadd.f32 %v139, %v203
    %205 = vmatmul.f32.gmra.mxu0 %v53
    %v206 = vpop.f32.mrf.mxu0
    %v207 = vadd.f32 %v142, %v206
    %208 = vmatmul.f32.gmra.mxu0 %v55
    %v209 = vpop.f32.mrf.mxu0
    %v210 = vadd.f32 %v145, %v209
    %211 = vmatmul.f32.gmra.mxu0 %v57
    %v212 = vpop.f32.mrf.mxu0
    %v213 = vadd.f32 %v148, %v212
    %214 = vmatmul.f32.gmra.mxu0 %v59
    %v215 = vpop.f32.mrf.mxu0
    %v216 = vadd.f32 %v151, %v215
    %217 = vmatmul.f32.gmra.mxu0 %v61
    %v218 = vpop.f32.mrf.mxu0
    %v219 = vadd.f32 %v154, %v218
    %220 = vmatmul.f32.gmra.mxu0 %v63
    %v221 = vpop.f32.mrf.mxu0
    %v222 = vadd.f32 %v157, %v221
    %223 = vmatmul.f32.gmra.mxu0 %v65
    %v224 = vpop.f32.mrf.mxu0
    %v225 = vadd.f32 %v160, %v224
    %226 = vmatmul.f32.gmra.mxu0 %v67
    %v227 = vpop.f32.mrf.mxu0
    %v228 = vadd.f32 %v163, %v227
    %229 = vmatmul.f32.gmra.mxu0 %v69
    %v230 = vpop.f32.mrf.mxu0
    %v231 = vadd.f32 %v166, %v230
    %232 = vmatmul.f32.gmra.mxu0 %v71
    %v233 = vpop.f32.mrf.mxu0
    %v234 = vadd.f32 %v169, %v233
    %235 = vmatmul.f32.gmra.mxu0 %v73
    %v236 = vpop.f32.mrf.mxu0
    %v237 = vadd.f32 %v172, %v236
    %238 = vmatmul.f32.gmra.mxu0 %v75
    %v239 = vpop.f32.mrf.mxu0
    %v240 = vadd.f32 %v175, %v239
    %241 = vdwg.mxu0
    %v242 = vmax.f32 %v195, 0.0
    %v243 = vmax.f32 %v198, 0.0
    %v244 = vmax.f32 %v201, 0.0
    %v245 = vmax.f32 %v204, 0.0
    %v246 = vmax.f32 %v207, 0.0
    %v247 = vmax.f32 %v210, 0.0
    %v248 = vmax.f32 %v213, 0.0
    %v249 = vmax.f32 %v216, 0.0
    %v250 = vmax.f32 %v219, 0.0
    %v251 = vmax.f32 %v222, 0.0
    %v252 = vmax.f32 %v225, 0.0
    %v253 = vmax.f32 %v228, 0.0
    %v254 = vmax.f32 %v231, 0.0
    %v255 = vmax.f32 %v234, 0.0
    %v256 = vmax.f32 %v237, 0.0
    %v257 = vmax.f32 %v240, 0.0
    %258 = vst [vmem:[%s3] sm:$0xff] %v242
    %259 = vst [vmem:[%s3 + $0x8] sm:$0xff] %v243
    %260 = vst [vmem:[%s3 + $0x10] sm:$0xff] %v244
    %261 = vst [vmem:[%s3 + $0x18] sm:$0xff] %v245
    %262 = vst [vmem:[%s3 + $0x20] sm:$0xff] %v246
    %263 = vst [vmem:[%s3 + $0x28] sm:$0xff] %v247
    %264 = vst [vmem:[%s3 + $0x30] sm:$0xff] %v248
    %265 = vst [vmem:[%s3 + $0x38] sm:$0xff] %v249
    %266 = vst [vmem:[%s3 + $0x40] sm:$0xff] %v250
    %267 = vst [vmem:[%s3 + $0x48] sm:$0xff] %v251
    %268 = vst [vmem:[%s3 + $0x50] sm:$0xff] %v252
    %269 = vst [vmem:[%s3 + $0x58] sm:$0xff] %v253
    %270 = vst [vmem:[%s3 + $0x60] sm:$0xff] %v254
    %271 = vst [vmem:[%s3 + $0x68] sm:$0xff] %v255
    %272 = vst [vmem:[%s3 + $0x70] sm:$0xff] %v256
    %273 = vst [vmem:[%s3 + $0x78] sm:$0xff] %v257
    // Predicated region
    $region22: #{generator_forward.5} parent=1 // pred_check
      _
    $region23: #{generator_forward.5} parent=1 // pred_check_branch
      %275 = sbr.rel (0) target = $region25
    $region24: #{generator_forward.5} parent=1 // pred_region
      _
    $region25: #{generator_forward.5} parent=1 // pred_fallthru
      _
    // Predicated region
    $region26: #{generator_forward.5} parent=1 // pred_check
      _
    $region27: #{generator_forward.5} parent=1 // pred_check_branch
      %277 = sbr.rel (0) target = $region29
    $region28: #{generator_forward.5} parent=1 // pred_region
      _
    $region29: #{generator_forward.5} parent=1 // pred_fallthru
      _
    %278 = vsyncpa [#allocation3], 1
    %279 = vsyncpa [#allocation5], 1

// kernel: generator_forward.4
$region0: #{generator_forward.4}
  #allocation0 [shape = 'u32[]', space=smem, size = 0x4, offset = 0x4, fixed_abs, tag = 'smem constant byte address 0x4 - core index']
  #allocation1 [shape = 'u32[72,128]{1,0:T(1,128)}', space=vmem, size = 0x9000, scoped, tag = 'internal scratch']
  %s0 = inlined_call_operand.hbm [shape: f32[2,32], index: 0, kind: input, shape index: {}]
  %s1 = inlined_call_operand.hbm [shape: f32[32,3136], index: 1, kind: input, shape index: {}]
  %s2 = inlined_call_operand.hbm [shape: f32[1,3136], index: 2, kind: input, shape index: {}]
  %s3 = inlined_call_operand.vmem [shape: f32[2,3136], index: 3, kind: output, shape index: {}]
  %s4 = sld [smem:[#allocation0]]
  $region34: #{generator_forward.4} parent=0
    _
  %s6 = ssub.s32 1, %s4
  %s7 = scalar_select 0, %s6, %s4
  $region1: #{generator_forward.4} parent=0
    #allocation2 [shape = 'u8[1024]{0}', space=vmem, size = 0x400, scoped, tag = 'input window, operand 0, single buffered']
    #allocation3 [shape = 's32[1]{0}', space=sflag, size = 0x4, scoped, tag = 'scoped memory for generator_forward.4']
    #allocation4 [shape = 'u8[409600]{0}', space=vmem, size = 0x64000, scoped, tag = 'input window, operand 1, single buffered']
    #allocation5 [shape = 's32[1]{0}', space=sflag, size = 0x4, scoped, tag = 'scoped memory for generator_forward.4']
    #allocation6 [shape = 'u8[12800]{0}', space=vmem, size = 0x3400, scoped, tag = 'input window, operand 2, single buffered']
    %8 = vsyncpa [#allocation3], 0
    %9 = vsyncpa [#allocation5], 0
    // Predicated region
    $region2: #{generator_forward.4} parent=1 // pred_check
      _
    $region3: #{generator_forward.4} parent=1 // pred_check_branch
      %11 = sbr.rel (0) target = $region5
    $region4: #{generator_forward.4} parent=1 // pred_region
      %13 = vsyncadd [#allocation3], 0
      %s15 = sshll.u32 %s0, 4
      %s16 = int_to_ptr.hbm [resolvable:$true] %s15
      %s17 = sshll.u32 [#allocation2], 4
      %s18 = int_to_ptr.vmem [resolvable:$true] %s17
      %20 = dma.hbm_to_vmem [thread:$0]  %s16, 32, %s18, [#allocation3]
    $region5: #{generator_forward.4} parent=1 // pred_fallthru
      _
    // Predicated region
    $region6: #{generator_forward.4} parent=1 // pred_check
      _
    $region7: #{generator_forward.4} parent=1 // pred_check_branch
      %22 = sbr.rel (0) target = $region9
    $region8: #{generator_forward.4} parent=1 // pred_region
      %24 = vsyncadd [#allocation5], 0
      %s25 = sshll.u32 %s1, 4
      %s26 = int_to_ptr.hbm [resolvable:$true] %s25
      %s27 = sshll.u32 [#allocation4], 4
      %s28 = int_to_ptr.vmem [resolvable:$true] %s27
      %33 = dma.hbm_to_vmem [thread:$0]  %s26, 12800, %s28, [#allocation5], 3200, 3200, 200
    $region9: #{generator_forward.4} parent=1 // pred_fallthru
      _
    // Predicated region
    $region10: #{generator_forward.4} parent=1 // pred_check
      _
    $region11: #{generator_forward.4} parent=1 // pred_check_branch
      %35 = sbr.rel (0) target = $region13
    $region12: #{generator_forward.4} parent=1 // pred_region
      %37 = vsyncadd [#allocation5], 0
      %s39 = sshll.u32 %s2, 4
      %s40 = int_to_ptr.hbm [resolvable:$true] %s39
      %s41 = sshll.u32 [#allocation6], 4
      %s42 = int_to_ptr.vmem [resolvable:$true] %s41
      %44 = dma.hbm_to_vmem [thread:$0]  %s40, 400, %s42, [#allocation5]
    $region13: #{generator_forward.4} parent=1 // pred_fallthru
      _
    // Predicated region
    $region14: #{generator_forward.4} parent=1 // pred_check
      _
    $region15: #{generator_forward.4} parent=1 // pred_check_branch
      %46 = sbr.rel (0) target = $region17
    $region16: #{generator_forward.4} parent=1 // pred_region
      %48 = dma.done [#allocation3], 32
    $region17: #{generator_forward.4} parent=1 // pred_fallthru
      _
    // Predicated region
    $region18: #{generator_forward.4} parent=1 // pred_check
      _
    $region19: #{generator_forward.4} parent=1 // pred_check_branch
      %50 = sbr.rel (0) target = $region21
    $region20: #{generator_forward.4} parent=1 // pred_region
      %52 = dma.done [#allocation5], 12800
    $region21: #{generator_forward.4} parent=1 // pred_fallthru
      _
    // Predicated region
    $region22: #{generator_forward.4} parent=1 // pred_check
      _
    $region23: #{generator_forward.4} parent=1 // pred_check_branch
      %54 = sbr.rel (0) target = $region25
    $region24: #{generator_forward.4} parent=1 // pred_region
      %56 = dma.done [#allocation5], 400
    $region25: #{generator_forward.4} parent=1 // pred_fallthru
      _
    %v57 = vld [vmem:[#allocation2] sm:$0x3]
    %v58 = vld [vmem:[#allocation4] sm:$0xff]
    %v59 = vld [vmem:[#allocation4 + $0x8] sm:$0xff]
    %v60 = vld [vmem:[#allocation4 + $0x10] sm:$0xff]
    %v61 = vld [vmem:[#allocation4 + $0x18] sm:$0xff]
    %v62 = vld [vmem:[#allocation4 + $0x20] sm:$0xff]
    %v63 = vld [vmem:[#allocation4 + $0x28] sm:$0xff]
    %v64 = vld [vmem:[#allocation4 + $0x30] sm:$0xff]
    %v65 = vld [vmem:[#allocation4 + $0x38] sm:$0xff]
    %v66 = vld [vmem:[#allocation4 + $0x40] sm:$0xff]
    %v67 = vld [vmem:[#allocation4 + $0x48] sm:$0xff]
    %v68 = vld [vmem:[#allocation4 + $0x50] sm:$0xff]
    %v69 = vld [vmem:[#allocation4 + $0x58] sm:$0xff]
    %v70 = vld [vmem:[#allocation4 + $0x60] sm:$0xff]
    %v71 = vld [vmem:[#allocation4 + $0x68] sm:$0xff]
    %v72 = vld [vmem:[#allocation4 + $0x70] sm:$0xff]
    %v73 = vld [vmem:[#allocation4 + $0x78] sm:$0xff]
    %v74 = vld [vmem:[#allocation4 + $0x80] sm:$0xff]
    %v75 = vld [vmem:[#allocation4 + $0x88] sm:$0xff]
    %v76 = vld [vmem:[#allocation4 + $0x90] sm:$0xff]
    %v77 = vld [vmem:[#allocation4 + $0x98] sm:$0xff]
    %v78 = vld [vmem:[#allocation4 + $0xa0] sm:$0xff]
    %v79 = vld [vmem:[#allocation4 + $0xa8] sm:$0xff]
    %v80 = vld [vmem:[#allocation4 + $0xb0] sm:$0xff]
    %v81 = vld [vmem:[#allocation4 + $0xb8] sm:$0xff]
    %v82 = vld [vmem:[#allocation4 + $0xc0] sm:$0xff]
    %v83 = vld [vmem:[#allocation4 + $0xc8] sm:$0xff]
    %v84 = vld [vmem:[#allocation4 + $0xd0] sm:$0xff]
    %v85 = vld [vmem:[#allocation4 + $0xd8] sm:$0xff]
    %v86 = vld [vmem:[#allocation4 + $0xe0] sm:$0xff]
    %v87 = vld [vmem:[#allocation4 + $0xe8] sm:$0xff]
    %v88 = vld [vmem:[#allocation4 + $0xf0] sm:$0xff]
    %v89 = vld [vmem:[#allocation4 + $0xf8] sm:$0xff]
    %v90 = vld [vmem:[#allocation4 + $0x100] sm:$0xff]
    %v91 = vld [vmem:[#allocation4 + $0x108] sm:$0xff]
    %v92 = vld [vmem:[#allocation4 + $0x110] sm:$0xff]
    %v93 = vld [vmem:[#allocation4 + $0x118] sm:$0xff]
    %v94 = vld [vmem:[#allocation4 + $0x120] sm:$0xff]
    %v95 = vld [vmem:[#allocation4 + $0x128] sm:$0xff]
    %v96 = vld [vmem:[#allocation4 + $0x130] sm:$0xff]
    %v97 = vld [vmem:[#allocation4 + $0x138] sm:$0xff]
    %v98 = vld [vmem:[#allocation4 + $0x140] sm:$0xff]
    %v99 = vld [vmem:[#allocation4 + $0x148] sm:$0xff]
    %v100 = vld [vmem:[#allocation4 + $0x150] sm:$0xff]
    %v101 = vld [vmem:[#allocation4 + $0x158] sm:$0xff]
    %v102 = vld [vmem:[#allocation4 + $0x160] sm:$0xff]
    %v103 = vld [vmem:[#allocation4 + $0x168] sm:$0xff]
    %v104 = vld [vmem:[#allocation4 + $0x170] sm:$0xff]
    %v105 = vld [vmem:[#allocation4 + $0x178] sm:$0xff]
    %v106 = vld [vmem:[#allocation4 + $0x180] sm:$0xff]
    %v107 = vld [vmem:[#allocation4 + $0x188] sm:$0xff]
    %v108 = vld [vmem:[#allocation4 + $0x190] sm:$0xff]
    %v109 = vld [vmem:[#allocation4 + $0x198] sm:$0xff]
    %v110 = vld [vmem:[#allocation4 + $0x1a0] sm:$0xff]
    %v111 = vld [vmem:[#allocation4 + $0x1a8] sm:$0xff]
    %v112 = vld [vmem:[#allocation4 + $0x1b0] sm:$0xff]
    %v113 = vld [vmem:[#allocation4 + $0x1b8] sm:$0xff]
    %v114 = vld [vmem:[#allocation4 + $0x1c0] sm:$0xff]
    %v115 = vld [vmem:[#allocation4 + $0x1c8] sm:$0xff]
    %v116 = vld [vmem:[#allocation4 + $0x1d0] sm:$0xff]
    %v117 = vld [vmem:[#allocation4 + $0x1d8] sm:$0xff]
    %v118 = vld [vmem:[#allocation4 + $0x1e0] sm:$0xff]
    %v119 = vld [vmem:[#allocation4 + $0x1e8] sm:$0xff]
    %v120 = vld [vmem:[#allocation4 + $0x1f0] sm:$0xff]
    %v121 = vld [vmem:[#allocation4 + $0x1f8] sm:$0xff]
    %v122 = vld [vmem:[#allocation4 + $0x200] sm:$0xff]
    %v123 = vld [vmem:[#allocation4 + $0x208] sm:$0xff]
    %v124 = vld [vmem:[#allocation4 + $0x210] sm:$0xff]
    %v125 = vld [vmem:[#allocation4 + $0x218] sm:$0xff]
    %v126 = vld [vmem:[#allocation4 + $0x220] sm:$0xff]
    %v127 = vld [vmem:[#allocation4 + $0x228] sm:$0xff]
    %v128 = vld [vmem:[#allocation4 + $0x230] sm:$0xff]
    %v129 = vld [vmem:[#allocation4 + $0x238] sm:$0xff]
    %v130 = vld [vmem:[#allocation4 + $0x240] sm:$0xff]
    %v131 = vld [vmem:[#allocation4 + $0x248] sm:$0xff]
    %v132 = vld [vmem:[#allocation4 + $0x250] sm:$0xff]
    %v133 = vld [vmem:[#allocation4 + $0x258] sm:$0xff]
    %v134 = vld [vmem:[#allocation4 + $0x260] sm:$0xff]
    %v135 = vld [vmem:[#allocation4 + $0x268] sm:$0xff]
    %v136 = vld [vmem:[#allocation4 + $0x270] sm:$0xff]
    %v137 = vld [vmem:[#allocation4 + $0x278] sm:$0xff]
    %v138 = vld [vmem:[#allocation4 + $0x280] sm:$0xff]
    %v139 = vld [vmem:[#allocation4 + $0x288] sm:$0xff]
    %v140 = vld [vmem:[#allocation4 + $0x290] sm:$0xff]
    %v141 = vld [vmem:[#allocation4 + $0x298] sm:$0xff]
    %v142 = vld [vmem:[#allocation4 + $0x2a0] sm:$0xff]
    %v143 = vld [vmem:[#allocation4 + $0x2a8] sm:$0xff]
    %v144 = vld [vmem:[#allocation4 + $0x2b0] sm:$0xff]
    %v145 = vld [vmem:[#allocation4 + $0x2b8] sm:$0xff]
    %v146 = vld [vmem:[#allocation4 + $0x2c0] sm:$0xff]
    %v147 = vld [vmem:[#allocation4 + $0x2c8] sm:$0xff]
    %v148 = vld [vmem:[#allocation4 + $0x2d0] sm:$0xff]
    %v149 = vld [vmem:[#allocation4 + $0x2d8] sm:$0xff]
    %v150 = vld [vmem:[#allocation4 + $0x2e0] sm:$0xff]
    %v151 = vld [vmem:[#allocation4 + $0x2e8] sm:$0xff]
    %v152 = vld [vmem:[#allocation4 + $0x2f0] sm:$0xff]
    %v153 = vld [vmem:[#allocation4 + $0x2f8] sm:$0xff]
    %v154 = vld [vmem:[#allocation4 + $0x300] sm:$0xff]
    %v155 = vld [vmem:[#allocation4 + $0x308] sm:$0xff]
    %v156 = vld [vmem:[#allocation4 + $0x310] sm:$0xff]
    %v157 = vld [vmem:[#allocation4 + $0x318] sm:$0xff]
    %v158 = vld [vmem:[#allocation6] sm:$0xff]
    %v159 = vld [vmem:[#allocation6 + $0x8] sm:$0xff]
    %v160 = vld [vmem:[#allocation6 + $0x10] sm:$0xff]
    %v161 = vld [vmem:[#allocation6 + $0x18] sm:$0x1]
    %v166 = vperm.slane %v158, 0
    %v167 = vperm.slane %v158, 1
    %v168 = vperm.slane %v158, 2
    %v169 = vperm.slane %v158, 3
    %v170 = vperm.slane %v158, 4
    %v171 = vperm.slane %v158, 5
    %v172 = vperm.slane %v158, 6
    %v173 = vperm.slane %v158, 7
    %v174 = vperm.slane %v159, 0
    %v175 = vperm.slane %v159, 1
    %v176 = vperm.slane %v159, 2
    %v177 = vperm.slane %v159, 3
    %v178 = vperm.slane %v159, 4
    %v179 = vperm.slane %v159, 5
    %v180 = vperm.slane %v159, 6
    %v181 = vperm.slane %v159, 7
    %v182 = vperm.slane %v160, 0
    %v183 = vperm.slane %v160, 1
    %v184 = vperm.slane %v160, 2
    %v185 = vperm.slane %v160, 3
    %v186 = vperm.slane %v160, 4
    %v187 = vperm.slane %v160, 5
    %v188 = vperm.slane %v160, 6
    %v189 = vperm.slane %v160, 7
    %v190 = vperm.slane %v161, 0
    %vm216 = vcmask 261120
    %v218 = vsel %vm216, %v57, 0
    %220 = vmatpush.msra.mxu0 0.0
    %221 = vmatpush.msra.mxu0 0.0
    %222 = vmatpush.msra.mxu0 0.0
    %223 = vmatpush.msra.mxu0 0.0
    %224 = vmatpush.msra.mxu0 0.0
    %225 = vmatpush.msra.mxu0 0.0
    %226 = vmatpush.msra.mxu0 0.0
    %227 = vmatpush.msra.mxu0 0.0
    %228 = vmatpush.msra.mxu0 0.0
    %229 = vmatpush.msra.mxu0 0.0
    %230 = vmatpush.msra.mxu0 0.0
    %231 = vmatpush.msra.mxu0 0.0
    %232 = vmatpush.msra.mxu0 %v133
    %233 = vmatpush.msra.mxu0 %v108
    %234 = vmatpush.msra.mxu0 %v83
    %235 = vmatpush.msra.mxu0 %v58
    %236 = vmatmul.f32.gmra.mxu0 %v218
    %v237 = vpop.f32.mrf.mxu0
    %v238 = vadd.f32 %v166, %v237
    %239 = vdwg.mxu0
    %240 = vmatpush.msra.mxu0 0.0
    %241 = vmatpush.msra.mxu0 0.0
    %242 = vmatpush.msra.mxu0 0.0
    %243 = vmatpush.msra.mxu0 0.0
    %244 = vmatpush.msra.mxu0 0.0
    %245 = vmatpush.msra.mxu0 0.0
    %246 = vmatpush.msra.mxu0 0.0
    %247 = vmatpush.msra.mxu0 0.0
    %248 = vmatpush.msra.mxu0 0.0
    %249 = vmatpush.msra.mxu0 0.0
    %250 = vmatpush.msra.mxu0 0.0
    %251 = vmatpush.msra.mxu0 0.0
    %252 = vmatpush.msra.mxu0 %v134
    %253 = vmatpush.msra.mxu0 %v109
    %254 = vmatpush.msra.mxu0 %v84
    %255 = vmatpush.msra.mxu0 %v59
    %256 = vmatmul.f32.gmra.mxu0 %v218
    %v257 = vpop.f32.mrf.mxu0
    %v258 = vadd.f32 %v167, %v257
    %259 = vdwg.mxu0
    %260 = vmatpush.msra.mxu0 0.0
    %261 = vmatpush.msra.mxu0 0.0
    %262 = vmatpush.msra.mxu0 0.0
    %263 = vmatpush.msra.mxu0 0.0
    %264 = vmatpush.msra.mxu0 0.0
    %265 = vmatpush.msra.mxu0 0.0
    %266 = vmatpush.msra.mxu0 0.0
    %267 = vmatpush.msra.mxu0 0.0
    %268 = vmatpush.msra.mxu0 0.0
    %269 = vmatpush.msra.mxu0 0.0
    %270 = vmatpush.msra.mxu0 0.0
    %271 = vmatpush.msra.mxu0 0.0
    %272 = vmatpush.msra.mxu0 %v135
    %273 = vmatpush.msra.mxu0 %v110
    %274 = vmatpush.msra.mxu0 %v85
    %275 = vmatpush.msra.mxu0 %v60
    %276 = vmatmul.f32.gmra.mxu0 %v218
    %v277 = vpop.f32.mrf.mxu0
    %v278 = vadd.f32 %v168, %v277
    %279 = vdwg.mxu0
    %280 = vmatpush.msra.mxu0 0.0
    %281 = vmatpush.msra.mxu0 0.0
    %282 = vmatpush.msra.mxu0 0.0
    %283 = vmatpush.msra.mxu0 0.0
    %284 = vmatpush.msra.mxu0 0.0
    %285 = vmatpush.msra.mxu0 0.0
    %286 = vmatpush.msra.mxu0 0.0
    %287 = vmatpush.msra.mxu0 0.0
    %288 = vmatpush.msra.mxu0 0.0
    %289 = vmatpush.msra.mxu0 0.0
    %290 = vmatpush.msra.mxu0 0.0
    %291 = vmatpush.msra.mxu0 0.0
    %292 = vmatpush.msra.mxu0 %v136
    %293 = vmatpush.msra.mxu0 %v111
    %294 = vmatpush.msra.mxu0 %v86
    %295 = vmatpush.msra.mxu0 %v61
    %296 = vmatmul.f32.gmra.mxu0 %v218
    %v297 = vpop.f32.mrf.mxu0
    %v298 = vadd.f32 %v169, %v297
    %299 = vdwg.mxu0
    %300 = vmatpush.msra.mxu0 0.0
    %301 = vmatpush.msra.mxu0 0.0
    %302 = vmatpush.msra.mxu0 0.0
    %303 = vmatpush.msra.mxu0 0.0
    %304 = vmatpush.msra.mxu0 0.0
    %305 = vmatpush.msra.mxu0 0.0
    %306 = vmatpush.msra.mxu0 0.0
    %307 = vmatpush.msra.mxu0 0.0
    %308 = vmatpush.msra.mxu0 0.0
    %309 = vmatpush.msra.mxu0 0.0
    %310 = vmatpush.msra.mxu0 0.0
    %311 = vmatpush.msra.mxu0 0.0
    %312 = vmatpush.msra.mxu0 %v137
    %313 = vmatpush.msra.mxu0 %v112
    %314 = vmatpush.msra.mxu0 %v87
    %315 = vmatpush.msra.mxu0 %v62
    %316 = vmatmul.f32.gmra.mxu0 %v218
    %v317 = vpop.f32.mrf.mxu0
    %v318 = vadd.f32 %v170, %v317
    %319 = vdwg.mxu0
    %320 = vmatpush.msra.mxu0 0.0
    %321 = vmatpush.msra.mxu0 0.0
    %322 = vmatpush.msra.mxu0 0.0
    %323 = vmatpush.msra.mxu0 0.0
    %324 = vmatpush.msra.mxu0 0.0
    %325 = vmatpush.msra.mxu0 0.0
    %326 = vmatpush.msra.mxu0 0.0
    %327 = vmatpush.msra.mxu0 0.0
    %328 = vmatpush.msra.mxu0 0.0
    %329 = vmatpush.msra.mxu0 0.0
    %330 = vmatpush.msra.mxu0 0.0
    %331 = vmatpush.msra.mxu0 0.0
    %332 = vmatpush.msra.mxu0 %v138
    %333 = vmatpush.msra.mxu0 %v113
    %334 = vmatpush.msra.mxu0 %v88
    %335 = vmatpush.msra.mxu0 %v63
    %336 = vmatmul.f32.gmra.mxu0 %v218
    %v337 = vpop.f32.mrf.mxu0
    %v338 = vadd.f32 %v171, %v337
    %339 = vdwg.mxu0
    %340 = vmatpush.msra.mxu0 0.0
    %341 = vmatpush.msra.mxu0 0.0
    %342 = vmatpush.msra.mxu0 0.0
    %343 = vmatpush.msra.mxu0 0.0
    %344 = vmatpush.msra.mxu0 0.0
    %345 = vmatpush.msra.mxu0 0.0
    %346 = vmatpush.msra.mxu0 0.0
    %347 = vmatpush.msra.mxu0 0.0
    %348 = vmatpush.msra.mxu0 0.0
    %349 = vmatpush.msra.mxu0 0.0
    %350 = vmatpush.msra.mxu0 0.0
    %351 = vmatpush.msra.mxu0 0.0
    %352 = vmatpush.msra.mxu0 %v139
    %353 = vmatpush.msra.mxu0 %v114
    %354 = vmatpush.msra.mxu0 %v89
    %355 = vmatpush.msra.mxu0 %v64
    %356 = vmatmul.f32.gmra.mxu0 %v218
    %v357 = vpop.f32.mrf.mxu0
    %v358 = vadd.f32 %v172, %v357
    %359 = vdwg.mxu0
    %360 = vmatpush.msra.mxu0 0.0
    %361 = vmatpush.msra.mxu0 0.0
    %362 = vmatpush.msra.mxu0 0.0
    %363 = vmatpush.msra.mxu0 0.0
    %364 = vmatpush.msra.mxu0 0.0
    %365 = vmatpush.msra.mxu0 0.0
    %366 = vmatpush.msra.mxu0 0.0
    %367 = vmatpush.msra.mxu0 0.0
    %368 = vmatpush.msra.mxu0 0.0
    %369 = vmatpush.msra.mxu0 0.0
    %370 = vmatpush.msra.mxu0 0.0
    %371 = vmatpush.msra.mxu0 0.0
    %372 = vmatpush.msra.mxu0 %v140
    %373 = vmatpush.msra.mxu0 %v115
    %374 = vmatpush.msra.mxu0 %v90
    %375 = vmatpush.msra.mxu0 %v65
    %376 = vmatmul.f32.gmra.mxu0 %v218
    %v377 = vpop.f32.mrf.mxu0
    %v378 = vadd.f32 %v173, %v377
    %379 = vdwg.mxu0
    %380 = vmatpush.msra.mxu0 0.0
    %381 = vmatpush.msra.mxu0 0.0
    %382 = vmatpush.msra.mxu0 0.0
    %383 = vmatpush.msra.mxu0 0.0
    %384 = vmatpush.msra.mxu0 0.0
    %385 = vmatpush.msra.mxu0 0.0
    %386 = vmatpush.msra.mxu0 0.0
    %387 = vmatpush.msra.mxu0 0.0
    %388 = vmatpush.msra.mxu0 0.0
    %389 = vmatpush.msra.mxu0 0.0
    %390 = vmatpush.msra.mxu0 0.0
    %391 = vmatpush.msra.mxu0 0.0
    %392 = vmatpush.msra.mxu0 %v141
    %393 = vmatpush.msra.mxu0 %v116
    %394 = vmatpush.msra.mxu0 %v91
    %395 = vmatpush.msra.mxu0 %v66
    %396 = vmatmul.f32.gmra.mxu0 %v218
    %v397 = vpop.f32.mrf.mxu0
    %v398 = vadd.f32 %v174, %v397
    %399 = vdwg.mxu0
    %400 = vmatpush.msra.mxu0 0.0
    %401 = vmatpush.msra.mxu0 0.0
    %402 = vmatpush.msra.mxu0 0.0
    %403 = vmatpush.msra.mxu0 0.0
    %404 = vmatpush.msra.mxu0 0.0
    %405 = vmatpush.msra.mxu0 0.0
    %406 = vmatpush.msra.mxu0 0.0
    %407 = vmatpush.msra.mxu0 0.0
    %408 = vmatpush.msra.mxu0 0.0
    %409 = vmatpush.msra.mxu0 0.0
    %410 = vmatpush.msra.mxu0 0.0
    %411 = vmatpush.msra.mxu0 0.0
    %412 = vmatpush.msra.mxu0 %v142
    %413 = vmatpush.msra.mxu0 %v117
    %414 = vmatpush.msra.mxu0 %v92
    %415 = vmatpush.msra.mxu0 %v67
    %416 = vmatmul.f32.gmra.mxu0 %v218
    %v417 = vpop.f32.mrf.mxu0
    %v418 = vadd.f32 %v175, %v417
    %419 = vdwg.mxu0
    %420 = vmatpush.msra.mxu0 0.0
    %421 = vmatpush.msra.mxu0 0.0
    %422 = vmatpush.msra.mxu0 0.0
    %423 = vmatpush.msra.mxu0 0.0
    %424 = vmatpush.msra.mxu0 0.0
    %425 = vmatpush.msra.mxu0 0.0
    %426 = vmatpush.msra.mxu0 0.0
    %427 = vmatpush.msra.mxu0 0.0
    %428 = vmatpush.msra.mxu0 0.0
    %429 = vmatpush.msra.mxu0 0.0
    %430 = vmatpush.msra.mxu0 0.0
    %431 = vmatpush.msra.mxu0 0.0
    %432 = vmatpush.msra.mxu0 %v143
    %433 = vmatpush.msra.mxu0 %v118
    %434 = vmatpush.msra.mxu0 %v93
    %435 = vmatpush.msra.mxu0 %v68
    %436 = vmatmul.f32.gmra.mxu0 %v218
    %v437 = vpop.f32.mrf.mxu0
    %v438 = vadd.f32 %v176, %v437
    %439 = vdwg.mxu0
    %440 = vmatpush.msra.mxu0 0.0
    %441 = vmatpush.msra.mxu0 0.0
    %442 = vmatpush.msra.mxu0 0.0
    %443 = vmatpush.msra.mxu0 0.0
    %444 = vmatpush.msra.mxu0 0.0
    %445 = vmatpush.msra.mxu0 0.0
    %446 = vmatpush.msra.mxu0 0.0
    %447 = vmatpush.msra.mxu0 0.0
    %448 = vmatpush.msra.mxu0 0.0
    %449 = vmatpush.msra.mxu0 0.0
    %450 = vmatpush.msra.mxu0 0.0
    %451 = vmatpush.msra.mxu0 0.0
    %452 = vmatpush.msra.mxu0 %v144
    %453 = vmatpush.msra.mxu0 %v119
    %454 = vmatpush.msra.mxu0 %v94
    %455 = vmatpush.msra.mxu0 %v69
    %456 = vmatmul.f32.gmra.mxu0 %v218
    %v457 = vpop.f32.mrf.mxu0
    %v458 = vadd.f32 %v177, %v457
    %459 = vdwg.mxu0
    %460 = vmatpush.msra.mxu0 0.0
    %461 = vmatpush.msra.mxu0 0.0
    %462 = vmatpush.msra.mxu0 0.0
    %463 = vmatpush.msra.mxu0 0.0
    %464 = vmatpush.msra.mxu0 0.0
    %465 = vmatpush.msra.mxu0 0.0
    %466 = vmatpush.msra.mxu0 0.0
    %467 = vmatpush.msra.mxu0 0.0
    %468 = vmatpush.msra.mxu0 0.0
    %469 = vmatpush.msra.mxu0 0.0
    %470 = vmatpush.msra.mxu0 0.0
    %471 = vmatpush.msra.mxu0 0.0
    %472 = vmatpush.msra.mxu0 %v145
    %473 = vmatpush.msra.mxu0 %v120
    %474 = vmatpush.msra.mxu0 %v95
    %475 = vmatpush.msra.mxu0 %v70
    %476 = vmatmul.f32.gmra.mxu0 %v218
    %v477 = vpop.f32.mrf.mxu0
    %v478 = vadd.f32 %v178, %v477
    %479 = vdwg.mxu0
    %480 = vmatpush.msra.mxu0 0.0
    %481 = vmatpush.msra.mxu0 0.0
    %482 = vmatpush.msra.mxu0 0.0
    %483 = vmatpush.msra.mxu0 0.0
    %484 = vmatpush.msra.mxu0 0.0
    %485 = vmatpush.msra.mxu0 0.0
    %486 = vmatpush.msra.mxu0 0.0
    %487 = vmatpush.msra.mxu0 0.0
    %488 = vmatpush.msra.mxu0 0.0
    %489 = vmatpush.msra.mxu0 0.0
    %490 = vmatpush.msra.mxu0 0.0
    %491 = vmatpush.msra.mxu0 0.0
    %492 = vmatpush.msra.mxu0 %v146
    %493 = vmatpush.msra.mxu0 %v121
    %494 = vmatpush.msra.mxu0 %v96
    %495 = vmatpush.msra.mxu0 %v71
    %496 = vmatmul.f32.gmra.mxu0 %v218
    %v497 = vpop.f32.mrf.mxu0
    %v498 = vadd.f32 %v179, %v497
    %499 = vdwg.mxu0
    %500 = vmatpush.msra.mxu0 0.0
    %501 = vmatpush.msra.mxu0 0.0
    %502 = vmatpush.msra.mxu0 0.0
    %503 = vmatpush.msra.mxu0 0.0
    %504 = vmatpush.msra.mxu0 0.0
    %505 = vmatpush.msra.mxu0 0.0
    %506 = vmatpush.msra.mxu0 0.0
    %507 = vmatpush.msra.mxu0 0.0
    %508 = vmatpush.msra.mxu0 0.0
    %509 = vmatpush.msra.mxu0 0.0
    %510 = vmatpush.msra.mxu0 0.0
    %511 = vmatpush.msra.mxu0 0.0
    %512 = vmatpush.msra.mxu0 %v147
    %513 = vmatpush.msra.mxu0 %v122
    %514 = vmatpush.msra.mxu0 %v97
    %515 = vmatpush.msra.mxu0 %v72
    %516 = vmatmul.f32.gmra.mxu0 %v218
    %v517 = vpop.f32.mrf.mxu0
    %v518 = vadd.f32 %v180, %v517
    %519 = vdwg.mxu0
    %520 = vmatpush.msra.mxu0 0.0
    %521 = vmatpush.msra.mxu0 0.0
    %522 = vmatpush.msra.mxu0 0.0
    %523 = vmatpush.msra.mxu0 0.0
    %524 = vmatpush.msra.mxu0 0.0
    %525 = vmatpush.msra.mxu0 0.0
    %526 = vmatpush.msra.mxu0 0.0
    %527 = vmatpush.msra.mxu0 0.0
    %528 = vmatpush.msra.mxu0 0.0
    %529 = vmatpush.msra.mxu0 0.0
    %530 = vmatpush.msra.mxu0 0.0
    %531 = vmatpush.msra.mxu0 0.0
    %532 = vmatpush.msra.mxu0 %v148
    %533 = vmatpush.msra.mxu0 %v123
    %534 = vmatpush.msra.mxu0 %v98
    %535 = vmatpush.msra.mxu0 %v73
    %536 = vmatmul.f32.gmra.mxu0 %v218
    %v537 = vpop.f32.mrf.mxu0
    %v538 = vadd.f32 %v181, %v537
    %539 = vdwg.mxu0
    %540 = vmatpush.msra.mxu0 0.0
    %541 = vmatpush.msra.mxu0 0.0
    %542 = vmatpush.msra.mxu0 0.0
    %543 = vmatpush.msra.mxu0 0.0
    %544 = vmatpush.msra.mxu0 0.0
    %545 = vmatpush.msra.mxu0 0.0
    %546 = vmatpush.msra.mxu0 0.0
    %547 = vmatpush.msra.mxu0 0.0
    %548 = vmatpush.msra.mxu0 0.0
    %549 = vmatpush.msra.mxu0 0.0
    %550 = vmatpush.msra.mxu0 0.0
    %551 = vmatpush.msra.mxu0 0.0
    %552 = vmatpush.msra.mxu0 %v149
    %553 = vmatpush.msra.mxu0 %v124
    %554 = vmatpush.msra.mxu0 %v99
    %555 = vmatpush.msra.mxu0 %v74
    %556 = vmatmul.f32.gmra.mxu0 %v218
    %v557 = vpop.f32.mrf.mxu0
    %v558 = vadd.f32 %v182, %v557
    %559 = vdwg.mxu0
    %560 = vmatpush.msra.mxu0 0.0
    %561 = vmatpush.msra.mxu0 0.0
    %562 = vmatpush.msra.mxu0 0.0
    %563 = vmatpush.msra.mxu0 0.0
    %564 = vmatpush.msra.mxu0 0.0
    %565 = vmatpush.msra.mxu0 0.0
    %566 = vmatpush.msra.mxu0 0.0
    %567 = vmatpush.msra.mxu0 0.0
    %568 = vmatpush.msra.mxu0 0.0
    %569 = vmatpush.msra.mxu0 0.0
    %570 = vmatpush.msra.mxu0 0.0
    %571 = vmatpush.msra.mxu0 0.0
    %572 = vmatpush.msra.mxu0 %v150
    %573 = vmatpush.msra.mxu0 %v125
    %574 = vmatpush.msra.mxu0 %v100
    %575 = vmatpush.msra.mxu0 %v75
    %576 = vmatmul.f32.gmra.mxu0 %v218
    %v577 = vpop.f32.mrf.mxu0
    %v578 = vadd.f32 %v183, %v577
    %579 = vdwg.mxu0
    %580 = vmatpush.msra.mxu0 0.0
    %581 = vmatpush.msra.mxu0 0.0
    %582 = vmatpush.msra.mxu0 0.0
    %583 = vmatpush.msra.mxu0 0.0
    %584 = vmatpush.msra.mxu0 0.0
    %585 = vmatpush.msra.mxu0 0.0
    %586 = vmatpush.msra.mxu0 0.0
    %587 = vmatpush.msra.mxu0 0.0
    %588 = vmatpush.msra.mxu0 0.0
    %589 = vmatpush.msra.mxu0 0.0
    %590 = vmatpush.msra.mxu0 0.0
    %591 = vmatpush.msra.mxu0 0.0
    %592 = vmatpush.msra.mxu0 %v151
    %593 = vmatpush.msra.mxu0 %v126
    %594 = vmatpush.msra.mxu0 %v101
    %595 = vmatpush.msra.mxu0 %v76
    %596 = vmatmul.f32.gmra.mxu0 %v218
    %v597 = vpop.f32.mrf.mxu0
    %v598 = vadd.f32 %v184, %v597
    %599 = vdwg.mxu0
    %600 = vmatpush.msra.mxu0 0.0
    %601 = vmatpush.msra.mxu0 0.0
    %602 = vmatpush.msra.mxu0 0.0
    %603 = vmatpush.msra.mxu0 0.0
    %604 = vmatpush.msra.mxu0 0.0
    %605 = vmatpush.msra.mxu0 0.0
    %606 = vmatpush.msra.mxu0 0.0
    %607 = vmatpush.msra.mxu0 0.0
    %608 = vmatpush.msra.mxu0 0.0
    %609 = vmatpush.msra.mxu0 0.0
    %610 = vmatpush.msra.mxu0 0.0
    %611 = vmatpush.msra.mxu0 0.0
    %612 = vmatpush.msra.mxu0 %v152
    %613 = vmatpush.msra.mxu0 %v127
    %614 = vmatpush.msra.mxu0 %v102
    %615 = vmatpush.msra.mxu0 %v77
    %616 = vmatmul.f32.gmra.mxu0 %v218
    %v617 = vpop.f32.mrf.mxu0
    %v618 = vadd.f32 %v185, %v617
    %619 = vdwg.mxu0
    %620 = vmatpush.msra.mxu0 0.0
    %621 = vmatpush.msra.mxu0 0.0
    %622 = vmatpush.msra.mxu0 0.0
    %623 = vmatpush.msra.mxu0 0.0
    %624 = vmatpush.msra.mxu0 0.0
    %625 = vmatpush.msra.mxu0 0.0
    %626 = vmatpush.msra.mxu0 0.0
    %627 = vmatpush.msra.mxu0 0.0
    %628 = vmatpush.msra.mxu0 0.0
    %629 = vmatpush.msra.mxu0 0.0
    %630 = vmatpush.msra.mxu0 0.0
    %631 = vmatpush.msra.mxu0 0.0
    %632 = vmatpush.msra.mxu0 %v153
    %633 = vmatpush.msra.mxu0 %v128
    %634 = vmatpush.msra.mxu0 %v103
    %635 = vmatpush.msra.mxu0 %v78
    %636 = vmatmul.f32.gmra.mxu0 %v218
    %v637 = vpop.f32.mrf.mxu0
    %v638 = vadd.f32 %v186, %v637
    %639 = vdwg.mxu0
    %640 = vmatpush.msra.mxu0 0.0
    %641 = vmatpush.msra.mxu0 0.0
    %642 = vmatpush.msra.mxu0 0.0
    %643 = vmatpush.msra.mxu0 0.0
    %644 = vmatpush.msra.mxu0 0.0
    %645 = vmatpush.msra.mxu0 0.0
    %646 = vmatpush.msra.mxu0 0.0
    %647 = vmatpush.msra.mxu0 0.0
    %648 = vmatpush.msra.mxu0 0.0
    %649 = vmatpush.msra.mxu0 0.0
    %650 = vmatpush.msra.mxu0 0.0
    %651 = vmatpush.msra.mxu0 0.0
    %652 = vmatpush.msra.mxu0 %v154
    %653 = vmatpush.msra.mxu0 %v129
    %654 = vmatpush.msra.mxu0 %v104
    %655 = vmatpush.msra.mxu0 %v79
    %656 = vmatmul.f32.gmra.mxu0 %v218
    %v657 = vpop.f32.mrf.mxu0
    %v658 = vadd.f32 %v187, %v657
    %659 = vdwg.mxu0
    %660 = vmatpush.msra.mxu0 0.0
    %661 = vmatpush.msra.mxu0 0.0
    %662 = vmatpush.msra.mxu0 0.0
    %663 = vmatpush.msra.mxu0 0.0
    %664 = vmatpush.msra.mxu0 0.0
    %665 = vmatpush.msra.mxu0 0.0
    %666 = vmatpush.msra.mxu0 0.0
    %667 = vmatpush.msra.mxu0 0.0
    %668 = vmatpush.msra.mxu0 0.0
    %669 = vmatpush.msra.mxu0 0.0
    %670 = vmatpush.msra.mxu0 0.0
    %671 = vmatpush.msra.mxu0 0.0
    %672 = vmatpush.msra.mxu0 %v155
    %673 = vmatpush.msra.mxu0 %v130
    %674 = vmatpush.msra.mxu0 %v105
    %675 = vmatpush.msra.mxu0 %v80
    %676 = vmatmul.f32.gmra.mxu0 %v218
    %v677 = vpop.f32.mrf.mxu0
    %v678 = vadd.f32 %v188, %v677
    %679 = vdwg.mxu0
    %680 = vmatpush.msra.mxu0 0.0
    %681 = vmatpush.msra.mxu0 0.0
    %682 = vmatpush.msra.mxu0 0.0
    %683 = vmatpush.msra.mxu0 0.0
    %684 = vmatpush.msra.mxu0 0.0
    %685 = vmatpush.msra.mxu0 0.0
    %686 = vmatpush.msra.mxu0 0.0
    %687 = vmatpush.msra.mxu0 0.0
    %688 = vmatpush.msra.mxu0 0.0
    %689 = vmatpush.msra.mxu0 0.0
    %690 = vmatpush.msra.mxu0 0.0
    %691 = vmatpush.msra.mxu0 0.0
    %692 = vmatpush.msra.mxu0 %v156
    %693 = vmatpush.msra.mxu0 %v131
    %694 = vmatpush.msra.mxu0 %v106
    %695 = vmatpush.msra.mxu0 %v81
    %696 = vmatmul.f32.gmra.mxu0 %v218
    %v697 = vpop.f32.mrf.mxu0
    %v698 = vadd.f32 %v189, %v697
    %699 = vdwg.mxu0
    %700 = vmatpush.msra.mxu0 0.0
    %701 = vmatpush.msra.mxu0 0.0
    %702 = vmatpush.msra.mxu0 0.0
    %703 = vmatpush.msra.mxu0 0.0
    %704 = vmatpush.msra.mxu0 0.0
    %705 = vmatpush.msra.mxu0 0.0
    %706 = vmatpush.msra.mxu0 0.0
    %707 = vmatpush.msra.mxu0 0.0
    %708 = vmatpush.msra.mxu0 0.0
    %709 = vmatpush.msra.mxu0 0.0
    %710 = vmatpush.msra.mxu0 0.0
    %711 = vmatpush.msra.mxu0 0.0
    %712 = vmatpush.msra.mxu0 %v157
    %713 = vmatpush.msra.mxu0 %v132
    %714 = vmatpush.msra.mxu0 %v107
    %715 = vmatpush.msra.mxu0 %v82
    %716 = vmatmul.f32.gmra.mxu0 %v218
    %v717 = vpop.f32.mrf.mxu0
    %v718 = vadd.f32 %v190, %v717
    %719 = vdwg.mxu0
    %v720 = vmax.f32 %v238, 0.0
    %v721 = vmax.f32 %v258, 0.0
    %v722 = vmax.f32 %v278, 0.0
    %v723 = vmax.f32 %v298, 0.0
    %v724 = vmax.f32 %v318, 0.0
    %v725 = vmax.f32 %v338, 0.0
    %v726 = vmax.f32 %v358, 0.0
    %v727 = vmax.f32 %v378, 0.0
    %v728 = vmax.f32 %v398, 0.0
    %v729 = vmax.f32 %v418, 0.0
    %v730 = vmax.f32 %v438, 0.0
    %v731 = vmax.f32 %v458, 0.0
    %v732 = vmax.f32 %v478, 0.0
    %v733 = vmax.f32 %v498, 0.0
    %v734 = vmax.f32 %v518, 0.0
    %v735 = vmax.f32 %v538, 0.0
    %v736 = vmax.f32 %v558, 0.0
    %v737 = vmax.f32 %v578, 0.0
    %v738 = vmax.f32 %v598, 0.0
    %v739 = vmax.f32 %v618, 0.0
    %v740 = vmax.f32 %v638, 0.0
    %v741 = vmax.f32 %v658, 0.0
    %v742 = vmax.f32 %v678, 0.0
    %v743 = vmax.f32 %v698, 0.0
    %v744 = vmax.f32 %v718, 0.0
    %v769 = vrot.slane %v721, 6
    %v770 = vrot.slane %v722, 4
    %v771 = vrot.slane %v723, 2
    %v772 = vrot.slane %v725, 6
    %v773 = vrot.slane %v726, 4
    %v774 = vrot.slane %v727, 2
    %v775 = vrot.slane %v729, 6
    %v776 = vrot.slane %v730, 4
    %v777 = vrot.slane %v731, 2
    %v778 = vrot.slane %v733, 6
    %v779 = vrot.slane %v734, 4
    %v780 = vrot.slane %v735, 2
    %v781 = vrot.slane %v737, 6
    %v782 = vrot.slane %v738, 4
    %v783 = vrot.slane %v739, 2
    %v784 = vrot.slane %v741, 6
    %v785 = vrot.slane %v742, 4
    %v786 = vrot.slane %v743, 2
    %vm787 = vcmask 1041408
    %v788 = vsel %vm787, %v720, %v769
    %vm789 = vcmask 1045508
    %v790 = vsel %vm789, %v770, %v771
    %vm791 = vcmask 1043456
    %v792 = vsel %vm791, %v788, %v790
    %v793 = vsel %vm787, %v724, %v772
    %v794 = vsel %vm789, %v773, %v774
    %v795 = vsel %vm791, %v793, %v794
    %v796 = vsel %vm787, %v728, %v775
    %v797 = vsel %vm789, %v776, %v777
    %v798 = vsel %vm791, %v796, %v797
    %v799 = vsel %vm787, %v732, %v778
    %v800 = vsel %vm789, %v779, %v780
    %v801 = vsel %vm791, %v799, %v800
    %v802 = vsel %vm787, %v736, %v781
    %v803 = vsel %vm789, %v782, %v783
    %v804 = vsel %vm791, %v802, %v803
    %v805 = vsel %vm787, %v740, %v784
    %v806 = vsel %vm789, %v785, %v786
    %v807 = vsel %vm791, %v805, %v806
    %814 = vst [vmem:[%s3] sm:$0xff] %v792
    %815 = vst [vmem:[%s3 + $0x8] sm:$0xff] %v795
    %816 = vst [vmem:[%s3 + $0x10] sm:$0xff] %v798
    %817 = vst [vmem:[%s3 + $0x18] sm:$0xff] %v801
    %818 = vst [vmem:[%s3 + $0x20] sm:$0xff] %v804
    %819 = vst [vmem:[%s3 + $0x28] sm:$0xff] %v807
    %vm820 = vcmask 517120
    %821 = vst.msk [vmem:[%s3 + $0x30] sm:$0x3] %vm820, %v744
    // Predicated region
    $region26: #{generator_forward.4} parent=1 // pred_check
      _
    $region27: #{generator_forward.4} parent=1 // pred_check_branch
      %823 = sbr.rel (0) target = $region29
    $region28: #{generator_forward.4} parent=1 // pred_region
      _
    $region29: #{generator_forward.4} parent=1 // pred_fallthru
      _
    // Predicated region
    $region30: #{generator_forward.4} parent=1 // pred_check
      _
    $region31: #{generator_forward.4} parent=1 // pred_check_branch
      %825 = sbr.rel (0) target = $region33
    $region32: #{generator_forward.4} parent=1 // pred_region
      _
    $region33: #{generator_forward.4} parent=1 // pred_fallthru
      _
    %826 = vsyncpa [#allocation3], 1
    %827 = vsyncpa [#allocation5], 1

// kernel: generator_forward.6
$region0: #{generator_forward.6}
  #allocation0 [shape = 'u32[]', space=smem, size = 0x4, offset = 0x4, fixed_abs, tag = 'smem constant byte address 0x4 - core index']
  #allocation1 [shape = 'u32[72,128]{1,0:T(1,128)}', space=vmem, size = 0x9000, scoped, tag = 'internal scratch']
  %s0 = inlined_call_operand.vmem [shape: f32[578,128], index: 0, kind: input, shape index: {}]
  %s1 = inlined_call_operand.vmem [shape: f32[128,64], index: 1, kind: input, shape index: {}]
  %s2 = inlined_call_operand.vmem [shape: f32[1,64], index: 2, kind: input, shape index: {}]
  %s3 = inlined_call_operand.vmem [shape: f32[578,64], index: 3, kind: output, shape index: {}]
  %s4 = sld [smem:[#allocation0]]
  $region22: #{generator_forward.6} parent=0
    _
  %s6 = ssub.s32 1, %s4
  %s7 = scalar_select 0, %s6, %s4
  // Predicated region
  $region2: #{generator_forward.6} parent=0 // pred_check
    _
  $region3: #{generator_forward.6} parent=0 // pred_check_branch
    %9 = sbr.rel (0) target = $region5
  $region4: #{generator_forward.6} parent=0 // pred_region
    _
  $region5: #{generator_forward.6} parent=0 // pred_fallthru
    _
  // Predicated region
  $region6: #{generator_forward.6} parent=0 // pred_check
    _
  $region7: #{generator_forward.6} parent=0 // pred_check_branch
    %11 = sbr.rel (0) target = $region9
  $region8: #{generator_forward.6} parent=0 // pred_region
    _
  $region9: #{generator_forward.6} parent=0 // pred_fallthru
    _
  // Predicated region
  $region10: #{generator_forward.6} parent=0 // pred_check
    _
  $region11: #{generator_forward.6} parent=0 // pred_check_branch
    %13 = sbr.rel (0) target = $region13
  $region12: #{generator_forward.6} parent=0 // pred_region
    _
  $region13: #{generator_forward.6} parent=0 // pred_fallthru
    _
  %v14 = vld [vmem:[%s0] sm:$0xff]
  %v15 = vld [vmem:[%s0 + $0x8] sm:$0xff]
  %v16 = vld [vmem:[%s0 + $0x10] sm:$0xff]
  %v17 = vld [vmem:[%s0 + $0x18] sm:$0xff]
  %v18 = vld [vmem:[%s0 + $0x20] sm:$0xff]
  %v19 = vld [vmem:[%s0 + $0x28] sm:$0xff]
  %v20 = vld [vmem:[%s0 + $0x30] sm:$0xff]
  %v21 = vld [vmem:[%s0 + $0x38] sm:$0xff]
  %v22 = vld [vmem:[%s0 + $0x40] sm:$0xff]
  %v23 = vld [vmem:[%s0 + $0x48] sm:$0xff]
  %v24 = vld [vmem:[%s0 + $0x50] sm:$0xff]
  %v25 = vld [vmem:[%s0 + $0x58] sm:$0xff]
  %v26 = vld [vmem:[%s0 + $0x60] sm:$0xff]
  %v27 = vld [vmem:[%s0 + $0x68] sm:$0xff]
  %v28 = vld [vmem:[%s0 + $0x70] sm:$0xff]
  %v29 = vld [vmem:[%s0 + $0x78] sm:$0xff]
  %v30 = vld [vmem:[%s0 + $0x80] sm:$0xff]
  %v31 = vld [vmem:[%s0 + $0x88] sm:$0xff]
  %v32 = vld [vmem:[%s0 + $0x90] sm:$0xff]
  %v33 = vld [vmem:[%s0 + $0x98] sm:$0xff]
  %v34 = vld [vmem:[%s0 + $0xa0] sm:$0xff]
  %v35 = vld [vmem:[%s0 + $0xa8] sm:$0xff]
  %v36 = vld [vmem:[%s0 + $0xb0] sm:$0xff]
  %v37 = vld [vmem:[%s0 + $0xb8] sm:$0xff]
  %v38 = vld [vmem:[%s0 + $0xc0] sm:$0xff]
  %v39 = vld [vmem:[%s0 + $0xc8] sm:$0xff]
  %v40 = vld [vmem:[%s0 + $0xd0] sm:$0xff]
  %v41 = vld [vmem:[%s0 + $0xd8] sm:$0xff]
  %v42 = vld [vmem:[%s0 + $0xe0] sm:$0xff]
  %v43 = vld [vmem:[%s0 + $0xe8] sm:$0xff]
  %v44 = vld [vmem:[%s0 + $0xf0] sm:$0xff]
  %v45 = vld [vmem:[%s0 + $0xf8] sm:$0xff]
  %v46 = vld [vmem:[%s0 + $0x100] sm:$0xff]
  %v47 = vld [vmem:[%s0 + $0x108] sm:$0xff]
  %v48 = vld [vmem:[%s0 + $0x110] sm:$0xff]
  %v49 = vld [vmem:[%s0 + $0x118] sm:$0xff]
  %v50 = vld [vmem:[%s0 + $0x120] sm:$0xff]
  %v51 = vld [vmem:[%s0 + $0x128] sm:$0xff]
  %v52 = vld [vmem:[%s0 + $0x130] sm:$0xff]
  %v53 = vld [vmem:[%s0 + $0x138] sm:$0xff]
  %v54 = vld [vmem:[%s0 + $0x140] sm:$0xff]
  %v55 = vld [vmem:[%s0 + $0x148] sm:$0xff]
  %v56 = vld [vmem:[%s0 + $0x150] sm:$0xff]
  %v57 = vld [vmem:[%s0 + $0x158] sm:$0xff]
  %v58 = vld [vmem:[%s0 + $0x160] sm:$0xff]
  %v59 = vld [vmem:[%s0 + $0x168] sm:$0xff]
  %v60 = vld [vmem:[%s0 + $0x170] sm:$0xff]
  %v61 = vld [vmem:[%s0 + $0x178] sm:$0xff]
  %v62 = vld [vmem:[%s0 + $0x180] sm:$0xff]
  %v63 = vld [vmem:[%s0 + $0x188] sm:$0xff]
  %v64 = vld [vmem:[%s0 + $0x190] sm:$0xff]
  %v65 = vld [vmem:[%s0 + $0x198] sm:$0xff]
  %v66 = vld [vmem:[%s0 + $0x1a0] sm:$0xff]
  %v67 = vld [vmem:[%s0 + $0x1a8] sm:$0xff]
  %v68 = vld [vmem:[%s0 + $0x1b0] sm:$0xff]
  %v69 = vld [vmem:[%s0 + $0x1b8] sm:$0xff]
  %v70 = vld [vmem:[%s0 + $0x1c0] sm:$0xff]
  %v71 = vld [vmem:[%s0 + $0x1c8] sm:$0xff]
  %v72 = vld [vmem:[%s0 + $0x1d0] sm:$0xff]
  %v73 = vld [vmem:[%s0 + $0x1d8] sm:$0xff]
  %v74 = vld [vmem:[%s0 + $0x1e0] sm:$0xff]
  %v75 = vld [vmem:[%s0 + $0x1e8] sm:$0xff]
  %v76 = vld [vmem:[%s0 + $0x1f0] sm:$0xff]
  %v77 = vld [vmem:[%s0 + $0x1f8] sm:$0xff]
  %v78 = vld [vmem:[%s0 + $0x200] sm:$0xff]
  %v79 = vld [vmem:[%s0 + $0x208] sm:$0xff]
  %v80 = vld [vmem:[%s0 + $0x210] sm:$0xff]
  %v81 = vld [vmem:[%s0 + $0x218] sm:$0xff]
  %v82 = vld [vmem:[%s0 + $0x220] sm:$0xff]
  %v83 = vld [vmem:[%s0 + $0x228] sm:$0xff]
  %v84 = vld [vmem:[%s0 + $0x230] sm:$0xff]
  %v85 = vld [vmem:[%s0 + $0x238] sm:$0xff]
  %v86 = vld [vmem:[%s0 + $0x240] sm:$0x3]
  %v87 = vld [vmem:[%s1] sm:$0xff]
  %v88 = vld [vmem:[%s1 + $0x8] sm:$0xff]
  %v89 = vld [vmem:[%s1 + $0x10] sm:$0xff]
  %v90 = vld [vmem:[%s1 + $0x18] sm:$0xff]
  %v91 = vld [vmem:[%s1 + $0x20] sm:$0xff]
  %v92 = vld [vmem:[%s1 + $0x28] sm:$0xff]
  %v93 = vld [vmem:[%s1 + $0x30] sm:$0xff]
  %v94 = vld [vmem:[%s1 + $0x38] sm:$0xff]
  %v95 = vld [vmem:[%s1 + $0x40] sm:$0xff]
  %v96 = vld [vmem:[%s1 + $0x48] sm:$0xff]
  %v97 = vld [vmem:[%s1 + $0x50] sm:$0xff]
  %v98 = vld [vmem:[%s1 + $0x58] sm:$0xff]
  %v99 = vld [vmem:[%s1 + $0x60] sm:$0xff]
  %v100 = vld [vmem:[%s1 + $0x68] sm:$0xff]
  %v101 = vld [vmem:[%s1 + $0x70] sm:$0xff]
  %v102 = vld [vmem:[%s1 + $0x78] sm:$0xff]
  %v103 = vld [vmem:[%s2] sm:$0x1]
  %v105 = vperm.slane %v103, 0
  %107 = vmatpush.msra.mxu0 %v102
  %108 = vmatpush.msra.mxu0 %v101
  %109 = vmatpush.msra.mxu0 %v100
  %110 = vmatpush.msra.mxu0 %v99
  %111 = vmatpush.msra.mxu0 %v98
  %112 = vmatpush.msra.mxu0 %v97
  %113 = vmatpush.msra.mxu0 %v96
  %114 = vmatpush.msra.mxu0 %v95
  %115 = vmatpush.msra.mxu0 %v94
  %116 = vmatpush.msra.mxu0 %v93
  %117 = vmatpush.msra.mxu0 %v92
  %118 = vmatpush.msra.mxu0 %v91
  %119 = vmatpush.msra.mxu0 %v90
  %120 = vmatpush.msra.mxu0 %v89
  %121 = vmatpush.msra.mxu0 %v88
  %122 = vmatpush.msra.mxu0 %v87
  %123 = vmatmul.f32.gmra.mxu0 %v14
  %v124 = vpop.f32.mrf.mxu0
  %v125 = vadd.f32 %v105, %v124
  %126 = vmatmul.f32.gmra.mxu0 %v15
  %v127 = vpop.f32.mrf.mxu0
  %v128 = vadd.f32 %v105, %v127
  %129 = vmatmul.f32.gmra.mxu0 %v16
  %v130 = vpop.f32.mrf.mxu0
  %v131 = vadd.f32 %v105, %v130
  %132 = vmatmul.f32.gmra.mxu0 %v17
  %v133 = vpop.f32.mrf.mxu0
  %v134 = vadd.f32 %v105, %v133
  %135 = vmatmul.f32.gmra.mxu0 %v18
  %v136 = vpop.f32.mrf.mxu0
  %v137 = vadd.f32 %v105, %v136
  %138 = vmatmul.f32.gmra.mxu0 %v19
  %v139 = vpop.f32.mrf.mxu0
  %v140 = vadd.f32 %v105, %v139
  %141 = vmatmul.f32.gmra.mxu0 %v20
  %v142 = vpop.f32.mrf.mxu0
  %v143 = vadd.f32 %v105, %v142
  %144 = vmatmul.f32.gmra.mxu0 %v21
  %v145 = vpop.f32.mrf.mxu0
  %v146 = vadd.f32 %v105, %v145
  %147 = vmatmul.f32.gmra.mxu0 %v22
  %v148 = vpop.f32.mrf.mxu0
  %v149 = vadd.f32 %v105, %v148
  %150 = vmatmul.f32.gmra.mxu0 %v23
  %v151 = vpop.f32.mrf.mxu0
  %v152 = vadd.f32 %v105, %v151
  %153 = vmatmul.f32.gmra.mxu0 %v24
  %v154 = vpop.f32.mrf.mxu0
  %v155 = vadd.f32 %v105, %v154
  %156 = vmatmul.f32.gmra.mxu0 %v25
  %v157 = vpop.f32.mrf.mxu0
  %v158 = vadd.f32 %v105, %v157
  %159 = vmatmul.f32.gmra.mxu0 %v26
  %v160 = vpop.f32.mrf.mxu0
  %v161 = vadd.f32 %v105, %v160
  %162 = vmatmul.f32.gmra.mxu0 %v27
  %v163 = vpop.f32.mrf.mxu0
  %v164 = vadd.f32 %v105, %v163
  %165 = vmatmul.f32.gmra.mxu0 %v28
  %v166 = vpop.f32.mrf.mxu0
  %v167 = vadd.f32 %v105, %v166
  %168 = vmatmul.f32.gmra.mxu0 %v29
  %v169 = vpop.f32.mrf.mxu0
  %v170 = vadd.f32 %v105, %v169
  %171 = vmatmul.f32.gmra.mxu0 %v30
  %v172 = vpop.f32.mrf.mxu0
  %v173 = vadd.f32 %v105, %v172
  %174 = vmatmul.f32.gmra.mxu0 %v31
  %v175 = vpop.f32.mrf.mxu0
  %v176 = vadd.f32 %v105, %v175
  %177 = vmatmul.f32.gmra.mxu0 %v32
  %v178 = vpop.f32.mrf.mxu0
  %v179 = vadd.f32 %v105, %v178
  %180 = vmatmul.f32.gmra.mxu0 %v33
  %v181 = vpop.f32.mrf.mxu0
  %v182 = vadd.f32 %v105, %v181
  %183 = vmatmul.f32.gmra.mxu0 %v34
  %v184 = vpop.f32.mrf.mxu0
  %v185 = vadd.f32 %v105, %v184
  %186 = vmatmul.f32.gmra.mxu0 %v35
  %v187 = vpop.f32.mrf.mxu0
  %v188 = vadd.f32 %v105, %v187
  %189 = vmatmul.f32.gmra.mxu0 %v36
  %v190 = vpop.f32.mrf.mxu0
  %v191 = vadd.f32 %v105, %v190
  %192 = vmatmul.f32.gmra.mxu0 %v37
  %v193 = vpop.f32.mrf.mxu0
  %v194 = vadd.f32 %v105, %v193
  %195 = vmatmul.f32.gmra.mxu0 %v38
  %v196 = vpop.f32.mrf.mxu0
  %v197 = vadd.f32 %v105, %v196
  %198 = vmatmul.f32.gmra.mxu0 %v39
  %v199 = vpop.f32.mrf.mxu0
  %v200 = vadd.f32 %v105, %v199
  %201 = vmatmul.f32.gmra.mxu0 %v40
  %v202 = vpop.f32.mrf.mxu0
  %v203 = vadd.f32 %v105, %v202
  %204 = vmatmul.f32.gmra.mxu0 %v41
  %v205 = vpop.f32.mrf.mxu0
  %v206 = vadd.f32 %v105, %v205
  %207 = vmatmul.f32.gmra.mxu0 %v42
  %v208 = vpop.f32.mrf.mxu0
  %v209 = vadd.f32 %v105, %v208
  %210 = vmatmul.f32.gmra.mxu0 %v43
  %v211 = vpop.f32.mrf.mxu0
  %v212 = vadd.f32 %v105, %v211
  %213 = vmatmul.f32.gmra.mxu0 %v44
  %v214 = vpop.f32.mrf.mxu0
  %v215 = vadd.f32 %v105, %v214
  %216 = vmatmul.f32.gmra.mxu0 %v45
  %v217 = vpop.f32.mrf.mxu0
  %v218 = vadd.f32 %v105, %v217
  %219 = vmatmul.f32.gmra.mxu0 %v46
  %v220 = vpop.f32.mrf.mxu0
  %v221 = vadd.f32 %v105, %v220
  %222 = vmatmul.f32.gmra.mxu0 %v47
  %v223 = vpop.f32.mrf.mxu0
  %v224 = vadd.f32 %v105, %v223
  %225 = vmatmul.f32.gmra.mxu0 %v48
  %v226 = vpop.f32.mrf.mxu0
  %v227 = vadd.f32 %v105, %v226
  %228 = vmatmul.f32.gmra.mxu0 %v49
  %v229 = vpop.f32.mrf.mxu0
  %v230 = vadd.f32 %v105, %v229
  %231 = vmatmul.f32.gmra.mxu0 %v50
  %v232 = vpop.f32.mrf.mxu0
  %v233 = vadd.f32 %v105, %v232
  %234 = vmatmul.f32.gmra.mxu0 %v51
  %v235 = vpop.f32.mrf.mxu0
  %v236 = vadd.f32 %v105, %v235
  %237 = vmatmul.f32.gmra.mxu0 %v52
  %v238 = vpop.f32.mrf.mxu0
  %v239 = vadd.f32 %v105, %v238
  %240 = vmatmul.f32.gmra.mxu0 %v53
  %v241 = vpop.f32.mrf.mxu0
  %v242 = vadd.f32 %v105, %v241
  %243 = vmatmul.f32.gmra.mxu0 %v54
  %v244 = vpop.f32.mrf.mxu0
  %v245 = vadd.f32 %v105, %v244
  %246 = vmatmul.f32.gmra.mxu0 %v55
  %v247 = vpop.f32.mrf.mxu0
  %v248 = vadd.f32 %v105, %v247
  %249 = vmatmul.f32.gmra.mxu0 %v56
  %v250 = vpop.f32.mrf.mxu0
  %v251 = vadd.f32 %v105, %v250
  %252 = vmatmul.f32.gmra.mxu0 %v57
  %v253 = vpop.f32.mrf.mxu0
  %v254 = vadd.f32 %v105, %v253
  %255 = vmatmul.f32.gmra.mxu0 %v58
  %v256 = vpop.f32.mrf.mxu0
  %v257 = vadd.f32 %v105, %v256
  %258 = vmatmul.f32.gmra.mxu0 %v59
  %v259 = vpop.f32.mrf.mxu0
  %v260 = vadd.f32 %v105, %v259
  %261 = vmatmul.f32.gmra.mxu0 %v60
  %v262 = vpop.f32.mrf.mxu0
  %v263 = vadd.f32 %v105, %v262
  %264 = vmatmul.f32.gmra.mxu0 %v61
  %v265 = vpop.f32.mrf.mxu0
  %v266 = vadd.f32 %v105, %v265
  %267 = vmatmul.f32.gmra.mxu0 %v62
  %v268 = vpop.f32.mrf.mxu0
  %v269 = vadd.f32 %v105, %v268
  %270 = vmatmul.f32.gmra.mxu0 %v63
  %v271 = vpop.f32.mrf.mxu0
  %v272 = vadd.f32 %v105, %v271
  %273 = vmatmul.f32.gmra.mxu0 %v64
  %v274 = vpop.f32.mrf.mxu0
  %v275 = vadd.f32 %v105, %v274
  %276 = vmatmul.f32.gmra.mxu0 %v65
  %v277 = vpop.f32.mrf.mxu0
  %v278 = vadd.f32 %v105, %v277
  %279 = vmatmul.f32.gmra.mxu0 %v66
  %v280 = vpop.f32.mrf.mxu0
  %v281 = vadd.f32 %v105, %v280
  %282 = vmatmul.f32.gmra.mxu0 %v67
  %v283 = vpop.f32.mrf.mxu0
  %v284 = vadd.f32 %v105, %v283
  %285 = vmatmul.f32.gmra.mxu0 %v68
  %v286 = vpop.f32.mrf.mxu0
  %v287 = vadd.f32 %v105, %v286
  %288 = vmatmul.f32.gmra.mxu0 %v69
  %v289 = vpop.f32.mrf.mxu0
  %v290 = vadd.f32 %v105, %v289
  %291 = vmatmul.f32.gmra.mxu0 %v70
  %v292 = vpop.f32.mrf.mxu0
  %v293 = vadd.f32 %v105, %v292
  %294 = vmatmul.f32.gmra.mxu0 %v71
  %v295 = vpop.f32.mrf.mxu0
  %v296 = vadd.f32 %v105, %v295
  %297 = vmatmul.f32.gmra.mxu0 %v72
  %v298 = vpop.f32.mrf.mxu0
  %v299 = vadd.f32 %v105, %v298
  %300 = vmatmul.f32.gmra.mxu0 %v73
  %v301 = vpop.f32.mrf.mxu0
  %v302 = vadd.f32 %v105, %v301
  %303 = vmatmul.f32.gmra.mxu0 %v74
  %v304 = vpop.f32.mrf.mxu0
  %v305 = vadd.f32 %v105, %v304
  %306 = vmatmul.f32.gmra.mxu0 %v75
  %v307 = vpop.f32.mrf.mxu0
  %v308 = vadd.f32 %v105, %v307
  %309 = vmatmul.f32.gmra.mxu0 %v76
  %v310 = vpop.f32.mrf.mxu0
  %v311 = vadd.f32 %v105, %v310
  %312 = vmatmul.f32.gmra.mxu0 %v77
  %v313 = vpop.f32.mrf.mxu0
  %v314 = vadd.f32 %v105, %v313
  %315 = vmatmul.f32.gmra.mxu0 %v78
  %v316 = vpop.f32.mrf.mxu0
  %v317 = vadd.f32 %v105, %v316
  %318 = vmatmul.f32.gmra.mxu0 %v79
  %v319 = vpop.f32.mrf.mxu0
  %v320 = vadd.f32 %v105, %v319
  %321 = vmatmul.f32.gmra.mxu0 %v80
  %v322 = vpop.f32.mrf.mxu0
  %v323 = vadd.f32 %v105, %v322
  %324 = vmatmul.f32.gmra.mxu0 %v81
  %v325 = vpop.f32.mrf.mxu0
  %v326 = vadd.f32 %v105, %v325
  %327 = vmatmul.f32.gmra.mxu0 %v82
  %v328 = vpop.f32.mrf.mxu0
  %v329 = vadd.f32 %v105, %v328
  %330 = vmatmul.f32.gmra.mxu0 %v83
  %v331 = vpop.f32.mrf.mxu0
  %v332 = vadd.f32 %v105, %v331
  %333 = vmatmul.f32.gmra.mxu0 %v84
  %v334 = vpop.f32.mrf.mxu0
  %v335 = vadd.f32 %v105, %v334
  %336 = vmatmul.f32.gmra.mxu0 %v85
  %v337 = vpop.f32.mrf.mxu0
  %v338 = vadd.f32 %v105, %v337
  %339 = vmatmul.f32.gmra.mxu0 %v86
  %v340 = vpop.f32.mrf.mxu0
  %v341 = vadd.f32 %v105, %v340
  %342 = vdwg.mxu0
  %v343 = vmax.f32 %v125, 0.0
  %v344 = vmax.f32 %v128, 0.0
  %v345 = vmax.f32 %v131, 0.0
  %v346 = vmax.f32 %v134, 0.0
  %v347 = vmax.f32 %v137, 0.0
  %v348 = vmax.f32 %v140, 0.0
  %v349 = vmax.f32 %v143, 0.0
  %v350 = vmax.f32 %v146, 0.0
  %v351 = vmax.f32 %v149, 0.0
  %v352 = vmax.f32 %v152, 0.0
  %v353 = vmax.f32 %v155, 0.0
  %v354 = vmax.f32 %v158, 0.0
  %v355 = vmax.f32 %v161, 0.0
  %v356 = vmax.f32 %v164, 0.0
  %v357 = vmax.f32 %v167, 0.0
  %v358 = vmax.f32 %v170, 0.0
  %v359 = vmax.f32 %v173, 0.0
  %v360 = vmax.f32 %v176, 0.0
  %v361 = vmax.f32 %v179, 0.0
  %v362 = vmax.f32 %v182, 0.0
  %v363 = vmax.f32 %v185, 0.0
  %v364 = vmax.f32 %v188, 0.0
  %v365 = vmax.f32 %v191, 0.0
  %v366 = vmax.f32 %v194, 0.0
  %v367 = vmax.f32 %v197, 0.0
  %v368 = vmax.f32 %v200, 0.0
  %v369 = vmax.f32 %v203, 0.0
  %v370 = vmax.f32 %v206, 0.0
  %v371 = vmax.f32 %v209, 0.0
  %v372 = vmax.f32 %v212, 0.0
  %v373 = vmax.f32 %v215, 0.0
  %v374 = vmax.f32 %v218, 0.0
  %v375 = vmax.f32 %v221, 0.0
  %v376 = vmax.f32 %v224, 0.0
  %v377 = vmax.f32 %v227, 0.0
  %v378 = vmax.f32 %v230, 0.0
  %v379 = vmax.f32 %v233, 0.0
  %v380 = vmax.f32 %v236, 0.0
  %v381 = vmax.f32 %v239, 0.0
  %v382 = vmax.f32 %v242, 0.0
  %v383 = vmax.f32 %v245, 0.0
  %v384 = vmax.f32 %v248, 0.0
  %v385 = vmax.f32 %v251, 0.0
  %v386 = vmax.f32 %v254, 0.0
  %v387 = vmax.f32 %v257, 0.0
  %v388 = vmax.f32 %v260, 0.0
  %v389 = vmax.f32 %v263, 0.0
  %v390 = vmax.f32 %v266, 0.0
  %v391 = vmax.f32 %v269, 0.0
  %v392 = vmax.f32 %v272, 0.0
  %v393 = vmax.f32 %v275, 0.0
  %v394 = vmax.f32 %v278, 0.0
  %v395 = vmax.f32 %v281, 0.0
  %v396 = vmax.f32 %v284, 0.0
  %v397 = vmax.f32 %v287, 0.0
  %v398 = vmax.f32 %v290, 0.0
  %v399 = vmax.f32 %v293, 0.0
  %v400 = vmax.f32 %v296, 0.0
  %v401 = vmax.f32 %v299, 0.0
  %v402 = vmax.f32 %v302, 0.0
  %v403 = vmax.f32 %v305, 0.0
  %v404 = vmax.f32 %v308, 0.0
  %v405 = vmax.f32 %v311, 0.0
  %v406 = vmax.f32 %v314, 0.0
  %v407 = vmax.f32 %v317, 0.0
  %v408 = vmax.f32 %v320, 0.0
  %v409 = vmax.f32 %v323, 0.0
  %v410 = vmax.f32 %v326, 0.0
  %v411 = vmax.f32 %v329, 0.0
  %v412 = vmax.f32 %v332, 0.0
  %v413 = vmax.f32 %v335, 0.0
  %v414 = vmax.f32 %v338, 0.0
  %v415 = vmax.f32 %v341, 0.0
  %vm416 = vcmask 523264
  %417 = vst.msk [vmem:[%s3] sm:$0xff] %vm416, %v343
  %418 = vst.msk [vmem:[%s3 + $0x8] sm:$0xff] %vm416, %v344
  %419 = vst.msk [vmem:[%s3 + $0x10] sm:$0xff] %vm416, %v345
  %420 = vst.msk [vmem:[%s3 + $0x18] sm:$0xff] %vm416, %v346
  %421 = vst.msk [vmem:[%s3 + $0x20] sm:$0xff] %vm416, %v347
  %422 = vst.msk [vmem:[%s3 + $0x28] sm:$0xff] %vm416, %v348
  %423 = vst.msk [vmem:[%s3 + $0x30] sm:$0xff] %vm416, %v349
  %424 = vst.msk [vmem:[%s3 + $0x38] sm:$0xff] %vm416, %v350
  %425 = vst.msk [vmem:[%s3 + $0x40] sm:$0xff] %vm416, %v351
  %426 = vst.msk [vmem:[%s3 + $0x48] sm:$0xff] %vm416, %v352
  %427 = vst.msk [vmem:[%s3 + $0x50] sm:$0xff] %vm416, %v353
  %428 = vst.msk [vmem:[%s3 + $0x58] sm:$0xff] %vm416, %v354
  %429 = vst.msk [vmem:[%s3 + $0x60] sm:$0xff] %vm416, %v355
  %430 = vst.msk [vmem:[%s3 + $0x68] sm:$0xff] %vm416, %v356
  %431 = vst.msk [vmem:[%s3 + $0x70] sm:$0xff] %vm416, %v357
  %432 = vst.msk [vmem:[%s3 + $0x78] sm:$0xff] %vm416, %v358
  %433 = vst.msk [vmem:[%s3 + $0x80] sm:$0xff] %vm416, %v359
  %434 = vst.msk [vmem:[%s3 + $0x88] sm:$0xff] %vm416, %v360
  %435 = vst.msk [vmem:[%s3 + $0x90] sm:$0xff] %vm416, %v361
  %436 = vst.msk [vmem:[%s3 + $0x98] sm:$0xff] %vm416, %v362
  %437 = vst.msk [vmem:[%s3 + $0xa0] sm:$0xff] %vm416, %v363
  %438 = vst.msk [vmem:[%s3 + $0xa8] sm:$0xff] %vm416, %v364
  %439 = vst.msk [vmem:[%s3 + $0xb0] sm:$0xff] %vm416, %v365
  %440 = vst.msk [vmem:[%s3 + $0xb8] sm:$0xff] %vm416, %v366
  %441 = vst.msk [vmem:[%s3 + $0xc0] sm:$0xff] %vm416, %v367
  %442 = vst.msk [vmem:[%s3 + $0xc8] sm:$0xff] %vm416, %v368
  %443 = vst.msk [vmem:[%s3 + $0xd0] sm:$0xff] %vm416, %v369
  %444 = vst.msk [vmem:[%s3 + $0xd8] sm:$0xff] %vm416, %v370
  %445 = vst.msk [vmem:[%s3 + $0xe0] sm:$0xff] %vm416, %v371
  %446 = vst.msk [vmem:[%s3 + $0xe8] sm:$0xff] %vm416, %v372
  %447 = vst.msk [vmem:[%s3 + $0xf0] sm:$0xff] %vm416, %v373
  %448 = vst.msk [vmem:[%s3 + $0xf8] sm:$0xff] %vm416, %v374
  %449 = vst.msk [vmem:[%s3 + $0x100] sm:$0xff] %vm416, %v375
  %450 = vst.msk [vmem:[%s3 + $0x108] sm:$0xff] %vm416, %v376
  %451 = vst.msk [vmem:[%s3 + $0x110] sm:$0xff] %vm416, %v377
  %452 = vst.msk [vmem:[%s3 + $0x118] sm:$0xff] %vm416, %v378
  %453 = vst.msk [vmem:[%s3 + $0x120] sm:$0xff] %vm416, %v379
  %454 = vst.msk [vmem:[%s3 + $0x128] sm:$0xff] %vm416, %v380
  %455 = vst.msk [vmem:[%s3 + $0x130] sm:$0xff] %vm416, %v381
  %456 = vst.msk [vmem:[%s3 + $0x138] sm:$0xff] %vm416, %v382
  %457 = vst.msk [vmem:[%s3 + $0x140] sm:$0xff] %vm416, %v383
  %458 = vst.msk [vmem:[%s3 + $0x148] sm:$0xff] %vm416, %v384
  %459 = vst.msk [vmem:[%s3 + $0x150] sm:$0xff] %vm416, %v385
  %460 = vst.msk [vmem:[%s3 + $0x158] sm:$0xff] %vm416, %v386
  %461 = vst.msk [vmem:[%s3 + $0x160] sm:$0xff] %vm416, %v387
  %462 = vst.msk [vmem:[%s3 + $0x168] sm:$0xff] %vm416, %v388
  %463 = vst.msk [vmem:[%s3 + $0x170] sm:$0xff] %vm416, %v389
  %464 = vst.msk [vmem:[%s3 + $0x178] sm:$0xff] %vm416, %v390
  %465 = vst.msk [vmem:[%s3 + $0x180] sm:$0xff] %vm416, %v391
  %466 = vst.msk [vmem:[%s3 + $0x188] sm:$0xff] %vm416, %v392
  %467 = vst.msk [vmem:[%s3 + $0x190] sm:$0xff] %vm416, %v393
  %468 = vst.msk [vmem:[%s3 + $0x198] sm:$0xff] %vm416, %v394
  %469 = vst.msk [vmem:[%s3 + $0x1a0] sm:$0xff] %vm416, %v395
  %470 = vst.msk [vmem:[%s3 + $0x1a8] sm:$0xff] %vm416, %v396
  %471 = vst.msk [vmem:[%s3 + $0x1b0] sm:$0xff] %vm416, %v397
  %472 = vst.msk [vmem:[%s3 + $0x1b8] sm:$0xff] %vm416, %v398
  %473 = vst.msk [vmem:[%s3 + $0x1c0] sm:$0xff] %vm416, %v399
  %474 = vst.msk [vmem:[%s3 + $0x1c8] sm:$0xff] %vm416, %v400
  %475 = vst.msk [vmem:[%s3 + $0x1d0] sm:$0xff] %vm416, %v401
  %476 = vst.msk [vmem:[%s3 + $0x1d8] sm:$0xff] %vm416, %v402
  %477 = vst.msk [vmem:[%s3 + $0x1e0] sm:$0xff] %vm416, %v403
  %478 = vst.msk [vmem:[%s3 + $0x1e8] sm:$0xff] %vm416, %v404
  %479 = vst.msk [vmem:[%s3 + $0x1f0] sm:$0xff] %vm416, %v405
  %480 = vst.msk [vmem:[%s3 + $0x1f8] sm:$0xff] %vm416, %v406
  %481 = vst.msk [vmem:[%s3 + $0x200] sm:$0xff] %vm416, %v407
  %482 = vst.msk [vmem:[%s3 + $0x208] sm:$0xff] %vm416, %v408
  %483 = vst.msk [vmem:[%s3 + $0x210] sm:$0xff] %vm416, %v409
  %484 = vst.msk [vmem:[%s3 + $0x218] sm:$0xff] %vm416, %v410
  %485 = vst.msk [vmem:[%s3 + $0x220] sm:$0xff] %vm416, %v411
  %486 = vst.msk [vmem:[%s3 + $0x228] sm:$0xff] %vm416, %v412
  %487 = vst.msk [vmem:[%s3 + $0x230] sm:$0xff] %vm416, %v413
  %488 = vst.msk [vmem:[%s3 + $0x238] sm:$0xff] %vm416, %v414
  %vm489 = vcmask 517120
  %490 = vst.msk [vmem:[%s3 + $0x240] sm:$0x3] %vm489, %v415
  // Predicated region
  $region14: #{generator_forward.6} parent=0 // pred_check
    _
  $region15: #{generator_forward.6} parent=0 // pred_check_branch
    %492 = sbr.rel (0) target = $region17
  $region16: #{generator_forward.6} parent=0 // pred_region
    _
  $region17: #{generator_forward.6} parent=0 // pred_fallthru
    _
  // Predicated region
  $region18: #{generator_forward.6} parent=0 // pred_check
    _
  $region19: #{generator_forward.6} parent=0 // pred_check_branch
    %494 = sbr.rel (0) target = $region21
  $region20: #{generator_forward.6} parent=0 // pred_region
    _
  $region21: #{generator_forward.6} parent=0 // pred_fallthru
    _

// kernel: generator_forward.7
$region0: #{generator_forward.7}
  #allocation0 [shape = 'u32[]', space=smem, size = 0x4, offset = 0x4, fixed_abs, tag = 'smem constant byte address 0x4 - core index']
  #allocation1 [shape = 'u32[72,128]{1,0:T(1,128)}', space=vmem, size = 0x9000, scoped, tag = 'internal scratch']
  #allocation2 [shape = 'f32[1,1]{1,0:T(1,128)S(1)}', space=vmem, size = 0x200, scoped, tag = 'scoped memory for generator_forward.7']
  %s0 = inlined_call_operand.vmem [shape: f32[1,784], index: 0, kind: input, shape index: {}]
  %s1 = inlined_call_operand.vmem [shape: f32[784,1568], index: 1, kind: input, shape index: {}]
  %s2 = inlined_call_operand.<no memory space> [shape: f32[1,1], index: 2, kind: input, shape index: {}]
  %s3 = inlined_call_operand.vmem [shape: f32[1,1568], index: 3, kind: output, shape index: {}]
  %s4 = sld [smem:[#allocation0]]
  $region22: #{generator_forward.7} parent=0
    _
  %s6 = ssub.s32 1, %s4
  %s7 = scalar_select 0, %s6, %s4
  %v8 = vstv %s2
  %9 = vst [vmem:[#allocation2] sm:$0x1] %v8
  // Predicated region
  $region2: #{generator_forward.7} parent=0 // pred_check
    _
  $region3: #{generator_forward.7} parent=0 // pred_check_branch
    %11 = sbr.rel (0) target = $region5
  $region4: #{generator_forward.7} parent=0 // pred_region
    _
  $region5: #{generator_forward.7} parent=0 // pred_fallthru
    _
  // Predicated region
  $region6: #{generator_forward.7} parent=0 // pred_check
    _
  $region7: #{generator_forward.7} parent=0 // pred_check_branch
    %13 = sbr.rel (0) target = $region9
  $region8: #{generator_forward.7} parent=0 // pred_region
    _
  $region9: #{generator_forward.7} parent=0 // pred_fallthru
    _
  // Predicated region
  $region10: #{generator_forward.7} parent=0 // pred_check
    _
  $region11: #{generator_forward.7} parent=0 // pred_check_branch
    %15 = sbr.rel (0) target = $region13
  $region12: #{generator_forward.7} parent=0 // pred_region
    _
  $region13: #{generator_forward.7} parent=0 // pred_fallthru
    _
  %v16 = vld [vmem:[%s0] sm:$0x7f]
  %v17 = vld [vmem:[%s1] sm:$0xff]
  %v18 = vld [vmem:[%s1 + $0x8] sm:$0xff]
  %v19 = vld [vmem:[%s1 + $0x10] sm:$0xff]
  %v20 = vld [vmem:[%s1 + $0x18] sm:$0xff]
  %v21 = vld [vmem:[%s1 + $0x20] sm:$0xff]
  %v22 = vld [vmem:[%s1 + $0x28] sm:$0xff]
  %v23 = vld [vmem:[%s1 + $0x30] sm:$0xff]
  %v24 = vld [vmem:[%s1 + $0x38] sm:$0xff]
  %v25 = vld [vmem:[%s1 + $0x40] sm:$0xff]
  %v26 = vld [vmem:[%s1 + $0x48] sm:$0xff]
  %v27 = vld [vmem:[%s1 + $0x50] sm:$0xff]
  %v28 = vld [vmem:[%s1 + $0x58] sm:$0xff]
  %v29 = vld [vmem:[%s1 + $0x60] sm:$0xff]
  %v30 = vld [vmem:[%s1 + $0x68] sm:$0xff]
  %v31 = vld [vmem:[%s1 + $0x70] sm:$0xff]
  %v32 = vld [vmem:[%s1 + $0x78] sm:$0xff]
  %v33 = vld [vmem:[%s1 + $0x80] sm:$0xff]
  %v34 = vld [vmem:[%s1 + $0x88] sm:$0xff]
  %v35 = vld [vmem:[%s1 + $0x90] sm:$0xff]
  %v36 = vld [vmem:[%s1 + $0x98] sm:$0xff]
  %v37 = vld [vmem:[%s1 + $0xa0] sm:$0xff]
  %v38 = vld [vmem:[%s1 + $0xa8] sm:$0xff]
  %v39 = vld [vmem:[%s1 + $0xb0] sm:$0xff]
  %v40 = vld [vmem:[%s1 + $0xb8] sm:$0xff]
  %v41 = vld [vmem:[%s1 + $0xc0] sm:$0xff]
  %v42 = vld [vmem:[%s1 + $0xc8] sm:$0xff]
  %v43 = vld [vmem:[%s1 + $0xd0] sm:$0xff]
  %v44 = vld [vmem:[%s1 + $0xd8] sm:$0xff]
  %v45 = vld [vmem:[%s1 + $0xe0] sm:$0xff]
  %v46 = vld [vmem:[%s1 + $0xe8] sm:$0xff]
  %v47 = vld [vmem:[%s1 + $0xf0] sm:$0xff]
  %v48 = vld [vmem:[%s1 + $0xf8] sm:$0xff]
  %v49 = vld [vmem:[%s1 + $0x100] sm:$0xff]
  %v50 = vld [vmem:[%s1 + $0x108] sm:$0xff]
  %v51 = vld [vmem:[%s1 + $0x110] sm:$0xff]
  %v52 = vld [vmem:[%s1 + $0x118] sm:$0xff]
  %v53 = vld [vmem:[%s1 + $0x120] sm:$0xff]
  %v54 = vld [vmem:[%s1 + $0x128] sm:$0xff]
  %v55 = vld [vmem:[%s1 + $0x130] sm:$0xff]
  %v56 = vld [vmem:[%s1 + $0x138] sm:$0xff]
  %v57 = vld [vmem:[%s1 + $0x140] sm:$0xff]
  %v58 = vld [vmem:[%s1 + $0x148] sm:$0xff]
  %v59 = vld [vmem:[%s1 + $0x150] sm:$0xff]
  %v60 = vld [vmem:[%s1 + $0x158] sm:$0xff]
  %v61 = vld [vmem:[%s1 + $0x160] sm:$0xff]
  %v62 = vld [vmem:[%s1 + $0x168] sm:$0xff]
  %v63 = vld [vmem:[%s1 + $0x170] sm:$0xff]
  %v64 = vld [vmem:[%s1 + $0x178] sm:$0xff]
  %v65 = vld [vmem:[%s1 + $0x180] sm:$0xff]
  %v66 = vld [vmem:[%s1 + $0x188] sm:$0xff]
  %v67 = vld [vmem:[%s1 + $0x190] sm:$0xff]
  %v68 = vld [vmem:[%s1 + $0x198] sm:$0xff]
  %v69 = vld [vmem:[%s1 + $0x1a0] sm:$0xff]
  %v70 = vld [vmem:[%s1 + $0x1a8] sm:$0xff]
  %v71 = vld [vmem:[%s1 + $0x1b0] sm:$0xff]
  %v72 = vld [vmem:[%s1 + $0x1b8] sm:$0xff]
  %v73 = vld [vmem:[%s1 + $0x1c0] sm:$0xff]
  %v74 = vld [vmem:[%s1 + $0x1c8] sm:$0xff]
  %v75 = vld [vmem:[%s1 + $0x1d0] sm:$0xff]
  %v76 = vld [vmem:[%s1 + $0x1d8] sm:$0xff]
  %v77 = vld [vmem:[%s1 + $0x1e0] sm:$0xff]
  %v78 = vld [vmem:[%s1 + $0x1e8] sm:$0xff]
  %v79 = vld [vmem:[%s1 + $0x1f0] sm:$0xff]
  %v80 = vld [vmem:[%s1 + $0x1f8] sm:$0xff]
  %v81 = vld [vmem:[%s1 + $0x200] sm:$0xff]
  %v82 = vld [vmem:[%s1 + $0x208] sm:$0xff]
  %v83 = vld [vmem:[%s1 + $0x210] sm:$0xff]
  %v84 = vld [vmem:[%s1 + $0x218] sm:$0xff]
  %v85 = vld [vmem:[%s1 + $0x220] sm:$0xff]
  %v86 = vld [vmem:[%s1 + $0x228] sm:$0xff]
  %v87 = vld [vmem:[%s1 + $0x230] sm:$0xff]
  %v88 = vld [vmem:[%s1 + $0x238] sm:$0xff]
  %v89 = vld [vmem:[%s1 + $0x240] sm:$0xff]
  %v90 = vld [vmem:[%s1 + $0x248] sm:$0xff]
  %v91 = vld [vmem:[%s1 + $0x250] sm:$0xff]
  %v92 = vld [vmem:[%s1 + $0x258] sm:$0xff]
  %v93 = vld [vmem:[%s1 + $0x260] sm:$0xff]
  %v94 = vld [vmem:[%s1 + $0x268] sm:$0xff]
  %v95 = vld [vmem:[%s1 + $0x270] sm:$0xff]
  %v96 = vld [vmem:[%s1 + $0x278] sm:$0xff]
  %v97 = vld [vmem:[%s1 + $0x280] sm:$0xff]
  %v98 = vld [vmem:[%s1 + $0x288] sm:$0xff]
  %v99 = vld [vmem:[%s1 + $0x290] sm:$0xff]
  %v100 = vld [vmem:[%s1 + $0x298] sm:$0xff]
  %v101 = vld [vmem:[%s1 + $0x2a0] sm:$0xff]
  %v102 = vld [vmem:[%s1 + $0x2a8] sm:$0xff]
  %v103 = vld [vmem:[%s1 + $0x2b0] sm:$0xff]
  %v104 = vld [vmem:[%s1 + $0x2b8] sm:$0xff]
  %v105 = vld [vmem:[%s1 + $0x2c0] sm:$0xff]
  %v106 = vld [vmem:[%s1 + $0x2c8] sm:$0xff]
  %v107 = vld [vmem:[%s1 + $0x2d0] sm:$0xff]
  %v108 = vld [vmem:[%s1 + $0x2d8] sm:$0xff]
  %v109 = vld [vmem:[%s1 + $0x2e0] sm:$0xff]
  %v110 = vld [vmem:[%s1 + $0x2e8] sm:$0xff]
  %v111 = vld [vmem:[%s1 + $0x2f0] sm:$0xff]
  %v112 = vld [vmem:[%s1 + $0x2f8] sm:$0xff]
  %v113 = vld [vmem:[%s1 + $0x300] sm:$0xff]
  %v114 = vld [vmem:[%s1 + $0x308] sm:$0xff]
  %v115 = vld [vmem:[%s1 + $0x310] sm:$0xff]
  %v116 = vld [vmem:[%s1 + $0x318] sm:$0xff]
  %v117 = vld [vmem:[%s1 + $0x320] sm:$0xff]
  %v118 = vld [vmem:[%s1 + $0x328] sm:$0xff]
  %v119 = vld [vmem:[%s1 + $0x330] sm:$0xff]
  %v120 = vld [vmem:[%s1 + $0x338] sm:$0xff]
  %v121 = vld [vmem:[%s1 + $0x340] sm:$0xff]
  %v122 = vld [vmem:[%s1 + $0x348] sm:$0xff]
  %v123 = vld [vmem:[%s1 + $0x350] sm:$0xff]
  %v124 = vld [vmem:[%s1 + $0x358] sm:$0xff]
  %v125 = vld [vmem:[%s1 + $0x360] sm:$0xff]
  %v126 = vld [vmem:[%s1 + $0x368] sm:$0xff]
  %v127 = vld [vmem:[%s1 + $0x370] sm:$0xff]
  %v128 = vld [vmem:[%s1 + $0x378] sm:$0xff]
  %v129 = vld [vmem:[%s1 + $0x380] sm:$0xff]
  %v130 = vld [vmem:[%s1 + $0x388] sm:$0xff]
  %v131 = vld [vmem:[%s1 + $0x390] sm:$0xff]
  %v132 = vld [vmem:[%s1 + $0x398] sm:$0xff]
  %v133 = vld [vmem:[%s1 + $0x3a0] sm:$0xff]
  %v134 = vld [vmem:[%s1 + $0x3a8] sm:$0xff]
  %v135 = vld [vmem:[%s1 + $0x3b0] sm:$0xff]
  %v136 = vld [vmem:[%s1 + $0x3b8] sm:$0xff]
  %v137 = vld [vmem:[%s1 + $0x3c0] sm:$0xff]
  %v138 = vld [vmem:[%s1 + $0x3c8] sm:$0xff]
  %v139 = vld [vmem:[%s1 + $0x3d0] sm:$0xff]
  %v140 = vld [vmem:[%s1 + $0x3d8] sm:$0xff]
  %v141 = vld [vmem:[%s1 + $0x3e0] sm:$0xff]
  %v142 = vld [vmem:[%s1 + $0x3e8] sm:$0xff]
  %v143 = vld [vmem:[%s1 + $0x3f0] sm:$0xff]
  %v144 = vld [vmem:[%s1 + $0x3f8] sm:$0xff]
  %v145 = vld [vmem:[%s1 + $0x400] sm:$0xff]
  %v146 = vld [vmem:[%s1 + $0x408] sm:$0xff]
  %v147 = vld [vmem:[%s1 + $0x410] sm:$0xff]
  %v148 = vld [vmem:[%s1 + $0x418] sm:$0xff]
  %v149 = vld [vmem:[%s1 + $0x420] sm:$0xff]
  %v150 = vld [vmem:[%s1 + $0x428] sm:$0xff]
  %v151 = vld [vmem:[%s1 + $0x430] sm:$0xff]
  %v152 = vld [vmem:[%s1 + $0x438] sm:$0xff]
  %v153 = vld [vmem:[%s1 + $0x440] sm:$0xff]
  %v154 = vld [vmem:[%s1 + $0x448] sm:$0xff]
  %v155 = vld [vmem:[%s1 + $0x450] sm:$0xff]
  %v156 = vld [vmem:[%s1 + $0x458] sm:$0xff]
  %v157 = vld [vmem:[%s1 + $0x460] sm:$0xff]
  %v158 = vld [vmem:[%s1 + $0x468] sm:$0xff]
  %v159 = vld [vmem:[%s1 + $0x470] sm:$0xff]
  %v160 = vld [vmem:[%s1 + $0x478] sm:$0xff]
  %v161 = vld [vmem:[%s1 + $0x480] sm:$0xff]
  %v162 = vld [vmem:[%s1 + $0x488] sm:$0xff]
  %v163 = vld [vmem:[%s1 + $0x490] sm:$0xff]
  %v164 = vld [vmem:[%s1 + $0x498] sm:$0xff]
  %v165 = vld [vmem:[%s1 + $0x4a0] sm:$0xff]
  %v166 = vld [vmem:[%s1 + $0x4a8] sm:$0xff]
  %v167 = vld [vmem:[%s1 + $0x4b0] sm:$0xff]
  %v168 = vld [vmem:[%s1 + $0x4b8] sm:$0xff]
  %v169 = vld [vmem:[%s1 + $0x4c0] sm:$0xff]
  %v170 = vld [vmem:[%s1 + $0x4c8] sm:$0xff]
  %v171 = vld [vmem:[%s1 + $0x4d0] sm:$0xff]
  %v172 = vld [vmem:[%s1 + $0x4d8] sm:$0xff]
  %v173 = vld [vmem:[%s1 + $0x4e0] sm:$0xff]
  %v174 = vld [vmem:[%s1 + $0x4e8] sm:$0xff]
  %v175 = vld [vmem:[%s1 + $0x4f0] sm:$0xff]
  %v176 = vld [vmem:[%s1 + $0x4f8] sm:$0xff]
  %v177 = vld [vmem:[%s1 + $0x500] sm:$0xff]
  %v178 = vld [vmem:[%s1 + $0x508] sm:$0xff]
  %v179 = vld [vmem:[%s1 + $0x510] sm:$0xff]
  %v180 = vld [vmem:[%s1 + $0x518] sm:$0xff]
  %v181 = vld [vmem:[%s1 + $0x520] sm:$0xff]
  %v182 = vld [vmem:[%s1 + $0x528] sm:$0xff]
  %v183 = vld [vmem:[%s1 + $0x530] sm:$0xff]
  %v184 = vld [vmem:[%s1 + $0x538] sm:$0xff]
  %v185 = vld [vmem:[%s1 + $0x540] sm:$0xff]
  %v186 = vld [vmem:[%s1 + $0x548] sm:$0xff]
  %v187 = vld [vmem:[%s1 + $0x550] sm:$0xff]
  %v188 = vld [vmem:[%s1 + $0x558] sm:$0xff]
  %v189 = vld [vmem:[%s1 + $0x560] sm:$0xff]
  %v190 = vld [vmem:[%s1 + $0x568] sm:$0xff]
  %v191 = vld [vmem:[%s1 + $0x570] sm:$0xff]
  %v192 = vld [vmem:[%s1 + $0x578] sm:$0xff]
  %v193 = vld [vmem:[%s1 + $0x580] sm:$0xff]
  %v194 = vld [vmem:[%s1 + $0x588] sm:$0xff]
  %v195 = vld [vmem:[%s1 + $0x590] sm:$0xff]
  %v196 = vld [vmem:[%s1 + $0x598] sm:$0xff]
  %v197 = vld [vmem:[%s1 + $0x5a0] sm:$0xff]
  %v198 = vld [vmem:[%s1 + $0x5a8] sm:$0xff]
  %v199 = vld [vmem:[%s1 + $0x5b0] sm:$0xff]
  %v200 = vld [vmem:[%s1 + $0x5b8] sm:$0xff]
  %v201 = vld [vmem:[%s1 + $0x5c0] sm:$0xff]
  %v202 = vld [vmem:[%s1 + $0x5c8] sm:$0xff]
  %v203 = vld [vmem:[%s1 + $0x5d0] sm:$0xff]
  %v204 = vld [vmem:[%s1 + $0x5d8] sm:$0xff]
  %v205 = vld [vmem:[%s1 + $0x5e0] sm:$0xff]
  %v206 = vld [vmem:[%s1 + $0x5e8] sm:$0xff]
  %v207 = vld [vmem:[%s1 + $0x5f0] sm:$0xff]
  %v208 = vld [vmem:[%s1 + $0x5f8] sm:$0xff]
  %v209 = vld [vmem:[%s1 + $0x600] sm:$0xff]
  %v210 = vld [vmem:[%s1 + $0x608] sm:$0xff]
  %v211 = vld [vmem:[%s1 + $0x610] sm:$0xff]
  %v212 = vld [vmem:[%s1 + $0x618] sm:$0xff]
  %v213 = vld [vmem:[%s1 + $0x620] sm:$0xff]
  %v214 = vld [vmem:[%s1 + $0x628] sm:$0xff]
  %v215 = vld [vmem:[%s1 + $0x630] sm:$0xff]
  %v216 = vld [vmem:[%s1 + $0x638] sm:$0xff]
  %v217 = vld [vmem:[%s1 + $0x640] sm:$0xff]
  %v218 = vld [vmem:[%s1 + $0x648] sm:$0xff]
  %v219 = vld [vmem:[%s1 + $0x650] sm:$0xff]
  %v220 = vld [vmem:[%s1 + $0x658] sm:$0xff]
  %v221 = vld [vmem:[%s1 + $0x660] sm:$0xff]
  %v222 = vld [vmem:[%s1 + $0x668] sm:$0xff]
  %v223 = vld [vmem:[%s1 + $0x670] sm:$0xff]
  %v224 = vld [vmem:[%s1 + $0x678] sm:$0xff]
  %v225 = vld [vmem:[%s1 + $0x680] sm:$0xff]
  %v226 = vld [vmem:[%s1 + $0x688] sm:$0xff]
  %v227 = vld [vmem:[%s1 + $0x690] sm:$0xff]
  %v228 = vld [vmem:[%s1 + $0x698] sm:$0xff]
  %v229 = vld [vmem:[%s1 + $0x6a0] sm:$0xff]
  %v230 = vld [vmem:[%s1 + $0x6a8] sm:$0xff]
  %v231 = vld [vmem:[%s1 + $0x6b0] sm:$0xff]
  %v232 = vld [vmem:[%s1 + $0x6b8] sm:$0xff]
  %v233 = vld [vmem:[%s1 + $0x6c0] sm:$0xff]
  %v234 = vld [vmem:[%s1 + $0x6c8] sm:$0xff]
  %v235 = vld [vmem:[%s1 + $0x6d0] sm:$0xff]
  %v236 = vld [vmem:[%s1 + $0x6d8] sm:$0xff]
  %v237 = vld [vmem:[%s1 + $0x6e0] sm:$0xff]
  %v238 = vld [vmem:[%s1 + $0x6e8] sm:$0xff]
  %v239 = vld [vmem:[%s1 + $0x6f0] sm:$0xff]
  %v240 = vld [vmem:[%s1 + $0x6f8] sm:$0xff]
  %v241 = vld [vmem:[%s1 + $0x700] sm:$0xff]
  %v242 = vld [vmem:[%s1 + $0x708] sm:$0xff]
  %v243 = vld [vmem:[%s1 + $0x710] sm:$0xff]
  %v244 = vld [vmem:[%s1 + $0x718] sm:$0xff]
  %v245 = vld [vmem:[%s1 + $0x720] sm:$0xff]
  %v246 = vld [vmem:[%s1 + $0x728] sm:$0xff]
  %v247 = vld [vmem:[%s1 + $0x730] sm:$0xff]
  %v248 = vld [vmem:[%s1 + $0x738] sm:$0xff]
  %v249 = vld [vmem:[%s1 + $0x740] sm:$0xff]
  %v250 = vld [vmem:[%s1 + $0x748] sm:$0xff]
  %v251 = vld [vmem:[%s1 + $0x750] sm:$0xff]
  %v252 = vld [vmem:[%s1 + $0x758] sm:$0xff]
  %v253 = vld [vmem:[%s1 + $0x760] sm:$0xff]
  %v254 = vld [vmem:[%s1 + $0x768] sm:$0xff]
  %v255 = vld [vmem:[%s1 + $0x770] sm:$0xff]
  %v256 = vld [vmem:[%s1 + $0x778] sm:$0xff]
  %v257 = vld [vmem:[%s1 + $0x780] sm:$0xff]
  %v258 = vld [vmem:[%s1 + $0x788] sm:$0xff]
  %v259 = vld [vmem:[%s1 + $0x790] sm:$0xff]
  %v260 = vld [vmem:[%s1 + $0x798] sm:$0xff]
  %v261 = vld [vmem:[%s1 + $0x7a0] sm:$0xff]
  %v262 = vld [vmem:[%s1 + $0x7a8] sm:$0xff]
  %v263 = vld [vmem:[%s1 + $0x7b0] sm:$0xff]
  %v264 = vld [vmem:[%s1 + $0x7b8] sm:$0xff]
  %v265 = vld [vmem:[%s1 + $0x7c0] sm:$0xff]
  %v266 = vld [vmem:[%s1 + $0x7c8] sm:$0xff]
  %v267 = vld [vmem:[%s1 + $0x7d0] sm:$0xff]
  %v268 = vld [vmem:[%s1 + $0x7d8] sm:$0xff]
  %v269 = vld [vmem:[%s1 + $0x7e0] sm:$0xff]
  %v270 = vld [vmem:[%s1 + $0x7e8] sm:$0xff]
  %v271 = vld [vmem:[%s1 + $0x7f0] sm:$0xff]
  %v272 = vld [vmem:[%s1 + $0x7f8] sm:$0xff]
  %v273 = vld [vmem:[%s1 + $0x800] sm:$0xff]
  %v274 = vld [vmem:[%s1 + $0x808] sm:$0xff]
  %v275 = vld [vmem:[%s1 + $0x810] sm:$0xff]
  %v276 = vld [vmem:[%s1 + $0x818] sm:$0xff]
  %v277 = vld [vmem:[%s1 + $0x820] sm:$0xff]
  %v278 = vld [vmem:[%s1 + $0x828] sm:$0xff]
  %v279 = vld [vmem:[%s1 + $0x830] sm:$0xff]
  %v280 = vld [vmem:[%s1 + $0x838] sm:$0xff]
  %v281 = vld [vmem:[%s1 + $0x840] sm:$0xff]
  %v282 = vld [vmem:[%s1 + $0x848] sm:$0xff]
  %v283 = vld [vmem:[%s1 + $0x850] sm:$0xff]
  %v284 = vld [vmem:[%s1 + $0x858] sm:$0xff]
  %v285 = vld [vmem:[%s1 + $0x860] sm:$0xff]
  %v286 = vld [vmem:[%s1 + $0x868] sm:$0xff]
  %v287 = vld [vmem:[%s1 + $0x870] sm:$0xff]
  %v288 = vld [vmem:[%s1 + $0x878] sm:$0xff]
  %v289 = vld [vmem:[%s1 + $0x880] sm:$0xff]
  %v290 = vld [vmem:[%s1 + $0x888] sm:$0xff]
  %v291 = vld [vmem:[%s1 + $0x890] sm:$0xff]
  %v292 = vld [vmem:[%s1 + $0x898] sm:$0xff]
  %v293 = vld [vmem:[%s1 + $0x8a0] sm:$0xff]
  %v294 = vld [vmem:[%s1 + $0x8a8] sm:$0xff]
  %v295 = vld [vmem:[%s1 + $0x8b0] sm:$0xff]
  %v296 = vld [vmem:[%s1 + $0x8b8] sm:$0xff]
  %v297 = vld [vmem:[%s1 + $0x8c0] sm:$0xff]
  %v298 = vld [vmem:[%s1 + $0x8c8] sm:$0xff]
  %v299 = vld [vmem:[%s1 + $0x8d0] sm:$0xff]
  %v300 = vld [vmem:[%s1 + $0x8d8] sm:$0xff]
  %v301 = vld [vmem:[%s1 + $0x8e0] sm:$0xff]
  %v302 = vld [vmem:[%s1 + $0x8e8] sm:$0xff]
  %v303 = vld [vmem:[%s1 + $0x8f0] sm:$0xff]
  %v304 = vld [vmem:[%s1 + $0x8f8] sm:$0xff]
  %v305 = vld [vmem:[%s1 + $0x900] sm:$0xff]
  %v306 = vld [vmem:[%s1 + $0x908] sm:$0xff]
  %v307 = vld [vmem:[%s1 + $0x910] sm:$0xff]
  %v308 = vld [vmem:[%s1 + $0x918] sm:$0xff]
  %v309 = vld [vmem:[%s1 + $0x920] sm:$0xff]
  %v310 = vld [vmem:[%s1 + $0x928] sm:$0xff]
  %v311 = vld [vmem:[%s1 + $0x930] sm:$0xff]
  %v312 = vld [vmem:[%s1 + $0x938] sm:$0xff]
  %v313 = vld [vmem:[%s1 + $0x940] sm:$0xff]
  %v314 = vld [vmem:[%s1 + $0x948] sm:$0xff]
  %v315 = vld [vmem:[%s1 + $0x950] sm:$0xff]
  %v316 = vld [vmem:[%s1 + $0x958] sm:$0xff]
  %v317 = vld [vmem:[%s1 + $0x960] sm:$0xff]
  %v318 = vld [vmem:[%s1 + $0x968] sm:$0xff]
  %v319 = vld [vmem:[%s1 + $0x970] sm:$0xff]
  %v320 = vld [vmem:[%s1 + $0x978] sm:$0xff]
  %v321 = vld [vmem:[%s1 + $0x980] sm:$0xff]
  %v322 = vld [vmem:[%s1 + $0x988] sm:$0xff]
  %v323 = vld [vmem:[%s1 + $0x990] sm:$0xff]
  %v324 = vld [vmem:[%s1 + $0x998] sm:$0xff]
  %v325 = vld [vmem:[%s1 + $0x9a0] sm:$0xff]
  %v326 = vld [vmem:[%s1 + $0x9a8] sm:$0xff]
  %v327 = vld [vmem:[%s1 + $0x9b0] sm:$0xff]
  %v328 = vld [vmem:[%s1 + $0x9b8] sm:$0xff]
  %v329 = vld [vmem:[%s1 + $0x9c0] sm:$0xff]
  %v330 = vld [vmem:[%s1 + $0x9c8] sm:$0xff]
  %v331 = vld [vmem:[%s1 + $0x9d0] sm:$0xff]
  %v332 = vld [vmem:[%s1 + $0x9d8] sm:$0xff]
  %v333 = vld [vmem:[%s1 + $0x9e0] sm:$0xff]
  %v334 = vld [vmem:[%s1 + $0x9e8] sm:$0xff]
  %v335 = vld [vmem:[%s1 + $0x9f0] sm:$0xff]
  %v336 = vld [vmem:[%s1 + $0x9f8] sm:$0xff]
  %v337 = vld [vmem:[%s1 + $0xa00] sm:$0xff]
  %v338 = vld [vmem:[%s1 + $0xa08] sm:$0xff]
  %v339 = vld [vmem:[%s1 + $0xa10] sm:$0xff]
  %v340 = vld [vmem:[%s1 + $0xa18] sm:$0xff]
  %v341 = vld [vmem:[%s1 + $0xa20] sm:$0xff]
  %v342 = vld [vmem:[%s1 + $0xa28] sm:$0xff]
  %v343 = vld [vmem:[%s1 + $0xa30] sm:$0xff]
  %v344 = vld [vmem:[%s1 + $0xa38] sm:$0xff]
  %v345 = vld [vmem:[%s1 + $0xa40] sm:$0xff]
  %v346 = vld [vmem:[%s1 + $0xa48] sm:$0xff]
  %v347 = vld [vmem:[%s1 + $0xa50] sm:$0xff]
  %v348 = vld [vmem:[%s1 + $0xa58] sm:$0xff]
  %v349 = vld [vmem:[%s1 + $0xa60] sm:$0xff]
  %v350 = vld [vmem:[%s1 + $0xa68] sm:$0xff]
  %v351 = vld [vmem:[%s1 + $0xa70] sm:$0xff]
  %v352 = vld [vmem:[%s1 + $0xa78] sm:$0xff]
  %v353 = vld [vmem:[%s1 + $0xa80] sm:$0xff]
  %v354 = vld [vmem:[%s1 + $0xa88] sm:$0xff]
  %v355 = vld [vmem:[%s1 + $0xa90] sm:$0xff]
  %v356 = vld [vmem:[%s1 + $0xa98] sm:$0xff]
  %v357 = vld [vmem:[%s1 + $0xaa0] sm:$0xff]
  %v358 = vld [vmem:[%s1 + $0xaa8] sm:$0xff]
  %v359 = vld [vmem:[%s1 + $0xab0] sm:$0xff]
  %v360 = vld [vmem:[%s1 + $0xab8] sm:$0xff]
  %v361 = vld [vmem:[%s1 + $0xac0] sm:$0xff]
  %v362 = vld [vmem:[%s1 + $0xac8] sm:$0xff]
  %v363 = vld [vmem:[%s1 + $0xad0] sm:$0xff]
  %v364 = vld [vmem:[%s1 + $0xad8] sm:$0xff]
  %v365 = vld [vmem:[%s1 + $0xae0] sm:$0xff]
  %v366 = vld [vmem:[%s1 + $0xae8] sm:$0xff]
  %v367 = vld [vmem:[%s1 + $0xaf0] sm:$0xff]
  %v368 = vld [vmem:[%s1 + $0xaf8] sm:$0xff]
  %v369 = vld [vmem:[%s1 + $0xb00] sm:$0xff]
  %v370 = vld [vmem:[%s1 + $0xb08] sm:$0xff]
  %v371 = vld [vmem:[%s1 + $0xb10] sm:$0xff]
  %v372 = vld [vmem:[%s1 + $0xb18] sm:$0xff]
  %v373 = vld [vmem:[%s1 + $0xb20] sm:$0xff]
  %v374 = vld [vmem:[%s1 + $0xb28] sm:$0xff]
  %v375 = vld [vmem:[%s1 + $0xb30] sm:$0xff]
  %v376 = vld [vmem:[%s1 + $0xb38] sm:$0xff]
  %v377 = vld [vmem:[%s1 + $0xb40] sm:$0xff]
  %v378 = vld [vmem:[%s1 + $0xb48] sm:$0xff]
  %v379 = vld [vmem:[%s1 + $0xb50] sm:$0xff]
  %v380 = vld [vmem:[%s1 + $0xb58] sm:$0xff]
  %v381 = vld [vmem:[%s1 + $0xb60] sm:$0xff]
  %v382 = vld [vmem:[%s1 + $0xb68] sm:$0xff]
  %v383 = vld [vmem:[%s1 + $0xb70] sm:$0xff]
  %v384 = vld [vmem:[%s1 + $0xb78] sm:$0xff]
  %v385 = vld [vmem:[%s1 + $0xb80] sm:$0xff]
  %v386 = vld [vmem:[%s1 + $0xb88] sm:$0xff]
  %v387 = vld [vmem:[%s1 + $0xb90] sm:$0xff]
  %v388 = vld [vmem:[%s1 + $0xb98] sm:$0xff]
  %v389 = vld [vmem:[%s1 + $0xba0] sm:$0xff]
  %v390 = vld [vmem:[%s1 + $0xba8] sm:$0xff]
  %v391 = vld [vmem:[%s1 + $0xbb0] sm:$0xff]
  %v392 = vld [vmem:[%s1 + $0xbb8] sm:$0xff]
  %v393 = vld [vmem:[%s1 + $0xbc0] sm:$0xff]
  %v394 = vld [vmem:[%s1 + $0xbc8] sm:$0xff]
  %v395 = vld [vmem:[%s1 + $0xbd0] sm:$0xff]
  %v396 = vld [vmem:[%s1 + $0xbd8] sm:$0xff]
  %v397 = vld [vmem:[%s1 + $0xbe0] sm:$0xff]
  %v398 = vld [vmem:[%s1 + $0xbe8] sm:$0xff]
  %v399 = vld [vmem:[%s1 + $0xbf0] sm:$0xff]
  %v400 = vld [vmem:[%s1 + $0xbf8] sm:$0xff]
  %v401 = vld [vmem:[%s1 + $0xc00] sm:$0xff]
  %v402 = vld [vmem:[%s1 + $0xc08] sm:$0xff]
  %v403 = vld [vmem:[%s1 + $0xc10] sm:$0xff]
  %v404 = vld [vmem:[%s1 + $0xc18] sm:$0xff]
  %v405 = vld [vmem:[%s1 + $0xc20] sm:$0xff]
  %v406 = vld [vmem:[%s1 + $0xc28] sm:$0xff]
  %v407 = vld [vmem:[%s1 + $0xc30] sm:$0xff]
  %v408 = vld [vmem:[%s1 + $0xc38] sm:$0xff]
  %v409 = vld [vmem:[%s1 + $0xc40] sm:$0xff]
  %v410 = vld [vmem:[%s1 + $0xc48] sm:$0xff]
  %v411 = vld [vmem:[%s1 + $0xc50] sm:$0xff]
  %v412 = vld [vmem:[%s1 + $0xc58] sm:$0xff]
  %v413 = vld [vmem:[%s1 + $0xc60] sm:$0xff]
  %v414 = vld [vmem:[%s1 + $0xc68] sm:$0xff]
  %v415 = vld [vmem:[%s1 + $0xc70] sm:$0xff]
  %v416 = vld [vmem:[%s1 + $0xc78] sm:$0xff]
  %v417 = vld [vmem:[%s1 + $0xc80] sm:$0xff]
  %v418 = vld [vmem:[%s1 + $0xc88] sm:$0xff]
  %v419 = vld [vmem:[%s1 + $0xc90] sm:$0xff]
  %v420 = vld [vmem:[%s1 + $0xc98] sm:$0xff]
  %v421 = vld [vmem:[%s1 + $0xca0] sm:$0xff]
  %v422 = vld [vmem:[%s1 + $0xca8] sm:$0xff]
  %v423 = vld [vmem:[%s1 + $0xcb0] sm:$0xff]
  %v424 = vld [vmem:[%s1 + $0xcb8] sm:$0xff]
  %v425 = vld [vmem:[%s1 + $0xcc0] sm:$0xff]
  %v426 = vld [vmem:[%s1 + $0xcc8] sm:$0xff]
  %v427 = vld [vmem:[%s1 + $0xcd0] sm:$0xff]
  %v428 = vld [vmem:[%s1 + $0xcd8] sm:$0xff]
  %v429 = vld [vmem:[%s1 + $0xce0] sm:$0xff]
  %v430 = vld [vmem:[%s1 + $0xce8] sm:$0xff]
  %v431 = vld [vmem:[%s1 + $0xcf0] sm:$0xff]
  %v432 = vld [vmem:[%s1 + $0xcf8] sm:$0xff]
  %v433 = vld [vmem:[%s1 + $0xd00] sm:$0xff]
  %v434 = vld [vmem:[%s1 + $0xd08] sm:$0xff]
  %v435 = vld [vmem:[%s1 + $0xd10] sm:$0xff]
  %v436 = vld [vmem:[%s1 + $0xd18] sm:$0xff]
  %v437 = vld [vmem:[%s1 + $0xd20] sm:$0xff]
  %v438 = vld [vmem:[%s1 + $0xd28] sm:$0xff]
  %v439 = vld [vmem:[%s1 + $0xd30] sm:$0xff]
  %v440 = vld [vmem:[%s1 + $0xd38] sm:$0xff]
  %v441 = vld [vmem:[%s1 + $0xd40] sm:$0xff]
  %v442 = vld [vmem:[%s1 + $0xd48] sm:$0xff]
  %v443 = vld [vmem:[%s1 + $0xd50] sm:$0xff]
  %v444 = vld [vmem:[%s1 + $0xd58] sm:$0xff]
  %v445 = vld [vmem:[%s1 + $0xd60] sm:$0xff]
  %v446 = vld [vmem:[%s1 + $0xd68] sm:$0xff]
  %v447 = vld [vmem:[%s1 + $0xd70] sm:$0xff]
  %v448 = vld [vmem:[%s1 + $0xd78] sm:$0xff]
  %v449 = vld [vmem:[%s1 + $0xd80] sm:$0xff]
  %v450 = vld [vmem:[%s1 + $0xd88] sm:$0xff]
  %v451 = vld [vmem:[%s1 + $0xd90] sm:$0xff]
  %v452 = vld [vmem:[%s1 + $0xd98] sm:$0xff]
  %v453 = vld [vmem:[%s1 + $0xda0] sm:$0xff]
  %v454 = vld [vmem:[%s1 + $0xda8] sm:$0xff]
  %v455 = vld [vmem:[%s1 + $0xdb0] sm:$0xff]
  %v456 = vld [vmem:[%s1 + $0xdb8] sm:$0xff]
  %v457 = vld [vmem:[%s1 + $0xdc0] sm:$0xff]
  %v458 = vld [vmem:[%s1 + $0xdc8] sm:$0xff]
  %v459 = vld [vmem:[%s1 + $0xdd0] sm:$0xff]
  %v460 = vld [vmem:[%s1 + $0xdd8] sm:$0xff]
  %v461 = vld [vmem:[%s1 + $0xde0] sm:$0xff]
  %v462 = vld [vmem:[%s1 + $0xde8] sm:$0xff]
  %v463 = vld [vmem:[%s1 + $0xdf0] sm:$0xff]
  %v464 = vld [vmem:[%s1 + $0xdf8] sm:$0xff]
  %v465 = vld [vmem:[%s1 + $0xe00] sm:$0xff]
  %v466 = vld [vmem:[%s1 + $0xe08] sm:$0xff]
  %v467 = vld [vmem:[%s1 + $0xe10] sm:$0xff]
  %v468 = vld [vmem:[%s1 + $0xe18] sm:$0xff]
  %v469 = vld [vmem:[%s1 + $0xe20] sm:$0xff]
  %v470 = vld [vmem:[%s1 + $0xe28] sm:$0xff]
  %v471 = vld [vmem:[%s1 + $0xe30] sm:$0xff]
  %v472 = vld [vmem:[%s1 + $0xe38] sm:$0xff]
  %v473 = vld [vmem:[%s1 + $0xe40] sm:$0xff]
  %v474 = vld [vmem:[%s1 + $0xe48] sm:$0xff]
  %v475 = vld [vmem:[%s1 + $0xe50] sm:$0xff]
  %v476 = vld [vmem:[%s1 + $0xe58] sm:$0xff]
  %v477 = vld [vmem:[%s1 + $0xe60] sm:$0xff]
  %v478 = vld [vmem:[%s1 + $0xe68] sm:$0xff]
  %v479 = vld [vmem:[%s1 + $0xe70] sm:$0xff]
  %v480 = vld [vmem:[%s1 + $0xe78] sm:$0xff]
  %v481 = vld [vmem:[%s1 + $0xe80] sm:$0xff]
  %v482 = vld [vmem:[%s1 + $0xe88] sm:$0xff]
  %v483 = vld [vmem:[%s1 + $0xe90] sm:$0xff]
  %v484 = vld [vmem:[%s1 + $0xe98] sm:$0xff]
  %v485 = vld [vmem:[%s1 + $0xea0] sm:$0xff]
  %v486 = vld [vmem:[%s1 + $0xea8] sm:$0xff]
  %v487 = vld [vmem:[%s1 + $0xeb0] sm:$0xff]
  %v488 = vld [vmem:[%s1 + $0xeb8] sm:$0xff]
  %v489 = vld [vmem:[%s1 + $0xec0] sm:$0xff]
  %v490 = vld [vmem:[%s1 + $0xec8] sm:$0xff]
  %v491 = vld [vmem:[%s1 + $0xed0] sm:$0xff]
  %v492 = vld [vmem:[%s1 + $0xed8] sm:$0xff]
  %v493 = vld [vmem:[%s1 + $0xee0] sm:$0xff]
  %v494 = vld [vmem:[%s1 + $0xee8] sm:$0xff]
  %v495 = vld [vmem:[%s1 + $0xef0] sm:$0xff]
  %v496 = vld [vmem:[%s1 + $0xef8] sm:$0xff]
  %v497 = vld [vmem:[%s1 + $0xf00] sm:$0xff]
  %v498 = vld [vmem:[%s1 + $0xf08] sm:$0xff]
  %v499 = vld [vmem:[%s1 + $0xf10] sm:$0xff]
  %v500 = vld [vmem:[%s1 + $0xf18] sm:$0xff]
  %v501 = vld [vmem:[%s1 + $0xf20] sm:$0xff]
  %v502 = vld [vmem:[%s1 + $0xf28] sm:$0xff]
  %v503 = vld [vmem:[%s1 + $0xf30] sm:$0xff]
  %v504 = vld [vmem:[%s1 + $0xf38] sm:$0xff]
  %v505 = vld [vmem:[%s1 + $0xf40] sm:$0xff]
  %v506 = vld [vmem:[%s1 + $0xf48] sm:$0xff]
  %v507 = vld [vmem:[%s1 + $0xf50] sm:$0xff]
  %v508 = vld [vmem:[%s1 + $0xf58] sm:$0xff]
  %v509 = vld [vmem:[%s1 + $0xf60] sm:$0xff]
  %v510 = vld [vmem:[%s1 + $0xf68] sm:$0xff]
  %v511 = vld [vmem:[%s1 + $0xf70] sm:$0xff]
  %v512 = vld [vmem:[%s1 + $0xf78] sm:$0xff]
  %v513 = vld [vmem:[%s1 + $0xf80] sm:$0xff]
  %v514 = vld [vmem:[%s1 + $0xf88] sm:$0xff]
  %v515 = vld [vmem:[%s1 + $0xf90] sm:$0xff]
  %v516 = vld [vmem:[%s1 + $0xf98] sm:$0xff]
  %v517 = vld [vmem:[%s1 + $0xfa0] sm:$0xff]
  %v518 = vld [vmem:[%s1 + $0xfa8] sm:$0xff]
  %v519 = vld [vmem:[%s1 + $0xfb0] sm:$0xff]
  %v520 = vld [vmem:[%s1 + $0xfb8] sm:$0xff]
  %v521 = vld [vmem:[%s1 + $0xfc0] sm:$0xff]
  %v522 = vld [vmem:[%s1 + $0xfc8] sm:$0xff]
  %v523 = vld [vmem:[%s1 + $0xfd0] sm:$0xff]
  %v524 = vld [vmem:[%s1 + $0xfd8] sm:$0xff]
  %v525 = vld [vmem:[%s1 + $0xfe0] sm:$0xff]
  %v526 = vld [vmem:[%s1 + $0xfe8] sm:$0xff]
  %v527 = vld [vmem:[%s1 + $0xff0] sm:$0xff]
  %v528 = vld [vmem:[%s1 + $0xff8] sm:$0xff]
  %v529 = vld [vmem:[%s1 + $0x1000] sm:$0xff]
  %v530 = vld [vmem:[%s1 + $0x1008] sm:$0xff]
  %v531 = vld [vmem:[%s1 + $0x1010] sm:$0xff]
  %v532 = vld [vmem:[%s1 + $0x1018] sm:$0xff]
  %v533 = vld [vmem:[%s1 + $0x1020] sm:$0xff]
  %v534 = vld [vmem:[%s1 + $0x1028] sm:$0xff]
  %v535 = vld [vmem:[%s1 + $0x1030] sm:$0xff]
  %v536 = vld [vmem:[%s1 + $0x1038] sm:$0xff]
  %v537 = vld [vmem:[%s1 + $0x1040] sm:$0xff]
  %v538 = vld [vmem:[%s1 + $0x1048] sm:$0xff]
  %v539 = vld [vmem:[%s1 + $0x1050] sm:$0xff]
  %v540 = vld [vmem:[%s1 + $0x1058] sm:$0xff]
  %v541 = vld [vmem:[%s1 + $0x1060] sm:$0xff]
  %v542 = vld [vmem:[%s1 + $0x1068] sm:$0xff]
  %v543 = vld [vmem:[%s1 + $0x1070] sm:$0xff]
  %v544 = vld [vmem:[%s1 + $0x1078] sm:$0xff]
  %v545 = vld [vmem:[%s1 + $0x1080] sm:$0xff]
  %v546 = vld [vmem:[%s1 + $0x1088] sm:$0xff]
  %v547 = vld [vmem:[%s1 + $0x1090] sm:$0xff]
  %v548 = vld [vmem:[%s1 + $0x1098] sm:$0xff]
  %v549 = vld [vmem:[%s1 + $0x10a0] sm:$0xff]
  %v550 = vld [vmem:[%s1 + $0x10a8] sm:$0xff]
  %v551 = vld [vmem:[%s1 + $0x10b0] sm:$0xff]
  %v552 = vld [vmem:[%s1 + $0x10b8] sm:$0xff]
  %v553 = vld [vmem:[%s1 + $0x10c0] sm:$0xff]
  %v554 = vld [vmem:[%s1 + $0x10c8] sm:$0xff]
  %v555 = vld [vmem:[%s1 + $0x10d0] sm:$0xff]
  %v556 = vld [vmem:[%s1 + $0x10d8] sm:$0xff]
  %v557 = vld [vmem:[%s1 + $0x10e0] sm:$0xff]
  %v558 = vld [vmem:[%s1 + $0x10e8] sm:$0xff]
  %v559 = vld [vmem:[%s1 + $0x10f0] sm:$0xff]
  %v560 = vld [vmem:[%s1 + $0x10f8] sm:$0xff]
  %v561 = vld [vmem:[%s1 + $0x1100] sm:$0xff]
  %v562 = vld [vmem:[%s1 + $0x1108] sm:$0xff]
  %v563 = vld [vmem:[%s1 + $0x1110] sm:$0xff]
  %v564 = vld [vmem:[%s1 + $0x1118] sm:$0xff]
  %v565 = vld [vmem:[%s1 + $0x1120] sm:$0xff]
  %v566 = vld [vmem:[%s1 + $0x1128] sm:$0xff]
  %v567 = vld [vmem:[%s1 + $0x1130] sm:$0xff]
  %v568 = vld [vmem:[%s1 + $0x1138] sm:$0xff]
  %v569 = vld [vmem:[%s1 + $0x1140] sm:$0xff]
  %v570 = vld [vmem:[%s1 + $0x1148] sm:$0xff]
  %v571 = vld [vmem:[%s1 + $0x1150] sm:$0xff]
  %v572 = vld [vmem:[%s1 + $0x1158] sm:$0xff]
  %v573 = vld [vmem:[%s1 + $0x1160] sm:$0xff]
  %v574 = vld [vmem:[%s1 + $0x1168] sm:$0xff]
  %v575 = vld [vmem:[%s1 + $0x1170] sm:$0xff]
  %v576 = vld [vmem:[%s1 + $0x1178] sm:$0xff]
  %v577 = vld [vmem:[%s1 + $0x1180] sm:$0xff]
  %v578 = vld [vmem:[%s1 + $0x1188] sm:$0xff]
  %v579 = vld [vmem:[%s1 + $0x1190] sm:$0xff]
  %v580 = vld [vmem:[%s1 + $0x1198] sm:$0xff]
  %v581 = vld [vmem:[%s1 + $0x11a0] sm:$0xff]
  %v582 = vld [vmem:[%s1 + $0x11a8] sm:$0xff]
  %v583 = vld [vmem:[%s1 + $0x11b0] sm:$0xff]
  %v584 = vld [vmem:[%s1 + $0x11b8] sm:$0xff]
  %v585 = vld [vmem:[%s1 + $0x11c0] sm:$0xff]
  %v586 = vld [vmem:[%s1 + $0x11c8] sm:$0xff]
  %v587 = vld [vmem:[%s1 + $0x11d0] sm:$0xff]
  %v588 = vld [vmem:[%s1 + $0x11d8] sm:$0xff]
  %v589 = vld [vmem:[%s1 + $0x11e0] sm:$0xff]
  %v590 = vld [vmem:[%s1 + $0x11e8] sm:$0xff]
  %v591 = vld [vmem:[%s1 + $0x11f0] sm:$0xff]
  %v592 = vld [vmem:[%s1 + $0x11f8] sm:$0xff]
  %v593 = vld [vmem:[%s1 + $0x1200] sm:$0xff]
  %v594 = vld [vmem:[%s1 + $0x1208] sm:$0xff]
  %v595 = vld [vmem:[%s1 + $0x1210] sm:$0xff]
  %v596 = vld [vmem:[%s1 + $0x1218] sm:$0xff]
  %v597 = vld [vmem:[%s1 + $0x1220] sm:$0xff]
  %v598 = vld [vmem:[%s1 + $0x1228] sm:$0xff]
  %v599 = vld [vmem:[%s1 + $0x1230] sm:$0xff]
  %v600 = vld [vmem:[%s1 + $0x1238] sm:$0xff]
  %v601 = vld [vmem:[%s1 + $0x1240] sm:$0xff]
  %v602 = vld [vmem:[%s1 + $0x1248] sm:$0xff]
  %v603 = vld [vmem:[%s1 + $0x1250] sm:$0xff]
  %v604 = vld [vmem:[%s1 + $0x1258] sm:$0xff]
  %v605 = vld [vmem:[%s1 + $0x1260] sm:$0xff]
  %v606 = vld [vmem:[%s1 + $0x1268] sm:$0xff]
  %v607 = vld [vmem:[%s1 + $0x1270] sm:$0xff]
  %v608 = vld [vmem:[%s1 + $0x1278] sm:$0xff]
  %v609 = vld [vmem:[%s1 + $0x1280] sm:$0xff]
  %v610 = vld [vmem:[%s1 + $0x1288] sm:$0xff]
  %v611 = vld [vmem:[%s1 + $0x1290] sm:$0xff]
  %v612 = vld [vmem:[%s1 + $0x1298] sm:$0xff]
  %v613 = vld [vmem:[%s1 + $0x12a0] sm:$0xff]
  %v614 = vld [vmem:[%s1 + $0x12a8] sm:$0xff]
  %v615 = vld [vmem:[%s1 + $0x12b0] sm:$0xff]
  %v616 = vld [vmem:[%s1 + $0x12b8] sm:$0xff]
  %v617 = vld [vmem:[%s1 + $0x12c0] sm:$0xff]
  %v618 = vld [vmem:[%s1 + $0x12c8] sm:$0xff]
  %v619 = vld [vmem:[%s1 + $0x12d0] sm:$0xff]
  %v620 = vld [vmem:[%s1 + $0x12d8] sm:$0xff]
  %v621 = vld [vmem:[%s1 + $0x12e0] sm:$0xff]
  %v622 = vld [vmem:[%s1 + $0x12e8] sm:$0xff]
  %v623 = vld [vmem:[%s1 + $0x12f0] sm:$0xff]
  %v624 = vld [vmem:[%s1 + $0x12f8] sm:$0xff]
  %v625 = vld [vmem:[%s1 + $0x1300] sm:$0xff]
  %v626 = vld [vmem:[%s1 + $0x1308] sm:$0xff]
  %v627 = vld [vmem:[%s1 + $0x1310] sm:$0xff]
  %v628 = vld [vmem:[%s1 + $0x1318] sm:$0xff]
  %v629 = vld [vmem:[%s1 + $0x1320] sm:$0xff]
  %v630 = vld [vmem:[%s1 + $0x1328] sm:$0xff]
  %v631 = vld [vmem:[%s1 + $0x1330] sm:$0xff]
  %v632 = vld [vmem:[%s1 + $0x1338] sm:$0xff]
  %v633 = vld [vmem:[%s1 + $0x1340] sm:$0xff]
  %v634 = vld [vmem:[%s1 + $0x1348] sm:$0xff]
  %v635 = vld [vmem:[%s1 + $0x1350] sm:$0xff]
  %v636 = vld [vmem:[%s1 + $0x1358] sm:$0xff]
  %v637 = vld [vmem:[%s1 + $0x1360] sm:$0xff]
  %v638 = vld [vmem:[%s1 + $0x1368] sm:$0xff]
  %v639 = vld [vmem:[%s1 + $0x1370] sm:$0xff]
  %v640 = vld [vmem:[%s1 + $0x1378] sm:$0xff]
  %v641 = vld [vmem:[%s1 + $0x1380] sm:$0xff]
  %v642 = vld [vmem:[%s1 + $0x1388] sm:$0xff]
  %v643 = vld [vmem:[%s1 + $0x1390] sm:$0xff]
  %v644 = vld [vmem:[%s1 + $0x1398] sm:$0xff]
  %v645 = vld [vmem:[%s1 + $0x13a0] sm:$0xff]
  %v646 = vld [vmem:[%s1 + $0x13a8] sm:$0xff]
  %v647 = vld [vmem:[%s1 + $0x13b0] sm:$0xff]
  %v648 = vld [vmem:[%s1 + $0x13b8] sm:$0xff]
  %v649 = vld [vmem:[%s1 + $0x13c0] sm:$0xff]
  %v650 = vld [vmem:[%s1 + $0x13c8] sm:$0xff]
  %v651 = vld [vmem:[%s1 + $0x13d0] sm:$0xff]
  %v652 = vld [vmem:[%s1 + $0x13d8] sm:$0xff]
  %v653 = vld [vmem:[%s1 + $0x13e0] sm:$0xff]
  %v654 = vld [vmem:[%s1 + $0x13e8] sm:$0xff]
  %v655 = vld [vmem:[%s1 + $0x13f0] sm:$0xff]
  %v656 = vld [vmem:[%s1 + $0x13f8] sm:$0xff]
  %v657 = vld [vmem:[%s1 + $0x1400] sm:$0xff]
  %v658 = vld [vmem:[%s1 + $0x1408] sm:$0xff]
  %v659 = vld [vmem:[%s1 + $0x1410] sm:$0xff]
  %v660 = vld [vmem:[%s1 + $0x1418] sm:$0xff]
  %v661 = vld [vmem:[%s1 + $0x1420] sm:$0xff]
  %v662 = vld [vmem:[%s1 + $0x1428] sm:$0xff]
  %v663 = vld [vmem:[%s1 + $0x1430] sm:$0xff]
  %v664 = vld [vmem:[%s1 + $0x1438] sm:$0xff]
  %v665 = vld [vmem:[%s1 + $0x1440] sm:$0xff]
  %v666 = vld [vmem:[%s1 + $0x1448] sm:$0xff]
  %v667 = vld [vmem:[%s1 + $0x1450] sm:$0xff]
  %v668 = vld [vmem:[%s1 + $0x1458] sm:$0xff]
  %v669 = vld [vmem:[%s1 + $0x1460] sm:$0xff]
  %v670 = vld [vmem:[%s1 + $0x1468] sm:$0xff]
  %v671 = vld [vmem:[%s1 + $0x1470] sm:$0xff]
  %v672 = vld [vmem:[%s1 + $0x1478] sm:$0xff]
  %v673 = vld [vmem:[%s1 + $0x1480] sm:$0xff]
  %v674 = vld [vmem:[%s1 + $0x1488] sm:$0xff]
  %v675 = vld [vmem:[%s1 + $0x1490] sm:$0xff]
  %v676 = vld [vmem:[%s1 + $0x1498] sm:$0xff]
  %v677 = vld [vmem:[%s1 + $0x14a0] sm:$0xff]
  %v678 = vld [vmem:[%s1 + $0x14a8] sm:$0xff]
  %v679 = vld [vmem:[%s1 + $0x14b0] sm:$0xff]
  %v680 = vld [vmem:[%s1 + $0x14b8] sm:$0xff]
  %v681 = vld [vmem:[%s1 + $0x14c0] sm:$0xff]
  %v682 = vld [vmem:[%s1 + $0x14c8] sm:$0xff]
  %v683 = vld [vmem:[%s1 + $0x14d0] sm:$0xff]
  %v684 = vld [vmem:[%s1 + $0x14d8] sm:$0xff]
  %v685 = vld [vmem:[%s1 + $0x14e0] sm:$0xff]
  %v686 = vld [vmem:[%s1 + $0x14e8] sm:$0xff]
  %v687 = vld [vmem:[%s1 + $0x14f0] sm:$0xff]
  %v688 = vld [vmem:[%s1 + $0x14f8] sm:$0xff]
  %v689 = vld [vmem:[%s1 + $0x1500] sm:$0xff]
  %v690 = vld [vmem:[%s1 + $0x1508] sm:$0xff]
  %v691 = vld [vmem:[%s1 + $0x1510] sm:$0xff]
  %v692 = vld [vmem:[%s1 + $0x1518] sm:$0xff]
  %v693 = vld [vmem:[%s1 + $0x1520] sm:$0xff]
  %v694 = vld [vmem:[%s1 + $0x1528] sm:$0xff]
  %v695 = vld [vmem:[%s1 + $0x1530] sm:$0xff]
  %v696 = vld [vmem:[%s1 + $0x1538] sm:$0xff]
  %v697 = vld [vmem:[%s1 + $0x1540] sm:$0xff]
  %v698 = vld [vmem:[%s1 + $0x1548] sm:$0xff]
  %v699 = vld [vmem:[%s1 + $0x1550] sm:$0xff]
  %v700 = vld [vmem:[%s1 + $0x1558] sm:$0xff]
  %v701 = vld [vmem:[%s1 + $0x1560] sm:$0xff]
  %v702 = vld [vmem:[%s1 + $0x1568] sm:$0xff]
  %v703 = vld [vmem:[%s1 + $0x1570] sm:$0xff]
  %v704 = vld [vmem:[%s1 + $0x1578] sm:$0xff]
  %v705 = vld [vmem:[%s1 + $0x1580] sm:$0xff]
  %v706 = vld [vmem:[%s1 + $0x1588] sm:$0xff]
  %v707 = vld [vmem:[%s1 + $0x1590] sm:$0xff]
  %v708 = vld [vmem:[%s1 + $0x1598] sm:$0xff]
  %v709 = vld [vmem:[%s1 + $0x15a0] sm:$0xff]
  %v710 = vld [vmem:[%s1 + $0x15a8] sm:$0xff]
  %v711 = vld [vmem:[%s1 + $0x15b0] sm:$0xff]
  %v712 = vld [vmem:[%s1 + $0x15b8] sm:$0xff]
  %v713 = vld [vmem:[%s1 + $0x15c0] sm:$0xff]
  %v714 = vld [vmem:[%s1 + $0x15c8] sm:$0xff]
  %v715 = vld [vmem:[%s1 + $0x15d0] sm:$0xff]
  %v716 = vld [vmem:[%s1 + $0x15d8] sm:$0xff]
  %v717 = vld [vmem:[%s1 + $0x15e0] sm:$0xff]
  %v718 = vld [vmem:[%s1 + $0x15e8] sm:$0xff]
  %v719 = vld [vmem:[%s1 + $0x15f0] sm:$0xff]
  %v720 = vld [vmem:[%s1 + $0x15f8] sm:$0xff]
  %v721 = vld [vmem:[%s1 + $0x1600] sm:$0xff]
  %v722 = vld [vmem:[%s1 + $0x1608] sm:$0xff]
  %v723 = vld [vmem:[%s1 + $0x1610] sm:$0xff]
  %v724 = vld [vmem:[%s1 + $0x1618] sm:$0xff]
  %v725 = vld [vmem:[%s1 + $0x1620] sm:$0xff]
  %v726 = vld [vmem:[%s1 + $0x1628] sm:$0xff]
  %v727 = vld [vmem:[%s1 + $0x1630] sm:$0xff]
  %v728 = vld [vmem:[%s1 + $0x1638] sm:$0xff]
  %v729 = vld [vmem:[%s1 + $0x1640] sm:$0xff]
  %v730 = vld [vmem:[%s1 + $0x1648] sm:$0xff]
  %v731 = vld [vmem:[%s1 + $0x1650] sm:$0xff]
  %v732 = vld [vmem:[%s1 + $0x1658] sm:$0xff]
  %v733 = vld [vmem:[%s1 + $0x1660] sm:$0xff]
  %v734 = vld [vmem:[%s1 + $0x1668] sm:$0xff]
  %v735 = vld [vmem:[%s1 + $0x1670] sm:$0xff]
  %v736 = vld [vmem:[%s1 + $0x1678] sm:$0xff]
  %v737 = vld [vmem:[%s1 + $0x1680] sm:$0xff]
  %v738 = vld [vmem:[%s1 + $0x1688] sm:$0xff]
  %v739 = vld [vmem:[%s1 + $0x1690] sm:$0xff]
  %v740 = vld [vmem:[%s1 + $0x1698] sm:$0xff]
  %v741 = vld [vmem:[%s1 + $0x16a0] sm:$0xff]
  %v742 = vld [vmem:[%s1 + $0x16a8] sm:$0xff]
  %v743 = vld [vmem:[%s1 + $0x16b0] sm:$0xff]
  %v744 = vld [vmem:[%s1 + $0x16b8] sm:$0xff]
  %v745 = vld [vmem:[%s1 + $0x16c0] sm:$0xff]
  %v746 = vld [vmem:[%s1 + $0x16c8] sm:$0xff]
  %v747 = vld [vmem:[%s1 + $0x16d0] sm:$0xff]
  %v748 = vld [vmem:[%s1 + $0x16d8] sm:$0xff]
  %v749 = vld [vmem:[%s1 + $0x16e0] sm:$0xff]
  %v750 = vld [vmem:[%s1 + $0x16e8] sm:$0xff]
  %v751 = vld [vmem:[%s1 + $0x16f0] sm:$0xff]
  %v752 = vld [vmem:[%s1 + $0x16f8] sm:$0xff]
  %v753 = vld [vmem:[%s1 + $0x1700] sm:$0xff]
  %v754 = vld [vmem:[%s1 + $0x1708] sm:$0xff]
  %v755 = vld [vmem:[%s1 + $0x1710] sm:$0xff]
  %v756 = vld [vmem:[%s1 + $0x1718] sm:$0xff]
  %v757 = vld [vmem:[%s1 + $0x1720] sm:$0xff]
  %v758 = vld [vmem:[%s1 + $0x1728] sm:$0xff]
  %v759 = vld [vmem:[%s1 + $0x1730] sm:$0xff]
  %v760 = vld [vmem:[%s1 + $0x1738] sm:$0xff]
  %v761 = vld [vmem:[%s1 + $0x1740] sm:$0xff]
  %v762 = vld [vmem:[%s1 + $0x1748] sm:$0xff]
  %v763 = vld [vmem:[%s1 + $0x1750] sm:$0xff]
  %v764 = vld [vmem:[%s1 + $0x1758] sm:$0xff]
  %v765 = vld [vmem:[%s1 + $0x1760] sm:$0xff]
  %v766 = vld [vmem:[%s1 + $0x1768] sm:$0xff]
  %v767 = vld [vmem:[%s1 + $0x1770] sm:$0xff]
  %v768 = vld [vmem:[%s1 + $0x1778] sm:$0xff]
  %v769 = vld [vmem:[%s1 + $0x1780] sm:$0xff]
  %v770 = vld [vmem:[%s1 + $0x1788] sm:$0xff]
  %v771 = vld [vmem:[%s1 + $0x1790] sm:$0xff]
  %v772 = vld [vmem:[%s1 + $0x1798] sm:$0xff]
  %v773 = vld [vmem:[%s1 + $0x17a0] sm:$0xff]
  %v774 = vld [vmem:[%s1 + $0x17a8] sm:$0xff]
  %v775 = vld [vmem:[%s1 + $0x17b0] sm:$0xff]
  %v776 = vld [vmem:[%s1 + $0x17b8] sm:$0xff]
  %v777 = vld [vmem:[%s1 + $0x17c0] sm:$0xff]
  %v778 = vld [vmem:[%s1 + $0x17c8] sm:$0xff]
  %v779 = vld [vmem:[%s1 + $0x17d0] sm:$0xff]
  %v780 = vld [vmem:[%s1 + $0x17d8] sm:$0xff]
  %v781 = vld [vmem:[%s1 + $0x17e0] sm:$0xff]
  %v782 = vld [vmem:[%s1 + $0x17e8] sm:$0xff]
  %v783 = vld [vmem:[%s1 + $0x17f0] sm:$0xff]
  %v784 = vld [vmem:[%s1 + $0x17f8] sm:$0xff]
  %v785 = vld [vmem:[%s1 + $0x1800] sm:$0xff]
  %v786 = vld [vmem:[%s1 + $0x1808] sm:$0xff]
  %v787 = vld [vmem:[%s1 + $0x1810] sm:$0xff]
  %v788 = vld [vmem:[%s1 + $0x1818] sm:$0xff]
  %v789 = vld [vmem:[%s1 + $0x1820] sm:$0xff]
  %v790 = vld [vmem:[%s1 + $0x1828] sm:$0xff]
  %v791 = vld [vmem:[%s1 + $0x1830] sm:$0xff]
  %v792 = vld [vmem:[%s1 + $0x1838] sm:$0xff]
  %v793 = vld [vmem:[%s1 + $0x1840] sm:$0xff]
  %v794 = vld [vmem:[%s1 + $0x1848] sm:$0xff]
  %v795 = vld [vmem:[%s1 + $0x1850] sm:$0xff]
  %v796 = vld [vmem:[%s1 + $0x1858] sm:$0xff]
  %v797 = vld [vmem:[%s1 + $0x1860] sm:$0xff]
  %v798 = vld [vmem:[%s1 + $0x1868] sm:$0xff]
  %v799 = vld [vmem:[%s1 + $0x1870] sm:$0xff]
  %v800 = vld [vmem:[%s1 + $0x1878] sm:$0xff]
  %v801 = vld [vmem:[%s1 + $0x1880] sm:$0xff]
  %v802 = vld [vmem:[%s1 + $0x1888] sm:$0xff]
  %v803 = vld [vmem:[%s1 + $0x1890] sm:$0xff]
  %v804 = vld [vmem:[%s1 + $0x1898] sm:$0xff]
  %v805 = vld [vmem:[%s1 + $0x18a0] sm:$0xff]
  %v806 = vld [vmem:[%s1 + $0x18a8] sm:$0xff]
  %v807 = vld [vmem:[%s1 + $0x18b0] sm:$0xff]
  %v808 = vld [vmem:[%s1 + $0x18b8] sm:$0xff]
  %v809 = vld [vmem:[%s1 + $0x18c0] sm:$0xff]
  %v810 = vld [vmem:[%s1 + $0x18c8] sm:$0xff]
  %v811 = vld [vmem:[%s1 + $0x18d0] sm:$0xff]
  %v812 = vld [vmem:[%s1 + $0x18d8] sm:$0xff]
  %v813 = vld [vmem:[%s1 + $0x18e0] sm:$0xff]
  %v814 = vld [vmem:[%s1 + $0x18e8] sm:$0xff]
  %v815 = vld [vmem:[%s1 + $0x18f0] sm:$0xff]
  %v816 = vld [vmem:[%s1 + $0x18f8] sm:$0xff]
  %v817 = vld [vmem:[%s1 + $0x1900] sm:$0xff]
  %v818 = vld [vmem:[%s1 + $0x1908] sm:$0xff]
  %v819 = vld [vmem:[%s1 + $0x1910] sm:$0xff]
  %v820 = vld [vmem:[%s1 + $0x1918] sm:$0xff]
  %v821 = vld [vmem:[%s1 + $0x1920] sm:$0xff]
  %v822 = vld [vmem:[%s1 + $0x1928] sm:$0xff]
  %v823 = vld [vmem:[%s1 + $0x1930] sm:$0xff]
  %v824 = vld [vmem:[%s1 + $0x1938] sm:$0xff]
  %v825 = vld [vmem:[%s1 + $0x1940] sm:$0xff]
  %v826 = vld [vmem:[%s1 + $0x1948] sm:$0xff]
  %v827 = vld [vmem:[%s1 + $0x1950] sm:$0xff]
  %v828 = vld [vmem:[%s1 + $0x1958] sm:$0xff]
  %v829 = vld [vmem:[%s1 + $0x1960] sm:$0xff]
  %v830 = vld [vmem:[%s1 + $0x1968] sm:$0xff]
  %v831 = vld [vmem:[%s1 + $0x1970] sm:$0xff]
  %v832 = vld [vmem:[%s1 + $0x1978] sm:$0xff]
  %v833 = vld [vmem:[%s1 + $0x1980] sm:$0xff]
  %v834 = vld [vmem:[%s1 + $0x1988] sm:$0xff]
  %v835 = vld [vmem:[%s1 + $0x1990] sm:$0xff]
  %v836 = vld [vmem:[%s1 + $0x1998] sm:$0xff]
  %v837 = vld [vmem:[%s1 + $0x19a0] sm:$0xff]
  %v838 = vld [vmem:[%s1 + $0x19a8] sm:$0xff]
  %v839 = vld [vmem:[%s1 + $0x19b0] sm:$0xff]
  %v840 = vld [vmem:[%s1 + $0x19b8] sm:$0xff]
  %v841 = vld [vmem:[%s1 + $0x19c0] sm:$0xff]
  %v842 = vld [vmem:[%s1 + $0x19c8] sm:$0xff]
  %v843 = vld [vmem:[%s1 + $0x19d0] sm:$0xff]
  %v844 = vld [vmem:[%s1 + $0x19d8] sm:$0xff]
  %v845 = vld [vmem:[%s1 + $0x19e0] sm:$0xff]
  %v846 = vld [vmem:[%s1 + $0x19e8] sm:$0xff]
  %v847 = vld [vmem:[%s1 + $0x19f0] sm:$0xff]
  %v848 = vld [vmem:[%s1 + $0x19f8] sm:$0xff]
  %v849 = vld [vmem:[%s1 + $0x1a00] sm:$0xff]
  %v850 = vld [vmem:[%s1 + $0x1a08] sm:$0xff]
  %v851 = vld [vmem:[%s1 + $0x1a10] sm:$0xff]
  %v852 = vld [vmem:[%s1 + $0x1a18] sm:$0xff]
  %v853 = vld [vmem:[%s1 + $0x1a20] sm:$0xff]
  %v854 = vld [vmem:[%s1 + $0x1a28] sm:$0xff]
  %v855 = vld [vmem:[%s1 + $0x1a30] sm:$0xff]
  %v856 = vld [vmem:[%s1 + $0x1a38] sm:$0xff]
  %v857 = vld [vmem:[%s1 + $0x1a40] sm:$0xff]
  %v858 = vld [vmem:[%s1 + $0x1a48] sm:$0xff]
  %v859 = vld [vmem:[%s1 + $0x1a50] sm:$0xff]
  %v860 = vld [vmem:[%s1 + $0x1a58] sm:$0xff]
  %v861 = vld [vmem:[%s1 + $0x1a60] sm:$0xff]
  %v862 = vld [vmem:[%s1 + $0x1a68] sm:$0xff]
  %v863 = vld [vmem:[%s1 + $0x1a70] sm:$0xff]
  %v864 = vld [vmem:[%s1 + $0x1a78] sm:$0xff]
  %v865 = vld [vmem:[%s1 + $0x1a80] sm:$0xff]
  %v866 = vld [vmem:[%s1 + $0x1a88] sm:$0xff]
  %v867 = vld [vmem:[%s1 + $0x1a90] sm:$0xff]
  %v868 = vld [vmem:[%s1 + $0x1a98] sm:$0xff]
  %v869 = vld [vmem:[%s1 + $0x1aa0] sm:$0xff]
  %v870 = vld [vmem:[%s1 + $0x1aa8] sm:$0xff]
  %v871 = vld [vmem:[%s1 + $0x1ab0] sm:$0xff]
  %v872 = vld [vmem:[%s1 + $0x1ab8] sm:$0xff]
  %v873 = vld [vmem:[%s1 + $0x1ac0] sm:$0xff]
  %v874 = vld [vmem:[%s1 + $0x1ac8] sm:$0xff]
  %v875 = vld [vmem:[%s1 + $0x1ad0] sm:$0xff]
  %v876 = vld [vmem:[%s1 + $0x1ad8] sm:$0xff]
  %v877 = vld [vmem:[%s1 + $0x1ae0] sm:$0xff]
  %v878 = vld [vmem:[%s1 + $0x1ae8] sm:$0xff]
  %v879 = vld [vmem:[%s1 + $0x1af0] sm:$0xff]
  %v880 = vld [vmem:[%s1 + $0x1af8] sm:$0xff]
  %v881 = vld [vmem:[%s1 + $0x1b00] sm:$0xff]
  %v882 = vld [vmem:[%s1 + $0x1b08] sm:$0xff]
  %v883 = vld [vmem:[%s1 + $0x1b10] sm:$0xff]
  %v884 = vld [vmem:[%s1 + $0x1b18] sm:$0xff]
  %v885 = vld [vmem:[%s1 + $0x1b20] sm:$0xff]
  %v886 = vld [vmem:[%s1 + $0x1b28] sm:$0xff]
  %v887 = vld [vmem:[%s1 + $0x1b30] sm:$0xff]
  %v888 = vld [vmem:[%s1 + $0x1b38] sm:$0xff]
  %v889 = vld [vmem:[%s1 + $0x1b40] sm:$0xff]
  %v890 = vld [vmem:[%s1 + $0x1b48] sm:$0xff]
  %v891 = vld [vmem:[%s1 + $0x1b50] sm:$0xff]
  %v892 = vld [vmem:[%s1 + $0x1b58] sm:$0xff]
  %v893 = vld [vmem:[%s1 + $0x1b60] sm:$0xff]
  %v894 = vld [vmem:[%s1 + $0x1b68] sm:$0xff]
  %v895 = vld [vmem:[%s1 + $0x1b70] sm:$0xff]
  %v896 = vld [vmem:[%s1 + $0x1b78] sm:$0xff]
  %v897 = vld [vmem:[%s1 + $0x1b80] sm:$0xff]
  %v898 = vld [vmem:[%s1 + $0x1b88] sm:$0xff]
  %v899 = vld [vmem:[%s1 + $0x1b90] sm:$0xff]
  %v900 = vld [vmem:[%s1 + $0x1b98] sm:$0xff]
  %v901 = vld [vmem:[%s1 + $0x1ba0] sm:$0xff]
  %v902 = vld [vmem:[%s1 + $0x1ba8] sm:$0xff]
  %v903 = vld [vmem:[%s1 + $0x1bb0] sm:$0xff]
  %v904 = vld [vmem:[%s1 + $0x1bb8] sm:$0xff]
  %v905 = vld [vmem:[%s1 + $0x1bc0] sm:$0xff]
  %v906 = vld [vmem:[%s1 + $0x1bc8] sm:$0xff]
  %v907 = vld [vmem:[%s1 + $0x1bd0] sm:$0xff]
  %v908 = vld [vmem:[%s1 + $0x1bd8] sm:$0xff]
  %v909 = vld [vmem:[%s1 + $0x1be0] sm:$0xff]
  %v910 = vld [vmem:[%s1 + $0x1be8] sm:$0xff]
  %v911 = vld [vmem:[%s1 + $0x1bf0] sm:$0xff]
  %v912 = vld [vmem:[%s1 + $0x1bf8] sm:$0xff]
  %v913 = vld [vmem:[%s1 + $0x1c00] sm:$0xff]
  %v914 = vld [vmem:[%s1 + $0x1c08] sm:$0xff]
  %v915 = vld [vmem:[%s1 + $0x1c10] sm:$0xff]
  %v916 = vld [vmem:[%s1 + $0x1c18] sm:$0xff]
  %v917 = vld [vmem:[%s1 + $0x1c20] sm:$0xff]
  %v918 = vld [vmem:[%s1 + $0x1c28] sm:$0xff]
  %v919 = vld [vmem:[%s1 + $0x1c30] sm:$0xff]
  %v920 = vld [vmem:[%s1 + $0x1c38] sm:$0xff]
  %v921 = vld [vmem:[%s1 + $0x1c40] sm:$0xff]
  %v922 = vld [vmem:[%s1 + $0x1c48] sm:$0xff]
  %v923 = vld [vmem:[%s1 + $0x1c50] sm:$0xff]
  %v924 = vld [vmem:[%s1 + $0x1c58] sm:$0xff]
  %v925 = vld [vmem:[%s1 + $0x1c60] sm:$0xff]
  %v926 = vld [vmem:[%s1 + $0x1c68] sm:$0xff]
  %v927 = vld [vmem:[%s1 + $0x1c70] sm:$0xff]
  %v928 = vld [vmem:[%s1 + $0x1c78] sm:$0xff]
  %v929 = vld [vmem:[%s1 + $0x1c80] sm:$0xff]
  %v930 = vld [vmem:[%s1 + $0x1c88] sm:$0xff]
  %v931 = vld [vmem:[%s1 + $0x1c90] sm:$0xff]
  %v932 = vld [vmem:[%s1 + $0x1c98] sm:$0xff]
  %v933 = vld [vmem:[%s1 + $0x1ca0] sm:$0xff]
  %v934 = vld [vmem:[%s1 + $0x1ca8] sm:$0xff]
  %v935 = vld [vmem:[%s1 + $0x1cb0] sm:$0xff]
  %v936 = vld [vmem:[%s1 + $0x1cb8] sm:$0xff]
  %v937 = vld [vmem:[%s1 + $0x1cc0] sm:$0xff]
  %v938 = vld [vmem:[%s1 + $0x1cc8] sm:$0xff]
  %v939 = vld [vmem:[%s1 + $0x1cd0] sm:$0xff]
  %v940 = vld [vmem:[%s1 + $0x1cd8] sm:$0xff]
  %v941 = vld [vmem:[%s1 + $0x1ce0] sm:$0xff]
  %v942 = vld [vmem:[%s1 + $0x1ce8] sm:$0xff]
  %v943 = vld [vmem:[%s1 + $0x1cf0] sm:$0xff]
  %v944 = vld [vmem:[%s1 + $0x1cf8] sm:$0xff]
  %v945 = vld [vmem:[%s1 + $0x1d00] sm:$0xff]
  %v946 = vld [vmem:[%s1 + $0x1d08] sm:$0xff]
  %v947 = vld [vmem:[%s1 + $0x1d10] sm:$0xff]
  %v948 = vld [vmem:[%s1 + $0x1d18] sm:$0xff]
  %v949 = vld [vmem:[%s1 + $0x1d20] sm:$0xff]
  %v950 = vld [vmem:[%s1 + $0x1d28] sm:$0xff]
  %v951 = vld [vmem:[%s1 + $0x1d30] sm:$0xff]
  %v952 = vld [vmem:[%s1 + $0x1d38] sm:$0xff]
  %v953 = vld [vmem:[%s1 + $0x1d40] sm:$0xff]
  %v954 = vld [vmem:[%s1 + $0x1d48] sm:$0xff]
  %v955 = vld [vmem:[%s1 + $0x1d50] sm:$0xff]
  %v956 = vld [vmem:[%s1 + $0x1d58] sm:$0xff]
  %v957 = vld [vmem:[%s1 + $0x1d60] sm:$0xff]
  %v958 = vld [vmem:[%s1 + $0x1d68] sm:$0xff]
  %v959 = vld [vmem:[%s1 + $0x1d70] sm:$0xff]
  %v960 = vld [vmem:[%s1 + $0x1d78] sm:$0xff]
  %v961 = vld [vmem:[%s1 + $0x1d80] sm:$0xff]
  %v962 = vld [vmem:[%s1 + $0x1d88] sm:$0xff]
  %v963 = vld [vmem:[%s1 + $0x1d90] sm:$0xff]
  %v964 = vld [vmem:[%s1 + $0x1d98] sm:$0xff]
  %v965 = vld [vmem:[%s1 + $0x1da0] sm:$0xff]
  %v966 = vld [vmem:[%s1 + $0x1da8] sm:$0xff]
  %v967 = vld [vmem:[%s1 + $0x1db0] sm:$0xff]
  %v968 = vld [vmem:[%s1 + $0x1db8] sm:$0xff]
  %v969 = vld [vmem:[%s1 + $0x1dc0] sm:$0xff]
  %v970 = vld [vmem:[%s1 + $0x1dc8] sm:$0xff]
  %v971 = vld [vmem:[%s1 + $0x1dd0] sm:$0xff]
  %v972 = vld [vmem:[%s1 + $0x1dd8] sm:$0xff]
  %v973 = vld [vmem:[%s1 + $0x1de0] sm:$0xff]
  %v974 = vld [vmem:[%s1 + $0x1de8] sm:$0xff]
  %v975 = vld [vmem:[%s1 + $0x1df0] sm:$0xff]
  %v976 = vld [vmem:[%s1 + $0x1df8] sm:$0xff]
  %v977 = vld [vmem:[%s1 + $0x1e00] sm:$0xff]
  %v978 = vld [vmem:[%s1 + $0x1e08] sm:$0xff]
  %v979 = vld [vmem:[%s1 + $0x1e10] sm:$0xff]
  %v980 = vld [vmem:[%s1 + $0x1e18] sm:$0xff]
  %v981 = vld [vmem:[%s1 + $0x1e20] sm:$0xff]
  %v982 = vld [vmem:[%s1 + $0x1e28] sm:$0xff]
  %v983 = vld [vmem:[%s1 + $0x1e30] sm:$0xff]
  %v984 = vld [vmem:[%s1 + $0x1e38] sm:$0xff]
  %v985 = vld [vmem:[%s1 + $0x1e40] sm:$0xff]
  %v986 = vld [vmem:[%s1 + $0x1e48] sm:$0xff]
  %v987 = vld [vmem:[%s1 + $0x1e50] sm:$0xff]
  %v988 = vld [vmem:[%s1 + $0x1e58] sm:$0xff]
  %v989 = vld [vmem:[%s1 + $0x1e60] sm:$0xff]
  %v990 = vld [vmem:[%s1 + $0x1e68] sm:$0xff]
  %v991 = vld [vmem:[%s1 + $0x1e70] sm:$0xff]
  %v992 = vld [vmem:[%s1 + $0x1e78] sm:$0xff]
  %v993 = vld [vmem:[%s1 + $0x1e80] sm:$0xff]
  %v994 = vld [vmem:[%s1 + $0x1e88] sm:$0xff]
  %v995 = vld [vmem:[%s1 + $0x1e90] sm:$0xff]
  %v996 = vld [vmem:[%s1 + $0x1e98] sm:$0xff]
  %v997 = vld [vmem:[%s1 + $0x1ea0] sm:$0xff]
  %v998 = vld [vmem:[%s1 + $0x1ea8] sm:$0xff]
  %v999 = vld [vmem:[%s1 + $0x1eb0] sm:$0xff]
  %v1000 = vld [vmem:[%s1 + $0x1eb8] sm:$0xff]
  %v1001 = vld [vmem:[%s1 + $0x1ec0] sm:$0xff]
  %v1002 = vld [vmem:[%s1 + $0x1ec8] sm:$0xff]
  %v1003 = vld [vmem:[%s1 + $0x1ed0] sm:$0xff]
  %v1004 = vld [vmem:[%s1 + $0x1ed8] sm:$0xff]
  %v1005 = vld [vmem:[%s1 + $0x1ee0] sm:$0xff]
  %v1006 = vld [vmem:[%s1 + $0x1ee8] sm:$0xff]
  %v1007 = vld [vmem:[%s1 + $0x1ef0] sm:$0xff]
  %v1008 = vld [vmem:[%s1 + $0x1ef8] sm:$0xff]
  %v1009 = vld [vmem:[%s1 + $0x1f00] sm:$0xff]
  %v1010 = vld [vmem:[%s1 + $0x1f08] sm:$0xff]
  %v1011 = vld [vmem:[%s1 + $0x1f10] sm:$0xff]
  %v1012 = vld [vmem:[%s1 + $0x1f18] sm:$0xff]
  %v1013 = vld [vmem:[%s1 + $0x1f20] sm:$0xff]
  %v1014 = vld [vmem:[%s1 + $0x1f28] sm:$0xff]
  %v1015 = vld [vmem:[%s1 + $0x1f30] sm:$0xff]
  %v1016 = vld [vmem:[%s1 + $0x1f38] sm:$0xff]
  %v1017 = vld [vmem:[%s1 + $0x1f40] sm:$0xff]
  %v1018 = vld [vmem:[%s1 + $0x1f48] sm:$0xff]
  %v1019 = vld [vmem:[%s1 + $0x1f50] sm:$0xff]
  %v1020 = vld [vmem:[%s1 + $0x1f58] sm:$0xff]
  %v1021 = vld [vmem:[%s1 + $0x1f60] sm:$0xff]
  %v1022 = vld [vmem:[%s1 + $0x1f68] sm:$0xff]
  %v1023 = vld [vmem:[%s1 + $0x1f70] sm:$0xff]
  %v1024 = vld [vmem:[%s1 + $0x1f78] sm:$0xff]
  %v1025 = vld [vmem:[%s1 + $0x1f80] sm:$0xff]
  %v1026 = vld [vmem:[%s1 + $0x1f88] sm:$0xff]
  %v1027 = vld [vmem:[%s1 + $0x1f90] sm:$0xff]
  %v1028 = vld [vmem:[%s1 + $0x1f98] sm:$0xff]
  %v1029 = vld [vmem:[%s1 + $0x1fa0] sm:$0xff]
  %v1030 = vld [vmem:[%s1 + $0x1fa8] sm:$0xff]
  %v1031 = vld [vmem:[%s1 + $0x1fb0] sm:$0xff]
  %v1032 = vld [vmem:[%s1 + $0x1fb8] sm:$0xff]
  %v1033 = vld [vmem:[%s1 + $0x1fc0] sm:$0xff]
  %v1034 = vld [vmem:[%s1 + $0x1fc8] sm:$0xff]
  %v1035 = vld [vmem:[%s1 + $0x1fd0] sm:$0xff]
  %v1036 = vld [vmem:[%s1 + $0x1fd8] sm:$0xff]
  %v1037 = vld [vmem:[%s1 + $0x1fe0] sm:$0xff]
  %v1038 = vld [vmem:[%s1 + $0x1fe8] sm:$0xff]
  %v1039 = vld [vmem:[%s1 + $0x1ff0] sm:$0xff]
  %v1040 = vld [vmem:[%s1 + $0x1ff8] sm:$0xff]
  %v1041 = vld [vmem:[%s1 + $0x2000] sm:$0xff]
  %v1042 = vld [vmem:[%s1 + $0x2008] sm:$0xff]
  %v1043 = vld [vmem:[%s1 + $0x2010] sm:$0xff]
  %v1044 = vld [vmem:[%s1 + $0x2018] sm:$0xff]
  %v1045 = vld [vmem:[%s1 + $0x2020] sm:$0xff]
  %v1046 = vld [vmem:[%s1 + $0x2028] sm:$0xff]
  %v1047 = vld [vmem:[%s1 + $0x2030] sm:$0xff]
  %v1048 = vld [vmem:[%s1 + $0x2038] sm:$0xff]
  %v1049 = vld [vmem:[%s1 + $0x2040] sm:$0xff]
  %v1050 = vld [vmem:[%s1 + $0x2048] sm:$0xff]
  %v1051 = vld [vmem:[%s1 + $0x2050] sm:$0xff]
  %v1052 = vld [vmem:[%s1 + $0x2058] sm:$0xff]
  %v1053 = vld [vmem:[%s1 + $0x2060] sm:$0xff]
  %v1054 = vld [vmem:[%s1 + $0x2068] sm:$0xff]
  %v1055 = vld [vmem:[%s1 + $0x2070] sm:$0xff]
  %v1056 = vld [vmem:[%s1 + $0x2078] sm:$0xff]
  %v1057 = vld [vmem:[%s1 + $0x2080] sm:$0xff]
  %v1058 = vld [vmem:[%s1 + $0x2088] sm:$0xff]
  %v1059 = vld [vmem:[%s1 + $0x2090] sm:$0xff]
  %v1060 = vld [vmem:[%s1 + $0x2098] sm:$0xff]
  %v1061 = vld [vmem:[%s1 + $0x20a0] sm:$0xff]
  %v1062 = vld [vmem:[%s1 + $0x20a8] sm:$0xff]
  %v1063 = vld [vmem:[%s1 + $0x20b0] sm:$0xff]
  %v1064 = vld [vmem:[%s1 + $0x20b8] sm:$0xff]
  %v1065 = vld [vmem:[%s1 + $0x20c0] sm:$0xff]
  %v1066 = vld [vmem:[%s1 + $0x20c8] sm:$0xff]
  %v1067 = vld [vmem:[%s1 + $0x20d0] sm:$0xff]
  %v1068 = vld [vmem:[%s1 + $0x20d8] sm:$0xff]
  %v1069 = vld [vmem:[%s1 + $0x20e0] sm:$0xff]
  %v1070 = vld [vmem:[%s1 + $0x20e8] sm:$0xff]
  %v1071 = vld [vmem:[%s1 + $0x20f0] sm:$0xff]
  %v1072 = vld [vmem:[%s1 + $0x20f8] sm:$0xff]
  %v1073 = vld [vmem:[%s1 + $0x2100] sm:$0xff]
  %v1074 = vld [vmem:[%s1 + $0x2108] sm:$0xff]
  %v1075 = vld [vmem:[%s1 + $0x2110] sm:$0xff]
  %v1076 = vld [vmem:[%s1 + $0x2118] sm:$0xff]
  %v1077 = vld [vmem:[%s1 + $0x2120] sm:$0xff]
  %v1078 = vld [vmem:[%s1 + $0x2128] sm:$0xff]
  %v1079 = vld [vmem:[%s1 + $0x2130] sm:$0xff]
  %v1080 = vld [vmem:[%s1 + $0x2138] sm:$0xff]
  %v1081 = vld [vmem:[%s1 + $0x2140] sm:$0xff]
  %v1082 = vld [vmem:[%s1 + $0x2148] sm:$0xff]
  %v1083 = vld [vmem:[%s1 + $0x2150] sm:$0xff]
  %v1084 = vld [vmem:[%s1 + $0x2158] sm:$0xff]
  %v1085 = vld [vmem:[%s1 + $0x2160] sm:$0xff]
  %v1086 = vld [vmem:[%s1 + $0x2168] sm:$0xff]
  %v1087 = vld [vmem:[%s1 + $0x2170] sm:$0xff]
  %v1088 = vld [vmem:[%s1 + $0x2178] sm:$0xff]
  %v1089 = vld [vmem:[%s1 + $0x2180] sm:$0xff]
  %v1090 = vld [vmem:[%s1 + $0x2188] sm:$0xff]
  %v1091 = vld [vmem:[%s1 + $0x2190] sm:$0xff]
  %v1092 = vld [vmem:[%s1 + $0x2198] sm:$0xff]
  %v1093 = vld [vmem:[%s1 + $0x21a0] sm:$0xff]
  %v1094 = vld [vmem:[%s1 + $0x21a8] sm:$0xff]
  %v1095 = vld [vmem:[%s1 + $0x21b0] sm:$0xff]
  %v1096 = vld [vmem:[%s1 + $0x21b8] sm:$0xff]
  %v1097 = vld [vmem:[%s1 + $0x21c0] sm:$0xff]
  %v1098 = vld [vmem:[%s1 + $0x21c8] sm:$0xff]
  %v1099 = vld [vmem:[%s1 + $0x21d0] sm:$0xff]
  %v1100 = vld [vmem:[%s1 + $0x21d8] sm:$0xff]
  %v1101 = vld [vmem:[%s1 + $0x21e0] sm:$0xff]
  %v1102 = vld [vmem:[%s1 + $0x21e8] sm:$0xff]
  %v1103 = vld [vmem:[%s1 + $0x21f0] sm:$0xff]
  %v1104 = vld [vmem:[%s1 + $0x21f8] sm:$0xff]
  %v1105 = vld [vmem:[%s1 + $0x2200] sm:$0xff]
  %v1106 = vld [vmem:[%s1 + $0x2208] sm:$0xff]
  %v1107 = vld [vmem:[%s1 + $0x2210] sm:$0xff]
  %v1108 = vld [vmem:[%s1 + $0x2218] sm:$0xff]
  %v1109 = vld [vmem:[%s1 + $0x2220] sm:$0xff]
  %v1110 = vld [vmem:[%s1 + $0x2228] sm:$0xff]
  %v1111 = vld [vmem:[%s1 + $0x2230] sm:$0xff]
  %v1112 = vld [vmem:[%s1 + $0x2238] sm:$0xff]
  %v1113 = vld [vmem:[%s1 + $0x2240] sm:$0xff]
  %v1114 = vld [vmem:[%s1 + $0x2248] sm:$0xff]
  %v1115 = vld [vmem:[%s1 + $0x2250] sm:$0xff]
  %v1116 = vld [vmem:[%s1 + $0x2258] sm:$0xff]
  %v1117 = vld [vmem:[%s1 + $0x2260] sm:$0xff]
  %v1118 = vld [vmem:[%s1 + $0x2268] sm:$0xff]
  %v1119 = vld [vmem:[%s1 + $0x2270] sm:$0xff]
  %v1120 = vld [vmem:[%s1 + $0x2278] sm:$0xff]
  %v1121 = vld [vmem:[%s1 + $0x2280] sm:$0xff]
  %v1122 = vld [vmem:[%s1 + $0x2288] sm:$0xff]
  %v1123 = vld [vmem:[%s1 + $0x2290] sm:$0xff]
  %v1124 = vld [vmem:[%s1 + $0x2298] sm:$0xff]
  %v1125 = vld [vmem:[%s1 + $0x22a0] sm:$0xff]
  %v1126 = vld [vmem:[%s1 + $0x22a8] sm:$0xff]
  %v1127 = vld [vmem:[%s1 + $0x22b0] sm:$0xff]
  %v1128 = vld [vmem:[%s1 + $0x22b8] sm:$0xff]
  %v1129 = vld [vmem:[%s1 + $0x22c0] sm:$0xff]
  %v1130 = vld [vmem:[%s1 + $0x22c8] sm:$0xff]
  %v1131 = vld [vmem:[%s1 + $0x22d0] sm:$0xff]
  %v1132 = vld [vmem:[%s1 + $0x22d8] sm:$0xff]
  %v1133 = vld [vmem:[%s1 + $0x22e0] sm:$0xff]
  %v1134 = vld [vmem:[%s1 + $0x22e8] sm:$0xff]
  %v1135 = vld [vmem:[%s1 + $0x22f0] sm:$0xff]
  %v1136 = vld [vmem:[%s1 + $0x22f8] sm:$0xff]
  %v1137 = vld [vmem:[%s1 + $0x2300] sm:$0xff]
  %v1138 = vld [vmem:[%s1 + $0x2308] sm:$0xff]
  %v1139 = vld [vmem:[%s1 + $0x2310] sm:$0xff]
  %v1140 = vld [vmem:[%s1 + $0x2318] sm:$0xff]
  %v1141 = vld [vmem:[%s1 + $0x2320] sm:$0xff]
  %v1142 = vld [vmem:[%s1 + $0x2328] sm:$0xff]
  %v1143 = vld [vmem:[%s1 + $0x2330] sm:$0xff]
  %v1144 = vld [vmem:[%s1 + $0x2338] sm:$0xff]
  %v1145 = vld [vmem:[%s1 + $0x2340] sm:$0xff]
  %v1146 = vld [vmem:[%s1 + $0x2348] sm:$0xff]
  %v1147 = vld [vmem:[%s1 + $0x2350] sm:$0xff]
  %v1148 = vld [vmem:[%s1 + $0x2358] sm:$0xff]
  %v1149 = vld [vmem:[%s1 + $0x2360] sm:$0xff]
  %v1150 = vld [vmem:[%s1 + $0x2368] sm:$0xff]
  %v1151 = vld [vmem:[%s1 + $0x2370] sm:$0xff]
  %v1152 = vld [vmem:[%s1 + $0x2378] sm:$0xff]
  %v1153 = vld [vmem:[%s1 + $0x2380] sm:$0xff]
  %v1154 = vld [vmem:[%s1 + $0x2388] sm:$0xff]
  %v1155 = vld [vmem:[%s1 + $0x2390] sm:$0xff]
  %v1156 = vld [vmem:[%s1 + $0x2398] sm:$0xff]
  %v1157 = vld [vmem:[%s1 + $0x23a0] sm:$0xff]
  %v1158 = vld [vmem:[%s1 + $0x23a8] sm:$0xff]
  %v1159 = vld [vmem:[%s1 + $0x23b0] sm:$0xff]
  %v1160 = vld [vmem:[%s1 + $0x23b8] sm:$0xff]
  %v1161 = vld [vmem:[%s1 + $0x23c0] sm:$0xff]
  %v1162 = vld [vmem:[%s1 + $0x23c8] sm:$0xff]
  %v1163 = vld [vmem:[%s1 + $0x23d0] sm:$0xff]
  %v1164 = vld [vmem:[%s1 + $0x23d8] sm:$0xff]
  %v1165 = vld [vmem:[%s1 + $0x23e0] sm:$0xff]
  %v1166 = vld [vmem:[%s1 + $0x23e8] sm:$0xff]
  %v1167 = vld [vmem:[%s1 + $0x23f0] sm:$0xff]
  %v1168 = vld [vmem:[%s1 + $0x23f8] sm:$0xff]
  %v1169 = vld [vmem:[%s1 + $0x2400] sm:$0xff]
  %v1170 = vld [vmem:[%s1 + $0x2408] sm:$0xff]
  %v1171 = vld [vmem:[%s1 + $0x2410] sm:$0xff]
  %v1172 = vld [vmem:[%s1 + $0x2418] sm:$0xff]
  %v1173 = vld [vmem:[%s1 + $0x2420] sm:$0xff]
  %v1174 = vld [vmem:[%s1 + $0x2428] sm:$0xff]
  %v1175 = vld [vmem:[%s1 + $0x2430] sm:$0xff]
  %v1176 = vld [vmem:[%s1 + $0x2438] sm:$0xff]
  %v1177 = vld [vmem:[%s1 + $0x2440] sm:$0xff]
  %v1178 = vld [vmem:[%s1 + $0x2448] sm:$0xff]
  %v1179 = vld [vmem:[%s1 + $0x2450] sm:$0xff]
  %v1180 = vld [vmem:[%s1 + $0x2458] sm:$0xff]
  %v1181 = vld [vmem:[%s1 + $0x2460] sm:$0xff]
  %v1182 = vld [vmem:[%s1 + $0x2468] sm:$0xff]
  %v1183 = vld [vmem:[%s1 + $0x2470] sm:$0xff]
  %v1184 = vld [vmem:[%s1 + $0x2478] sm:$0xff]
  %v1185 = vld [vmem:[%s1 + $0x2480] sm:$0xff]
  %v1186 = vld [vmem:[%s1 + $0x2488] sm:$0xff]
  %v1187 = vld [vmem:[%s1 + $0x2490] sm:$0xff]
  %v1188 = vld [vmem:[%s1 + $0x2498] sm:$0xff]
  %v1189 = vld [vmem:[%s1 + $0x24a0] sm:$0xff]
  %v1190 = vld [vmem:[%s1 + $0x24a8] sm:$0xff]
  %v1191 = vld [vmem:[%s1 + $0x24b0] sm:$0xff]
  %v1192 = vld [vmem:[%s1 + $0x24b8] sm:$0xff]
  %v1193 = vld [vmem:[%s1 + $0x24c0] sm:$0xff]
  %v1194 = vld [vmem:[%s1 + $0x24c8] sm:$0xff]
  %v1195 = vld [vmem:[%s1 + $0x24d0] sm:$0xff]
  %v1196 = vld [vmem:[%s1 + $0x24d8] sm:$0xff]
  %v1197 = vld [vmem:[%s1 + $0x24e0] sm:$0xff]
  %v1198 = vld [vmem:[%s1 + $0x24e8] sm:$0xff]
  %v1199 = vld [vmem:[%s1 + $0x24f0] sm:$0xff]
  %v1200 = vld [vmem:[%s1 + $0x24f8] sm:$0xff]
  %v1201 = vld [vmem:[%s1 + $0x2500] sm:$0xff]
  %v1202 = vld [vmem:[%s1 + $0x2508] sm:$0xff]
  %v1203 = vld [vmem:[%s1 + $0x2510] sm:$0xff]
  %v1204 = vld [vmem:[%s1 + $0x2518] sm:$0xff]
  %v1205 = vld [vmem:[%s1 + $0x2520] sm:$0xff]
  %v1206 = vld [vmem:[%s1 + $0x2528] sm:$0xff]
  %v1207 = vld [vmem:[%s1 + $0x2530] sm:$0xff]
  %v1208 = vld [vmem:[%s1 + $0x2538] sm:$0xff]
  %v1209 = vld [vmem:[%s1 + $0x2540] sm:$0xff]
  %v1210 = vld [vmem:[%s1 + $0x2548] sm:$0xff]
  %v1211 = vld [vmem:[%s1 + $0x2550] sm:$0xff]
  %v1212 = vld [vmem:[%s1 + $0x2558] sm:$0xff]
  %v1213 = vld [vmem:[%s1 + $0x2560] sm:$0xff]
  %v1214 = vld [vmem:[%s1 + $0x2568] sm:$0xff]
  %v1215 = vld [vmem:[%s1 + $0x2570] sm:$0xff]
  %v1216 = vld [vmem:[%s1 + $0x2578] sm:$0xff]
  %v1217 = vld [vmem:[%s1 + $0x2580] sm:$0xff]
  %v1218 = vld [vmem:[%s1 + $0x2588] sm:$0xff]
  %v1219 = vld [vmem:[%s1 + $0x2590] sm:$0xff]
  %v1220 = vld [vmem:[%s1 + $0x2598] sm:$0xff]
  %v1221 = vld [vmem:[%s1 + $0x25a0] sm:$0xff]
  %v1222 = vld [vmem:[%s1 + $0x25a8] sm:$0xff]
  %v1223 = vld [vmem:[%s1 + $0x25b0] sm:$0xff]
  %v1224 = vld [vmem:[%s1 + $0x25b8] sm:$0xff]
  %v1225 = vld [vmem:[%s1 + $0x25c0] sm:$0xff]
  %v1226 = vld [vmem:[%s1 + $0x25c8] sm:$0xff]
  %v1227 = vld [vmem:[%s1 + $0x25d0] sm:$0xff]
  %v1228 = vld [vmem:[%s1 + $0x25d8] sm:$0xff]
  %v1229 = vld [vmem:[%s1 + $0x25e0] sm:$0xff]
  %v1230 = vld [vmem:[%s1 + $0x25e8] sm:$0xff]
  %v1231 = vld [vmem:[%s1 + $0x25f0] sm:$0xff]
  %v1232 = vld [vmem:[%s1 + $0x25f8] sm:$0xff]
  %v1233 = vld [vmem:[%s1 + $0x2600] sm:$0xff]
  %v1234 = vld [vmem:[%s1 + $0x2608] sm:$0xff]
  %v1235 = vld [vmem:[%s1 + $0x2610] sm:$0xff]
  %v1236 = vld [vmem:[%s1 + $0x2618] sm:$0xff]
  %v1237 = vld [vmem:[%s1 + $0x2620] sm:$0xff]
  %v1238 = vld [vmem:[%s1 + $0x2628] sm:$0xff]
  %v1239 = vld [vmem:[%s1 + $0x2630] sm:$0xff]
  %v1240 = vld [vmem:[%s1 + $0x2638] sm:$0xff]
  %v1241 = vld [vmem:[%s1 + $0x2640] sm:$0xff]
  %v1242 = vld [vmem:[%s1 + $0x2648] sm:$0xff]
  %v1243 = vld [vmem:[%s1 + $0x2650] sm:$0xff]
  %v1244 = vld [vmem:[%s1 + $0x2658] sm:$0xff]
  %v1245 = vld [vmem:[%s1 + $0x2660] sm:$0xff]
  %v1246 = vld [vmem:[%s1 + $0x2668] sm:$0xff]
  %v1247 = vld [vmem:[%s1 + $0x2670] sm:$0xff]
  %v1248 = vld [vmem:[%s1 + $0x2678] sm:$0xff]
  %v1249 = vld [vmem:[%s1 + $0x2680] sm:$0xff]
  %v1250 = vld [vmem:[%s1 + $0x2688] sm:$0xff]
  %v1251 = vld [vmem:[%s1 + $0x2690] sm:$0xff]
  %v1252 = vld [vmem:[%s1 + $0x2698] sm:$0xff]
  %v1253 = vld [vmem:[%s1 + $0x26a0] sm:$0xff]
  %v1254 = vld [vmem:[%s1 + $0x26a8] sm:$0xff]
  %v1255 = vld [vmem:[%s1 + $0x26b0] sm:$0xff]
  %v1256 = vld [vmem:[%s1 + $0x26b8] sm:$0xff]
  %v1257 = vld [vmem:[%s1 + $0x26c0] sm:$0xff]
  %v1258 = vld [vmem:[%s1 + $0x26c8] sm:$0xff]
  %v1259 = vld [vmem:[%s1 + $0x26d0] sm:$0xff]
  %v1260 = vld [vmem:[%s1 + $0x26d8] sm:$0xff]
  %v1261 = vld [vmem:[%s1 + $0x26e0] sm:$0xff]
  %v1262 = vld [vmem:[%s1 + $0x26e8] sm:$0xff]
  %v1263 = vld [vmem:[%s1 + $0x26f0] sm:$0xff]
  %v1264 = vld [vmem:[%s1 + $0x26f8] sm:$0xff]
  %v1265 = vld [vmem:[%s1 + $0x2700] sm:$0xff]
  %v1266 = vld [vmem:[%s1 + $0x2708] sm:$0xff]
  %v1267 = vld [vmem:[%s1 + $0x2710] sm:$0xff]
  %v1268 = vld [vmem:[%s1 + $0x2718] sm:$0xff]
  %v1269 = vld [vmem:[%s1 + $0x2720] sm:$0xff]
  %v1270 = vld [vmem:[%s1 + $0x2728] sm:$0xff]
  %v1271 = vld [vmem:[%s1 + $0x2730] sm:$0xff]
  %v1272 = vld [vmem:[%s1 + $0x2738] sm:$0xff]
  %v1273 = vld [vmem:[%s1 + $0x2740] sm:$0xff]
  %v1274 = vld [vmem:[%s1 + $0x2748] sm:$0xff]
  %v1275 = vld [vmem:[%s1 + $0x2750] sm:$0xff]
  %v1276 = vld [vmem:[%s1 + $0x2758] sm:$0xff]
  %v1277 = vld [vmem:[%s1 + $0x2760] sm:$0xff]
  %v1278 = vld [vmem:[%s1 + $0x2768] sm:$0xff]
  %v1279 = vld [vmem:[%s1 + $0x2770] sm:$0xff]
  %v1280 = vld [vmem:[%s1 + $0x2778] sm:$0xff]
  %v1281 = vld [vmem:[%s1 + $0x2780] sm:$0xff]
  %v1282 = vld [vmem:[%s1 + $0x2788] sm:$0xff]
  %v1283 = vld [vmem:[%s1 + $0x2790] sm:$0xff]
  %v1284 = vld [vmem:[%s1 + $0x2798] sm:$0xff]
  %v1285 = vld [vmem:[%s1 + $0x27a0] sm:$0xff]
  %v1286 = vld [vmem:[%s1 + $0x27a8] sm:$0xff]
  %v1287 = vld [vmem:[%s1 + $0x27b0] sm:$0xff]
  %v1288 = vld [vmem:[%s1 + $0x27b8] sm:$0xff]
  %v1289 = vld [vmem:[%s1 + $0x27c0] sm:$0xff]
  %v1290 = vld [vmem:[%s1 + $0x27c8] sm:$0xff]
  %v1291 = vld [vmem:[#allocation2] sm:$0x1]
  %1293 = vset.pattern.permute.xlu0 0
  %1294 = vperm.xlu0 %1293, %v1291
  %v1295 = vpop.permute.xlu0 %1294
  %v1297 = vperm.slane %v1295, 0
  %v1299 = vperm.slane %v16, 0
  %v1300 = vperm.slane %v16, 1
  %v1301 = vperm.slane %v16, 2
  %v1302 = vperm.slane %v16, 3
  %v1303 = vperm.slane %v16, 4
  %v1304 = vperm.slane %v16, 5
  %v1305 = vperm.slane %v16, 6
  %vm1312 = vcmask 130048
  %v1313 = vsel %vm1312, %v1305, 0
  %1315 = vmatpush.msra.mxu0 %v212
  %1316 = vmatpush.msra.mxu0 %v199
  %1317 = vmatpush.msra.mxu0 %v186
  %1318 = vmatpush.msra.mxu0 %v173
  %1319 = vmatpush.msra.mxu0 %v160
  %1320 = vmatpush.msra.mxu0 %v147
  %1321 = vmatpush.msra.mxu0 %v134
  %1322 = vmatpush.msra.mxu0 %v121
  %1323 = vmatpush.msra.mxu0 %v108
  %1324 = vmatpush.msra.mxu0 %v95
  %1325 = vmatpush.msra.mxu0 %v82
  %1326 = vmatpush.msra.mxu0 %v69
  %1327 = vmatpush.msra.mxu0 %v56
  %1328 = vmatpush.msra.mxu0 %v43
  %1329 = vmatpush.msra.mxu0 %v30
  %1330 = vmatpush.msra.mxu0 %v17
  %1331 = vmatmul.f32.gmra.mxu0 %v1299
  %v1332 = vpop.f32.mrf.mxu0
  %v1333 = vadd.f32 %v1297, %v1332
  %1334 = vdwg.mxu0
  %1335 = vmatpush.msra.mxu0 %v420
  %1336 = vmatpush.msra.mxu0 %v407
  %1337 = vmatpush.msra.mxu0 %v394
  %1338 = vmatpush.msra.mxu0 %v381
  %1339 = vmatpush.msra.mxu0 %v368
  %1340 = vmatpush.msra.mxu0 %v355
  %1341 = vmatpush.msra.mxu0 %v342
  %1342 = vmatpush.msra.mxu0 %v329
  %1343 = vmatpush.msra.mxu0 %v316
  %1344 = vmatpush.msra.mxu0 %v303
  %1345 = vmatpush.msra.mxu0 %v290
  %1346 = vmatpush.msra.mxu0 %v277
  %1347 = vmatpush.msra.mxu0 %v264
  %1348 = vmatpush.msra.mxu0 %v251
  %1349 = vmatpush.msra.mxu0 %v238
  %1350 = vmatpush.msra.mxu0 %v225
  %1351 = vmatmul.f32.gmra.mxu0 %v1300
  %v1352 = vpop.f32.mrf.mxu0
  %v1353 = vadd.f32 %v1333, %v1352
  %1354 = vdwg.mxu0
  %1355 = vmatpush.msra.mxu0 %v628
  %1356 = vmatpush.msra.mxu0 %v615
  %1357 = vmatpush.msra.mxu0 %v602
  %1358 = vmatpush.msra.mxu0 %v589
  %1359 = vmatpush.msra.mxu0 %v576
  %1360 = vmatpush.msra.mxu0 %v563
  %1361 = vmatpush.msra.mxu0 %v550
  %1362 = vmatpush.msra.mxu0 %v537
  %1363 = vmatpush.msra.mxu0 %v524
  %1364 = vmatpush.msra.mxu0 %v511
  %1365 = vmatpush.msra.mxu0 %v498
  %1366 = vmatpush.msra.mxu0 %v485
  %1367 = vmatpush.msra.mxu0 %v472
  %1368 = vmatpush.msra.mxu0 %v459
  %1369 = vmatpush.msra.mxu0 %v446
  %1370 = vmatpush.msra.mxu0 %v433
  %1371 = vmatmul.f32.gmra.mxu0 %v1301
  %v1372 = vpop.f32.mrf.mxu0
  %v1373 = vadd.f32 %v1353, %v1372
  %1374 = vdwg.mxu0
  %1375 = vmatpush.msra.mxu0 %v836
  %1376 = vmatpush.msra.mxu0 %v823
  %1377 = vmatpush.msra.mxu0 %v810
  %1378 = vmatpush.msra.mxu0 %v797
  %1379 = vmatpush.msra.mxu0 %v784
  %1380 = vmatpush.msra.mxu0 %v771
  %1381 = vmatpush.msra.mxu0 %v758
  %1382 = vmatpush.msra.mxu0 %v745
  %1383 = vmatpush.msra.mxu0 %v732
  %1384 = vmatpush.msra.mxu0 %v719
  %1385 = vmatpush.msra.mxu0 %v706
  %1386 = vmatpush.msra.mxu0 %v693
  %1387 = vmatpush.msra.mxu0 %v680
  %1388 = vmatpush.msra.mxu0 %v667
  %1389 = vmatpush.msra.mxu0 %v654
  %1390 = vmatpush.msra.mxu0 %v641
  %1391 = vmatmul.f32.gmra.mxu0 %v1302
  %v1392 = vpop.f32.mrf.mxu0
  %v1393 = vadd.f32 %v1373, %v1392
  %1394 = vdwg.mxu0
  %1395 = vmatpush.msra.mxu0 %v1044
  %1396 = vmatpush.msra.mxu0 %v1031
  %1397 = vmatpush.msra.mxu0 %v1018
  %1398 = vmatpush.msra.mxu0 %v1005
  %1399 = vmatpush.msra.mxu0 %v992
  %1400 = vmatpush.msra.mxu0 %v979
  %1401 = vmatpush.msra.mxu0 %v966
  %1402 = vmatpush.msra.mxu0 %v953
  %1403 = vmatpush.msra.mxu0 %v940
  %1404 = vmatpush.msra.mxu0 %v927
  %1405 = vmatpush.msra.mxu0 %v914
  %1406 = vmatpush.msra.mxu0 %v901
  %1407 = vmatpush.msra.mxu0 %v888
  %1408 = vmatpush.msra.mxu0 %v875
  %1409 = vmatpush.msra.mxu0 %v862
  %1410 = vmatpush.msra.mxu0 %v849
  %1411 = vmatmul.f32.gmra.mxu0 %v1303
  %v1412 = vpop.f32.mrf.mxu0
  %v1413 = vadd.f32 %v1393, %v1412
  %1414 = vdwg.mxu0
  %1415 = vmatpush.msra.mxu0 %v1252
  %1416 = vmatpush.msra.mxu0 %v1239
  %1417 = vmatpush.msra.mxu0 %v1226
  %1418 = vmatpush.msra.mxu0 %v1213
  %1419 = vmatpush.msra.mxu0 %v1200
  %1420 = vmatpush.msra.mxu0 %v1187
  %1421 = vmatpush.msra.mxu0 %v1174
  %1422 = vmatpush.msra.mxu0 %v1161
  %1423 = vmatpush.msra.mxu0 %v1148
  %1424 = vmatpush.msra.mxu0 %v1135
  %1425 = vmatpush.msra.mxu0 %v1122
  %1426 = vmatpush.msra.mxu0 %v1109
  %1427 = vmatpush.msra.mxu0 %v1096
  %1428 = vmatpush.msra.mxu0 %v1083
  %1429 = vmatpush.msra.mxu0 %v1070
  %1430 = vmatpush.msra.mxu0 %v1057
  %1431 = vmatmul.f32.gmra.mxu0 %v1304
  %v1432 = vpop.f32.mrf.mxu0
  %v1433 = vadd.f32 %v1413, %v1432
  %1434 = vdwg.mxu0
  %1435 = vmatpush.msra.mxu0 0.0
  %1436 = vmatpush.msra.mxu0 0.0
  %1437 = vmatpush.msra.mxu0 0.0
  %1438 = vmatpush.msra.mxu0 0.0
  %1439 = vmatpush.msra.mxu0 0.0
  %1440 = vmatpush.msra.mxu0 0.0
  %1441 = vmatpush.msra.mxu0 0.0
  %1442 = vmatpush.msra.mxu0 0.0
  %1443 = vmatpush.msra.mxu0 0.0
  %1444 = vmatpush.msra.mxu0 0.0
  %1445 = vmatpush.msra.mxu0 0.0
  %1446 = vmatpush.msra.mxu0 0.0
  %1447 = vmatpush.msra.mxu0 0.0
  %1448 = vmatpush.msra.mxu0 0.0
  %1449 = vmatpush.msra.mxu0 %v1278
  %1450 = vmatpush.msra.mxu0 %v1265
  %1451 = vmatmul.f32.gmra.mxu0 %v1313
  %v1452 = vpop.f32.mrf.mxu0
  %v1453 = vadd.f32 %v1433, %v1452
  %1454 = vdwg.mxu0
  %1455 = vmatpush.msra.mxu0 %v213
  %1456 = vmatpush.msra.mxu0 %v200
  %1457 = vmatpush.msra.mxu0 %v187
  %1458 = vmatpush.msra.mxu0 %v174
  %1459 = vmatpush.msra.mxu0 %v161
  %1460 = vmatpush.msra.mxu0 %v148
  %1461 = vmatpush.msra.mxu0 %v135
  %1462 = vmatpush.msra.mxu0 %v122
  %1463 = vmatpush.msra.mxu0 %v109
  %1464 = vmatpush.msra.mxu0 %v96
  %1465 = vmatpush.msra.mxu0 %v83
  %1466 = vmatpush.msra.mxu0 %v70
  %1467 = vmatpush.msra.mxu0 %v57
  %1468 = vmatpush.msra.mxu0 %v44
  %1469 = vmatpush.msra.mxu0 %v31
  %1470 = vmatpush.msra.mxu0 %v18
  %1471 = vmatmul.f32.gmra.mxu0 %v1299
  %v1472 = vpop.f32.mrf.mxu0
  %v1473 = vadd.f32 %v1297, %v1472
  %1474 = vdwg.mxu0
  %1475 = vmatpush.msra.mxu0 %v421
  %1476 = vmatpush.msra.mxu0 %v408
  %1477 = vmatpush.msra.mxu0 %v395
  %1478 = vmatpush.msra.mxu0 %v382
  %1479 = vmatpush.msra.mxu0 %v369
  %1480 = vmatpush.msra.mxu0 %v356
  %1481 = vmatpush.msra.mxu0 %v343
  %1482 = vmatpush.msra.mxu0 %v330
  %1483 = vmatpush.msra.mxu0 %v317
  %1484 = vmatpush.msra.mxu0 %v304
  %1485 = vmatpush.msra.mxu0 %v291
  %1486 = vmatpush.msra.mxu0 %v278
  %1487 = vmatpush.msra.mxu0 %v265
  %1488 = vmatpush.msra.mxu0 %v252
  %1489 = vmatpush.msra.mxu0 %v239
  %1490 = vmatpush.msra.mxu0 %v226
  %1491 = vmatmul.f32.gmra.mxu0 %v1300
  %v1492 = vpop.f32.mrf.mxu0
  %v1493 = vadd.f32 %v1473, %v1492
  %1494 = vdwg.mxu0
  %1495 = vmatpush.msra.mxu0 %v629
  %1496 = vmatpush.msra.mxu0 %v616
  %1497 = vmatpush.msra.mxu0 %v603
  %1498 = vmatpush.msra.mxu0 %v590
  %1499 = vmatpush.msra.mxu0 %v577
  %1500 = vmatpush.msra.mxu0 %v564
  %1501 = vmatpush.msra.mxu0 %v551
  %1502 = vmatpush.msra.mxu0 %v538
  %1503 = vmatpush.msra.mxu0 %v525
  %1504 = vmatpush.msra.mxu0 %v512
  %1505 = vmatpush.msra.mxu0 %v499
  %1506 = vmatpush.msra.mxu0 %v486
  %1507 = vmatpush.msra.mxu0 %v473
  %1508 = vmatpush.msra.mxu0 %v460
  %1509 = vmatpush.msra.mxu0 %v447
  %1510 = vmatpush.msra.mxu0 %v434
  %1511 = vmatmul.f32.gmra.mxu0 %v1301
  %v1512 = vpop.f32.mrf.mxu0
  %v1513 = vadd.f32 %v1493, %v1512
  %1514 = vdwg.mxu0
  %1515 = vmatpush.msra.mxu0 %v837
  %1516 = vmatpush.msra.mxu0 %v824
  %1517 = vmatpush.msra.mxu0 %v811
  %1518 = vmatpush.msra.mxu0 %v798
  %1519 = vmatpush.msra.mxu0 %v785
  %1520 = vmatpush.msra.mxu0 %v772
  %1521 = vmatpush.msra.mxu0 %v759
  %1522 = vmatpush.msra.mxu0 %v746
  %1523 = vmatpush.msra.mxu0 %v733
  %1524 = vmatpush.msra.mxu0 %v720
  %1525 = vmatpush.msra.mxu0 %v707
  %1526 = vmatpush.msra.mxu0 %v694
  %1527 = vmatpush.msra.mxu0 %v681
  %1528 = vmatpush.msra.mxu0 %v668
  %1529 = vmatpush.msra.mxu0 %v655
  %1530 = vmatpush.msra.mxu0 %v642
  %1531 = vmatmul.f32.gmra.mxu0 %v1302
  %v1532 = vpop.f32.mrf.mxu0
  %v1533 = vadd.f32 %v1513, %v1532
  %1534 = vdwg.mxu0
  %1535 = vmatpush.msra.mxu0 %v1045
  %1536 = vmatpush.msra.mxu0 %v1032
  %1537 = vmatpush.msra.mxu0 %v1019
  %1538 = vmatpush.msra.mxu0 %v1006
  %1539 = vmatpush.msra.mxu0 %v993
  %1540 = vmatpush.msra.mxu0 %v980
  %1541 = vmatpush.msra.mxu0 %v967
  %1542 = vmatpush.msra.mxu0 %v954
  %1543 = vmatpush.msra.mxu0 %v941
  %1544 = vmatpush.msra.mxu0 %v928
  %1545 = vmatpush.msra.mxu0 %v915
  %1546 = vmatpush.msra.mxu0 %v902
  %1547 = vmatpush.msra.mxu0 %v889
  %1548 = vmatpush.msra.mxu0 %v876
  %1549 = vmatpush.msra.mxu0 %v863
  %1550 = vmatpush.msra.mxu0 %v850
  %1551 = vmatmul.f32.gmra.mxu0 %v1303
  %v1552 = vpop.f32.mrf.mxu0
  %v1553 = vadd.f32 %v1533, %v1552
  %1554 = vdwg.mxu0
  %1555 = vmatpush.msra.mxu0 %v1253
  %1556 = vmatpush.msra.mxu0 %v1240
  %1557 = vmatpush.msra.mxu0 %v1227
  %1558 = vmatpush.msra.mxu0 %v1214
  %1559 = vmatpush.msra.mxu0 %v1201
  %1560 = vmatpush.msra.mxu0 %v1188
  %1561 = vmatpush.msra.mxu0 %v1175
  %1562 = vmatpush.msra.mxu0 %v1162
  %1563 = vmatpush.msra.mxu0 %v1149
  %1564 = vmatpush.msra.mxu0 %v1136
  %1565 = vmatpush.msra.mxu0 %v1123
  %1566 = vmatpush.msra.mxu0 %v1110
  %1567 = vmatpush.msra.mxu0 %v1097
  %1568 = vmatpush.msra.mxu0 %v1084
  %1569 = vmatpush.msra.mxu0 %v1071
  %1570 = vmatpush.msra.mxu0 %v1058
  %1571 = vmatmul.f32.gmra.mxu0 %v1304
  %v1572 = vpop.f32.mrf.mxu0
  %v1573 = vadd.f32 %v1553, %v1572
  %1574 = vdwg.mxu0
  %1575 = vmatpush.msra.mxu0 0.0
  %1576 = vmatpush.msra.mxu0 0.0
  %1577 = vmatpush.msra.mxu0 0.0
  %1578 = vmatpush.msra.mxu0 0.0
  %1579 = vmatpush.msra.mxu0 0.0
  %1580 = vmatpush.msra.mxu0 0.0
  %1581 = vmatpush.msra.mxu0 0.0
  %1582 = vmatpush.msra.mxu0 0.0
  %1583 = vmatpush.msra.mxu0 0.0
  %1584 = vmatpush.msra.mxu0 0.0
  %1585 = vmatpush.msra.mxu0 0.0
  %1586 = vmatpush.msra.mxu0 0.0
  %1587 = vmatpush.msra.mxu0 0.0
  %1588 = vmatpush.msra.mxu0 0.0
  %1589 = vmatpush.msra.mxu0 %v1279
  %1590 = vmatpush.msra.mxu0 %v1266
  %1591 = vmatmul.f32.gmra.mxu0 %v1313
  %v1592 = vpop.f32.mrf.mxu0
  %v1593 = vadd.f32 %v1573, %v1592
  %1594 = vdwg.mxu0
  %1595 = vmatpush.msra.mxu0 %v214
  %1596 = vmatpush.msra.mxu0 %v201
  %1597 = vmatpush.msra.mxu0 %v188
  %1598 = vmatpush.msra.mxu0 %v175
  %1599 = vmatpush.msra.mxu0 %v162
  %1600 = vmatpush.msra.mxu0 %v149
  %1601 = vmatpush.msra.mxu0 %v136
  %1602 = vmatpush.msra.mxu0 %v123
  %1603 = vmatpush.msra.mxu0 %v110
  %1604 = vmatpush.msra.mxu0 %v97
  %1605 = vmatpush.msra.mxu0 %v84
  %1606 = vmatpush.msra.mxu0 %v71
  %1607 = vmatpush.msra.mxu0 %v58
  %1608 = vmatpush.msra.mxu0 %v45
  %1609 = vmatpush.msra.mxu0 %v32
  %1610 = vmatpush.msra.mxu0 %v19
  %1611 = vmatmul.f32.gmra.mxu0 %v1299
  %v1612 = vpop.f32.mrf.mxu0
  %v1613 = vadd.f32 %v1297, %v1612
  %1614 = vdwg.mxu0
  %1615 = vmatpush.msra.mxu0 %v422
  %1616 = vmatpush.msra.mxu0 %v409
  %1617 = vmatpush.msra.mxu0 %v396
  %1618 = vmatpush.msra.mxu0 %v383
  %1619 = vmatpush.msra.mxu0 %v370
  %1620 = vmatpush.msra.mxu0 %v357
  %1621 = vmatpush.msra.mxu0 %v344
  %1622 = vmatpush.msra.mxu0 %v331
  %1623 = vmatpush.msra.mxu0 %v318
  %1624 = vmatpush.msra.mxu0 %v305
  %1625 = vmatpush.msra.mxu0 %v292
  %1626 = vmatpush.msra.mxu0 %v279
  %1627 = vmatpush.msra.mxu0 %v266
  %1628 = vmatpush.msra.mxu0 %v253
  %1629 = vmatpush.msra.mxu0 %v240
  %1630 = vmatpush.msra.mxu0 %v227
  %1631 = vmatmul.f32.gmra.mxu0 %v1300
  %v1632 = vpop.f32.mrf.mxu0
  %v1633 = vadd.f32 %v1613, %v1632
  %1634 = vdwg.mxu0
  %1635 = vmatpush.msra.mxu0 %v630
  %1636 = vmatpush.msra.mxu0 %v617
  %1637 = vmatpush.msra.mxu0 %v604
  %1638 = vmatpush.msra.mxu0 %v591
  %1639 = vmatpush.msra.mxu0 %v578
  %1640 = vmatpush.msra.mxu0 %v565
  %1641 = vmatpush.msra.mxu0 %v552
  %1642 = vmatpush.msra.mxu0 %v539
  %1643 = vmatpush.msra.mxu0 %v526
  %1644 = vmatpush.msra.mxu0 %v513
  %1645 = vmatpush.msra.mxu0 %v500
  %1646 = vmatpush.msra.mxu0 %v487
  %1647 = vmatpush.msra.mxu0 %v474
  %1648 = vmatpush.msra.mxu0 %v461
  %1649 = vmatpush.msra.mxu0 %v448
  %1650 = vmatpush.msra.mxu0 %v435
  %1651 = vmatmul.f32.gmra.mxu0 %v1301
  %v1652 = vpop.f32.mrf.mxu0
  %v1653 = vadd.f32 %v1633, %v1652
  %1654 = vdwg.mxu0
  %1655 = vmatpush.msra.mxu0 %v838
  %1656 = vmatpush.msra.mxu0 %v825
  %1657 = vmatpush.msra.mxu0 %v812
  %1658 = vmatpush.msra.mxu0 %v799
  %1659 = vmatpush.msra.mxu0 %v786
  %1660 = vmatpush.msra.mxu0 %v773
  %1661 = vmatpush.msra.mxu0 %v760
  %1662 = vmatpush.msra.mxu0 %v747
  %1663 = vmatpush.msra.mxu0 %v734
  %1664 = vmatpush.msra.mxu0 %v721
  %1665 = vmatpush.msra.mxu0 %v708
  %1666 = vmatpush.msra.mxu0 %v695
  %1667 = vmatpush.msra.mxu0 %v682
  %1668 = vmatpush.msra.mxu0 %v669
  %1669 = vmatpush.msra.mxu0 %v656
  %1670 = vmatpush.msra.mxu0 %v643
  %1671 = vmatmul.f32.gmra.mxu0 %v1302
  %v1672 = vpop.f32.mrf.mxu0
  %v1673 = vadd.f32 %v1653, %v1672
  %1674 = vdwg.mxu0
  %1675 = vmatpush.msra.mxu0 %v1046
  %1676 = vmatpush.msra.mxu0 %v1033
  %1677 = vmatpush.msra.mxu0 %v1020
  %1678 = vmatpush.msra.mxu0 %v1007
  %1679 = vmatpush.msra.mxu0 %v994
  %1680 = vmatpush.msra.mxu0 %v981
  %1681 = vmatpush.msra.mxu0 %v968
  %1682 = vmatpush.msra.mxu0 %v955
  %1683 = vmatpush.msra.mxu0 %v942
  %1684 = vmatpush.msra.mxu0 %v929
  %1685 = vmatpush.msra.mxu0 %v916
  %1686 = vmatpush.msra.mxu0 %v903
  %1687 = vmatpush.msra.mxu0 %v890
  %1688 = vmatpush.msra.mxu0 %v877
  %1689 = vmatpush.msra.mxu0 %v864
  %1690 = vmatpush.msra.mxu0 %v851
  %1691 = vmatmul.f32.gmra.mxu0 %v1303
  %v1692 = vpop.f32.mrf.mxu0
  %v1693 = vadd.f32 %v1673, %v1692
  %1694 = vdwg.mxu0
  %1695 = vmatpush.msra.mxu0 %v1254
  %1696 = vmatpush.msra.mxu0 %v1241
  %1697 = vmatpush.msra.mxu0 %v1228
  %1698 = vmatpush.msra.mxu0 %v1215
  %1699 = vmatpush.msra.mxu0 %v1202
  %1700 = vmatpush.msra.mxu0 %v1189
  %1701 = vmatpush.msra.mxu0 %v1176
  %1702 = vmatpush.msra.mxu0 %v1163
  %1703 = vmatpush.msra.mxu0 %v1150
  %1704 = vmatpush.msra.mxu0 %v1137
  %1705 = vmatpush.msra.mxu0 %v1124
  %1706 = vmatpush.msra.mxu0 %v1111
  %1707 = vmatpush.msra.mxu0 %v1098
  %1708 = vmatpush.msra.mxu0 %v1085
  %1709 = vmatpush.msra.mxu0 %v1072
  %1710 = vmatpush.msra.mxu0 %v1059
  %1711 = vmatmul.f32.gmra.mxu0 %v1304
  %v1712 = vpop.f32.mrf.mxu0
  %v1713 = vadd.f32 %v1693, %v1712
  %1714 = vdwg.mxu0
  %1715 = vmatpush.msra.mxu0 0.0
  %1716 = vmatpush.msra.mxu0 0.0
  %1717 = vmatpush.msra.mxu0 0.0
  %1718 = vmatpush.msra.mxu0 0.0
  %1719 = vmatpush.msra.mxu0 0.0
  %1720 = vmatpush.msra.mxu0 0.0
  %1721 = vmatpush.msra.mxu0 0.0
  %1722 = vmatpush.msra.mxu0 0.0
  %1723 = vmatpush.msra.mxu0 0.0
  %1724 = vmatpush.msra.mxu0 0.0
  %1725 = vmatpush.msra.mxu0 0.0
  %1726 = vmatpush.msra.mxu0 0.0
  %1727 = vmatpush.msra.mxu0 0.0
  %1728 = vmatpush.msra.mxu0 0.0
  %1729 = vmatpush.msra.mxu0 %v1280
  %1730 = vmatpush.msra.mxu0 %v1267
  %1731 = vmatmul.f32.gmra.mxu0 %v1313
  %v1732 = vpop.f32.mrf.mxu0
  %v1733 = vadd.f32 %v1713, %v1732
  %1734 = vdwg.mxu0
  %1735 = vmatpush.msra.mxu0 %v215
  %1736 = vmatpush.msra.mxu0 %v202
  %1737 = vmatpush.msra.mxu0 %v189
  %1738 = vmatpush.msra.mxu0 %v176
  %1739 = vmatpush.msra.mxu0 %v163
  %1740 = vmatpush.msra.mxu0 %v150
  %1741 = vmatpush.msra.mxu0 %v137
  %1742 = vmatpush.msra.mxu0 %v124
  %1743 = vmatpush.msra.mxu0 %v111
  %1744 = vmatpush.msra.mxu0 %v98
  %1745 = vmatpush.msra.mxu0 %v85
  %1746 = vmatpush.msra.mxu0 %v72
  %1747 = vmatpush.msra.mxu0 %v59
  %1748 = vmatpush.msra.mxu0 %v46
  %1749 = vmatpush.msra.mxu0 %v33
  %1750 = vmatpush.msra.mxu0 %v20
  %1751 = vmatmul.f32.gmra.mxu0 %v1299
  %v1752 = vpop.f32.mrf.mxu0
  %v1753 = vadd.f32 %v1297, %v1752
  %1754 = vdwg.mxu0
  %1755 = vmatpush.msra.mxu0 %v423
  %1756 = vmatpush.msra.mxu0 %v410
  %1757 = vmatpush.msra.mxu0 %v397
  %1758 = vmatpush.msra.mxu0 %v384
  %1759 = vmatpush.msra.mxu0 %v371
  %1760 = vmatpush.msra.mxu0 %v358
  %1761 = vmatpush.msra.mxu0 %v345
  %1762 = vmatpush.msra.mxu0 %v332
  %1763 = vmatpush.msra.mxu0 %v319
  %1764 = vmatpush.msra.mxu0 %v306
  %1765 = vmatpush.msra.mxu0 %v293
  %1766 = vmatpush.msra.mxu0 %v280
  %1767 = vmatpush.msra.mxu0 %v267
  %1768 = vmatpush.msra.mxu0 %v254
  %1769 = vmatpush.msra.mxu0 %v241
  %1770 = vmatpush.msra.mxu0 %v228
  %1771 = vmatmul.f32.gmra.mxu0 %v1300
  %v1772 = vpop.f32.mrf.mxu0
  %v1773 = vadd.f32 %v1753, %v1772
  %1774 = vdwg.mxu0
  %1775 = vmatpush.msra.mxu0 %v631
  %1776 = vmatpush.msra.mxu0 %v618
  %1777 = vmatpush.msra.mxu0 %v605
  %1778 = vmatpush.msra.mxu0 %v592
  %1779 = vmatpush.msra.mxu0 %v579
  %1780 = vmatpush.msra.mxu0 %v566
  %1781 = vmatpush.msra.mxu0 %v553
  %1782 = vmatpush.msra.mxu0 %v540
  %1783 = vmatpush.msra.mxu0 %v527
  %1784 = vmatpush.msra.mxu0 %v514
  %1785 = vmatpush.msra.mxu0 %v501
  %1786 = vmatpush.msra.mxu0 %v488
  %1787 = vmatpush.msra.mxu0 %v475
  %1788 = vmatpush.msra.mxu0 %v462
  %1789 = vmatpush.msra.mxu0 %v449
  %1790 = vmatpush.msra.mxu0 %v436
  %1791 = vmatmul.f32.gmra.mxu0 %v1301
  %v1792 = vpop.f32.mrf.mxu0
  %v1793 = vadd.f32 %v1773, %v1792
  %1794 = vdwg.mxu0
  %1795 = vmatpush.msra.mxu0 %v839
  %1796 = vmatpush.msra.mxu0 %v826
  %1797 = vmatpush.msra.mxu0 %v813
  %1798 = vmatpush.msra.mxu0 %v800
  %1799 = vmatpush.msra.mxu0 %v787
  %1800 = vmatpush.msra.mxu0 %v774
  %1801 = vmatpush.msra.mxu0 %v761
  %1802 = vmatpush.msra.mxu0 %v748
  %1803 = vmatpush.msra.mxu0 %v735
  %1804 = vmatpush.msra.mxu0 %v722
  %1805 = vmatpush.msra.mxu0 %v709
  %1806 = vmatpush.msra.mxu0 %v696
  %1807 = vmatpush.msra.mxu0 %v683
  %1808 = vmatpush.msra.mxu0 %v670
  %1809 = vmatpush.msra.mxu0 %v657
  %1810 = vmatpush.msra.mxu0 %v644
  %1811 = vmatmul.f32.gmra.mxu0 %v1302
  %v1812 = vpop.f32.mrf.mxu0
  %v1813 = vadd.f32 %v1793, %v1812
  %1814 = vdwg.mxu0
  %1815 = vmatpush.msra.mxu0 %v1047
  %1816 = vmatpush.msra.mxu0 %v1034
  %1817 = vmatpush.msra.mxu0 %v1021
  %1818 = vmatpush.msra.mxu0 %v1008
  %1819 = vmatpush.msra.mxu0 %v995
  %1820 = vmatpush.msra.mxu0 %v982
  %1821 = vmatpush.msra.mxu0 %v969
  %1822 = vmatpush.msra.mxu0 %v956
  %1823 = vmatpush.msra.mxu0 %v943
  %1824 = vmatpush.msra.mxu0 %v930
  %1825 = vmatpush.msra.mxu0 %v917
  %1826 = vmatpush.msra.mxu0 %v904
  %1827 = vmatpush.msra.mxu0 %v891
  %1828 = vmatpush.msra.mxu0 %v878
  %1829 = vmatpush.msra.mxu0 %v865
  %1830 = vmatpush.msra.mxu0 %v852
  %1831 = vmatmul.f32.gmra.mxu0 %v1303
  %v1832 = vpop.f32.mrf.mxu0
  %v1833 = vadd.f32 %v1813, %v1832
  %1834 = vdwg.mxu0
  %1835 = vmatpush.msra.mxu0 %v1255
  %1836 = vmatpush.msra.mxu0 %v1242
  %1837 = vmatpush.msra.mxu0 %v1229
  %1838 = vmatpush.msra.mxu0 %v1216
  %1839 = vmatpush.msra.mxu0 %v1203
  %1840 = vmatpush.msra.mxu0 %v1190
  %1841 = vmatpush.msra.mxu0 %v1177
  %1842 = vmatpush.msra.mxu0 %v1164
  %1843 = vmatpush.msra.mxu0 %v1151
  %1844 = vmatpush.msra.mxu0 %v1138
  %1845 = vmatpush.msra.mxu0 %v1125
  %1846 = vmatpush.msra.mxu0 %v1112
  %1847 = vmatpush.msra.mxu0 %v1099
  %1848 = vmatpush.msra.mxu0 %v1086
  %1849 = vmatpush.msra.mxu0 %v1073
  %1850 = vmatpush.msra.mxu0 %v1060
  %1851 = vmatmul.f32.gmra.mxu0 %v1304
  %v1852 = vpop.f32.mrf.mxu0
  %v1853 = vadd.f32 %v1833, %v1852
  %1854 = vdwg.mxu0
  %1855 = vmatpush.msra.mxu0 0.0
  %1856 = vmatpush.msra.mxu0 0.0
  %1857 = vmatpush.msra.mxu0 0.0
  %1858 = vmatpush.msra.mxu0 0.0
  %1859 = vmatpush.msra.mxu0 0.0
  %1860 = vmatpush.msra.mxu0 0.0
  %1861 = vmatpush.msra.mxu0 0.0
  %1862 = vmatpush.msra.mxu0 0.0
  %1863 = vmatpush.msra.mxu0 0.0
  %1864 = vmatpush.msra.mxu0 0.0
  %1865 = vmatpush.msra.mxu0 0.0
  %1866 = vmatpush.msra.mxu0 0.0
  %1867 = vmatpush.msra.mxu0 0.0
  %1868 = vmatpush.msra.mxu0 0.0
  %1869 = vmatpush.msra.mxu0 %v1281
  %1870 = vmatpush.msra.mxu0 %v1268
  %1871 = vmatmul.f32.gmra.mxu0 %v1313
  %v1872 = vpop.f32.mrf.mxu0
  %v1873 = vadd.f32 %v1853, %v1872
  %1874 = vdwg.mxu0
  %1875 = vmatpush.msra.mxu0 %v216
  %1876 = vmatpush.msra.mxu0 %v203
  %1877 = vmatpush.msra.mxu0 %v190
  %1878 = vmatpush.msra.mxu0 %v177
  %1879 = vmatpush.msra.mxu0 %v164
  %1880 = vmatpush.msra.mxu0 %v151
  %1881 = vmatpush.msra.mxu0 %v138
  %1882 = vmatpush.msra.mxu0 %v125
  %1883 = vmatpush.msra.mxu0 %v112
  %1884 = vmatpush.msra.mxu0 %v99
  %1885 = vmatpush.msra.mxu0 %v86
  %1886 = vmatpush.msra.mxu0 %v73
  %1887 = vmatpush.msra.mxu0 %v60
  %1888 = vmatpush.msra.mxu0 %v47
  %1889 = vmatpush.msra.mxu0 %v34
  %1890 = vmatpush.msra.mxu0 %v21
  %1891 = vmatmul.f32.gmra.mxu0 %v1299
  %v1892 = vpop.f32.mrf.mxu0
  %v1893 = vadd.f32 %v1297, %v1892
  %1894 = vdwg.mxu0
  %1895 = vmatpush.msra.mxu0 %v424
  %1896 = vmatpush.msra.mxu0 %v411
  %1897 = vmatpush.msra.mxu0 %v398
  %1898 = vmatpush.msra.mxu0 %v385
  %1899 = vmatpush.msra.mxu0 %v372
  %1900 = vmatpush.msra.mxu0 %v359
  %1901 = vmatpush.msra.mxu0 %v346
  %1902 = vmatpush.msra.mxu0 %v333
  %1903 = vmatpush.msra.mxu0 %v320
  %1904 = vmatpush.msra.mxu0 %v307
  %1905 = vmatpush.msra.mxu0 %v294
  %1906 = vmatpush.msra.mxu0 %v281
  %1907 = vmatpush.msra.mxu0 %v268
  %1908 = vmatpush.msra.mxu0 %v255
  %1909 = vmatpush.msra.mxu0 %v242
  %1910 = vmatpush.msra.mxu0 %v229
  %1911 = vmatmul.f32.gmra.mxu0 %v1300
  %v1912 = vpop.f32.mrf.mxu0
  %v1913 = vadd.f32 %v1893, %v1912
  %1914 = vdwg.mxu0
  %1915 = vmatpush.msra.mxu0 %v632
  %1916 = vmatpush.msra.mxu0 %v619
  %1917 = vmatpush.msra.mxu0 %v606
  %1918 = vmatpush.msra.mxu0 %v593
  %1919 = vmatpush.msra.mxu0 %v580
  %1920 = vmatpush.msra.mxu0 %v567
  %1921 = vmatpush.msra.mxu0 %v554
  %1922 = vmatpush.msra.mxu0 %v541
  %1923 = vmatpush.msra.mxu0 %v528
  %1924 = vmatpush.msra.mxu0 %v515
  %1925 = vmatpush.msra.mxu0 %v502
  %1926 = vmatpush.msra.mxu0 %v489
  %1927 = vmatpush.msra.mxu0 %v476
  %1928 = vmatpush.msra.mxu0 %v463
  %1929 = vmatpush.msra.mxu0 %v450
  %1930 = vmatpush.msra.mxu0 %v437
  %1931 = vmatmul.f32.gmra.mxu0 %v1301
  %v1932 = vpop.f32.mrf.mxu0
  %v1933 = vadd.f32 %v1913, %v1932
  %1934 = vdwg.mxu0
  %1935 = vmatpush.msra.mxu0 %v840
  %1936 = vmatpush.msra.mxu0 %v827
  %1937 = vmatpush.msra.mxu0 %v814
  %1938 = vmatpush.msra.mxu0 %v801
  %1939 = vmatpush.msra.mxu0 %v788
  %1940 = vmatpush.msra.mxu0 %v775
  %1941 = vmatpush.msra.mxu0 %v762
  %1942 = vmatpush.msra.mxu0 %v749
  %1943 = vmatpush.msra.mxu0 %v736
  %1944 = vmatpush.msra.mxu0 %v723
  %1945 = vmatpush.msra.mxu0 %v710
  %1946 = vmatpush.msra.mxu0 %v697
  %1947 = vmatpush.msra.mxu0 %v684
  %1948 = vmatpush.msra.mxu0 %v671
  %1949 = vmatpush.msra.mxu0 %v658
  %1950 = vmatpush.msra.mxu0 %v645
  %1951 = vmatmul.f32.gmra.mxu0 %v1302
  %v1952 = vpop.f32.mrf.mxu0
  %v1953 = vadd.f32 %v1933, %v1952
  %1954 = vdwg.mxu0
  %1955 = vmatpush.msra.mxu0 %v1048
  %1956 = vmatpush.msra.mxu0 %v1035
  %1957 = vmatpush.msra.mxu0 %v1022
  %1958 = vmatpush.msra.mxu0 %v1009
  %1959 = vmatpush.msra.mxu0 %v996
  %1960 = vmatpush.msra.mxu0 %v983
  %1961 = vmatpush.msra.mxu0 %v970
  %1962 = vmatpush.msra.mxu0 %v957
  %1963 = vmatpush.msra.mxu0 %v944
  %1964 = vmatpush.msra.mxu0 %v931
  %1965 = vmatpush.msra.mxu0 %v918
  %1966 = vmatpush.msra.mxu0 %v905
  %1967 = vmatpush.msra.mxu0 %v892
  %1968 = vmatpush.msra.mxu0 %v879
  %1969 = vmatpush.msra.mxu0 %v866
  %1970 = vmatpush.msra.mxu0 %v853
  %1971 = vmatmul.f32.gmra.mxu0 %v1303
  %v1972 = vpop.f32.mrf.mxu0
  %v1973 = vadd.f32 %v1953, %v1972
  %1974 = vdwg.mxu0
  %1975 = vmatpush.msra.mxu0 %v1256
  %1976 = vmatpush.msra.mxu0 %v1243
  %1977 = vmatpush.msra.mxu0 %v1230
  %1978 = vmatpush.msra.mxu0 %v1217
  %1979 = vmatpush.msra.mxu0 %v1204
  %1980 = vmatpush.msra.mxu0 %v1191
  %1981 = vmatpush.msra.mxu0 %v1178
  %1982 = vmatpush.msra.mxu0 %v1165
  %1983 = vmatpush.msra.mxu0 %v1152
  %1984 = vmatpush.msra.mxu0 %v1139
  %1985 = vmatpush.msra.mxu0 %v1126
  %1986 = vmatpush.msra.mxu0 %v1113
  %1987 = vmatpush.msra.mxu0 %v1100
  %1988 = vmatpush.msra.mxu0 %v1087
  %1989 = vmatpush.msra.mxu0 %v1074
  %1990 = vmatpush.msra.mxu0 %v1061
  %1991 = vmatmul.f32.gmra.mxu0 %v1304
  %v1992 = vpop.f32.mrf.mxu0
  %v1993 = vadd.f32 %v1973, %v1992
  %1994 = vdwg.mxu0
  %1995 = vmatpush.msra.mxu0 0.0
  %1996 = vmatpush.msra.mxu0 0.0
  %1997 = vmatpush.msra.mxu0 0.0
  %1998 = vmatpush.msra.mxu0 0.0
  %1999 = vmatpush.msra.mxu0 0.0
  %2000 = vmatpush.msra.mxu0 0.0
  %2001 = vmatpush.msra.mxu0 0.0
  %2002 = vmatpush.msra.mxu0 0.0
  %2003 = vmatpush.msra.mxu0 0.0
  %2004 = vmatpush.msra.mxu0 0.0
  %2005 = vmatpush.msra.mxu0 0.0
  %2006 = vmatpush.msra.mxu0 0.0
  %2007 = vmatpush.msra.mxu0 0.0
  %2008 = vmatpush.msra.mxu0 0.0
  %2009 = vmatpush.msra.mxu0 %v1282
  %2010 = vmatpush.msra.mxu0 %v1269
  %2011 = vmatmul.f32.gmra.mxu0 %v1313
  %v2012 = vpop.f32.mrf.mxu0
  %v2013 = vadd.f32 %v1993, %v2012
  %2014 = vdwg.mxu0
  %2015 = vmatpush.msra.mxu0 %v217
  %2016 = vmatpush.msra.mxu0 %v204
  %2017 = vmatpush.msra.mxu0 %v191
  %2018 = vmatpush.msra.mxu0 %v178
  %2019 = vmatpush.msra.mxu0 %v165
  %2020 = vmatpush.msra.mxu0 %v152
  %2021 = vmatpush.msra.mxu0 %v139
  %2022 = vmatpush.msra.mxu0 %v126
  %2023 = vmatpush.msra.mxu0 %v113
  %2024 = vmatpush.msra.mxu0 %v100
  %2025 = vmatpush.msra.mxu0 %v87
  %2026 = vmatpush.msra.mxu0 %v74
  %2027 = vmatpush.msra.mxu0 %v61
  %2028 = vmatpush.msra.mxu0 %v48
  %2029 = vmatpush.msra.mxu0 %v35
  %2030 = vmatpush.msra.mxu0 %v22
  %2031 = vmatmul.f32.gmra.mxu0 %v1299
  %v2032 = vpop.f32.mrf.mxu0
  %v2033 = vadd.f32 %v1297, %v2032
  %2034 = vdwg.mxu0
  %2035 = vmatpush.msra.mxu0 %v425
  %2036 = vmatpush.msra.mxu0 %v412
  %2037 = vmatpush.msra.mxu0 %v399
  %2038 = vmatpush.msra.mxu0 %v386
  %2039 = vmatpush.msra.mxu0 %v373
  %2040 = vmatpush.msra.mxu0 %v360
  %2041 = vmatpush.msra.mxu0 %v347
  %2042 = vmatpush.msra.mxu0 %v334
  %2043 = vmatpush.msra.mxu0 %v321
  %2044 = vmatpush.msra.mxu0 %v308
  %2045 = vmatpush.msra.mxu0 %v295
  %2046 = vmatpush.msra.mxu0 %v282
  %2047 = vmatpush.msra.mxu0 %v269
  %2048 = vmatpush.msra.mxu0 %v256
  %2049 = vmatpush.msra.mxu0 %v243
  %2050 = vmatpush.msra.mxu0 %v230
  %2051 = vmatmul.f32.gmra.mxu0 %v1300
  %v2052 = vpop.f32.mrf.mxu0
  %v2053 = vadd.f32 %v2033, %v2052
  %2054 = vdwg.mxu0
  %2055 = vmatpush.msra.mxu0 %v633
  %2056 = vmatpush.msra.mxu0 %v620
  %2057 = vmatpush.msra.mxu0 %v607
  %2058 = vmatpush.msra.mxu0 %v594
  %2059 = vmatpush.msra.mxu0 %v581
  %2060 = vmatpush.msra.mxu0 %v568
  %2061 = vmatpush.msra.mxu0 %v555
  %2062 = vmatpush.msra.mxu0 %v542
  %2063 = vmatpush.msra.mxu0 %v529
  %2064 = vmatpush.msra.mxu0 %v516
  %2065 = vmatpush.msra.mxu0 %v503
  %2066 = vmatpush.msra.mxu0 %v490
  %2067 = vmatpush.msra.mxu0 %v477
  %2068 = vmatpush.msra.mxu0 %v464
  %2069 = vmatpush.msra.mxu0 %v451
  %2070 = vmatpush.msra.mxu0 %v438
  %2071 = vmatmul.f32.gmra.mxu0 %v1301
  %v2072 = vpop.f32.mrf.mxu0
  %v2073 = vadd.f32 %v2053, %v2072
  %2074 = vdwg.mxu0
  %2075 = vmatpush.msra.mxu0 %v841
  %2076 = vmatpush.msra.mxu0 %v828
  %2077 = vmatpush.msra.mxu0 %v815
  %2078 = vmatpush.msra.mxu0 %v802
  %2079 = vmatpush.msra.mxu0 %v789
  %2080 = vmatpush.msra.mxu0 %v776
  %2081 = vmatpush.msra.mxu0 %v763
  %2082 = vmatpush.msra.mxu0 %v750
  %2083 = vmatpush.msra.mxu0 %v737
  %2084 = vmatpush.msra.mxu0 %v724
  %2085 = vmatpush.msra.mxu0 %v711
  %2086 = vmatpush.msra.mxu0 %v698
  %2087 = vmatpush.msra.mxu0 %v685
  %2088 = vmatpush.msra.mxu0 %v672
  %2089 = vmatpush.msra.mxu0 %v659
  %2090 = vmatpush.msra.mxu0 %v646
  %2091 = vmatmul.f32.gmra.mxu0 %v1302
  %v2092 = vpop.f32.mrf.mxu0
  %v2093 = vadd.f32 %v2073, %v2092
  %2094 = vdwg.mxu0
  %2095 = vmatpush.msra.mxu0 %v1049
  %2096 = vmatpush.msra.mxu0 %v1036
  %2097 = vmatpush.msra.mxu0 %v1023
  %2098 = vmatpush.msra.mxu0 %v1010
  %2099 = vmatpush.msra.mxu0 %v997
  %2100 = vmatpush.msra.mxu0 %v984
  %2101 = vmatpush.msra.mxu0 %v971
  %2102 = vmatpush.msra.mxu0 %v958
  %2103 = vmatpush.msra.mxu0 %v945
  %2104 = vmatpush.msra.mxu0 %v932
  %2105 = vmatpush.msra.mxu0 %v919
  %2106 = vmatpush.msra.mxu0 %v906
  %2107 = vmatpush.msra.mxu0 %v893
  %2108 = vmatpush.msra.mxu0 %v880
  %2109 = vmatpush.msra.mxu0 %v867
  %2110 = vmatpush.msra.mxu0 %v854
  %2111 = vmatmul.f32.gmra.mxu0 %v1303
  %v2112 = vpop.f32.mrf.mxu0
  %v2113 = vadd.f32 %v2093, %v2112
  %2114 = vdwg.mxu0
  %2115 = vmatpush.msra.mxu0 %v1257
  %2116 = vmatpush.msra.mxu0 %v1244
  %2117 = vmatpush.msra.mxu0 %v1231
  %2118 = vmatpush.msra.mxu0 %v1218
  %2119 = vmatpush.msra.mxu0 %v1205
  %2120 = vmatpush.msra.mxu0 %v1192
  %2121 = vmatpush.msra.mxu0 %v1179
  %2122 = vmatpush.msra.mxu0 %v1166
  %2123 = vmatpush.msra.mxu0 %v1153
  %2124 = vmatpush.msra.mxu0 %v1140
  %2125 = vmatpush.msra.mxu0 %v1127
  %2126 = vmatpush.msra.mxu0 %v1114
  %2127 = vmatpush.msra.mxu0 %v1101
  %2128 = vmatpush.msra.mxu0 %v1088
  %2129 = vmatpush.msra.mxu0 %v1075
  %2130 = vmatpush.msra.mxu0 %v1062
  %2131 = vmatmul.f32.gmra.mxu0 %v1304
  %v2132 = vpop.f32.mrf.mxu0
  %v2133 = vadd.f32 %v2113, %v2132
  %2134 = vdwg.mxu0
  %2135 = vmatpush.msra.mxu0 0.0
  %2136 = vmatpush.msra.mxu0 0.0
  %2137 = vmatpush.msra.mxu0 0.0
  %2138 = vmatpush.msra.mxu0 0.0
  %2139 = vmatpush.msra.mxu0 0.0
  %2140 = vmatpush.msra.mxu0 0.0
  %2141 = vmatpush.msra.mxu0 0.0
  %2142 = vmatpush.msra.mxu0 0.0
  %2143 = vmatpush.msra.mxu0 0.0
  %2144 = vmatpush.msra.mxu0 0.0
  %2145 = vmatpush.msra.mxu0 0.0
  %2146 = vmatpush.msra.mxu0 0.0
  %2147 = vmatpush.msra.mxu0 0.0
  %2148 = vmatpush.msra.mxu0 0.0
  %2149 = vmatpush.msra.mxu0 %v1283
  %2150 = vmatpush.msra.mxu0 %v1270
  %2151 = vmatmul.f32.gmra.mxu0 %v1313
  %v2152 = vpop.f32.mrf.mxu0
  %v2153 = vadd.f32 %v2133, %v2152
  %2154 = vdwg.mxu0
  %2155 = vmatpush.msra.mxu0 %v218
  %2156 = vmatpush.msra.mxu0 %v205
  %2157 = vmatpush.msra.mxu0 %v192
  %2158 = vmatpush.msra.mxu0 %v179
  %2159 = vmatpush.msra.mxu0 %v166
  %2160 = vmatpush.msra.mxu0 %v153
  %2161 = vmatpush.msra.mxu0 %v140
  %2162 = vmatpush.msra.mxu0 %v127
  %2163 = vmatpush.msra.mxu0 %v114
  %2164 = vmatpush.msra.mxu0 %v101
  %2165 = vmatpush.msra.mxu0 %v88
  %2166 = vmatpush.msra.mxu0 %v75
  %2167 = vmatpush.msra.mxu0 %v62
  %2168 = vmatpush.msra.mxu0 %v49
  %2169 = vmatpush.msra.mxu0 %v36
  %2170 = vmatpush.msra.mxu0 %v23
  %2171 = vmatmul.f32.gmra.mxu0 %v1299
  %v2172 = vpop.f32.mrf.mxu0
  %v2173 = vadd.f32 %v1297, %v2172
  %2174 = vdwg.mxu0
  %2175 = vmatpush.msra.mxu0 %v426
  %2176 = vmatpush.msra.mxu0 %v413
  %2177 = vmatpush.msra.mxu0 %v400
  %2178 = vmatpush.msra.mxu0 %v387
  %2179 = vmatpush.msra.mxu0 %v374
  %2180 = vmatpush.msra.mxu0 %v361
  %2181 = vmatpush.msra.mxu0 %v348
  %2182 = vmatpush.msra.mxu0 %v335
  %2183 = vmatpush.msra.mxu0 %v322
  %2184 = vmatpush.msra.mxu0 %v309
  %2185 = vmatpush.msra.mxu0 %v296
  %2186 = vmatpush.msra.mxu0 %v283
  %2187 = vmatpush.msra.mxu0 %v270
  %2188 = vmatpush.msra.mxu0 %v257
  %2189 = vmatpush.msra.mxu0 %v244
  %2190 = vmatpush.msra.mxu0 %v231
  %2191 = vmatmul.f32.gmra.mxu0 %v1300
  %v2192 = vpop.f32.mrf.mxu0
  %v2193 = vadd.f32 %v2173, %v2192
  %2194 = vdwg.mxu0
  %2195 = vmatpush.msra.mxu0 %v634
  %2196 = vmatpush.msra.mxu0 %v621
  %2197 = vmatpush.msra.mxu0 %v608
  %2198 = vmatpush.msra.mxu0 %v595
  %2199 = vmatpush.msra.mxu0 %v582
  %2200 = vmatpush.msra.mxu0 %v569
  %2201 = vmatpush.msra.mxu0 %v556
  %2202 = vmatpush.msra.mxu0 %v543
  %2203 = vmatpush.msra.mxu0 %v530
  %2204 = vmatpush.msra.mxu0 %v517
  %2205 = vmatpush.msra.mxu0 %v504
  %2206 = vmatpush.msra.mxu0 %v491
  %2207 = vmatpush.msra.mxu0 %v478
  %2208 = vmatpush.msra.mxu0 %v465
  %2209 = vmatpush.msra.mxu0 %v452
  %2210 = vmatpush.msra.mxu0 %v439
  %2211 = vmatmul.f32.gmra.mxu0 %v1301
  %v2212 = vpop.f32.mrf.mxu0
  %v2213 = vadd.f32 %v2193, %v2212
  %2214 = vdwg.mxu0
  %2215 = vmatpush.msra.mxu0 %v842
  %2216 = vmatpush.msra.mxu0 %v829
  %2217 = vmatpush.msra.mxu0 %v816
  %2218 = vmatpush.msra.mxu0 %v803
  %2219 = vmatpush.msra.mxu0 %v790
  %2220 = vmatpush.msra.mxu0 %v777
  %2221 = vmatpush.msra.mxu0 %v764
  %2222 = vmatpush.msra.mxu0 %v751
  %2223 = vmatpush.msra.mxu0 %v738
  %2224 = vmatpush.msra.mxu0 %v725
  %2225 = vmatpush.msra.mxu0 %v712
  %2226 = vmatpush.msra.mxu0 %v699
  %2227 = vmatpush.msra.mxu0 %v686
  %2228 = vmatpush.msra.mxu0 %v673
  %2229 = vmatpush.msra.mxu0 %v660
  %2230 = vmatpush.msra.mxu0 %v647
  %2231 = vmatmul.f32.gmra.mxu0 %v1302
  %v2232 = vpop.f32.mrf.mxu0
  %v2233 = vadd.f32 %v2213, %v2232
  %2234 = vdwg.mxu0
  %2235 = vmatpush.msra.mxu0 %v1050
  %2236 = vmatpush.msra.mxu0 %v1037
  %2237 = vmatpush.msra.mxu0 %v1024
  %2238 = vmatpush.msra.mxu0 %v1011
  %2239 = vmatpush.msra.mxu0 %v998
  %2240 = vmatpush.msra.mxu0 %v985
  %2241 = vmatpush.msra.mxu0 %v972
  %2242 = vmatpush.msra.mxu0 %v959
  %2243 = vmatpush.msra.mxu0 %v946
  %2244 = vmatpush.msra.mxu0 %v933
  %2245 = vmatpush.msra.mxu0 %v920
  %2246 = vmatpush.msra.mxu0 %v907
  %2247 = vmatpush.msra.mxu0 %v894
  %2248 = vmatpush.msra.mxu0 %v881
  %2249 = vmatpush.msra.mxu0 %v868
  %2250 = vmatpush.msra.mxu0 %v855
  %2251 = vmatmul.f32.gmra.mxu0 %v1303
  %v2252 = vpop.f32.mrf.mxu0
  %v2253 = vadd.f32 %v2233, %v2252
  %2254 = vdwg.mxu0
  %2255 = vmatpush.msra.mxu0 %v1258
  %2256 = vmatpush.msra.mxu0 %v1245
  %2257 = vmatpush.msra.mxu0 %v1232
  %2258 = vmatpush.msra.mxu0 %v1219
  %2259 = vmatpush.msra.mxu0 %v1206
  %2260 = vmatpush.msra.mxu0 %v1193
  %2261 = vmatpush.msra.mxu0 %v1180
  %2262 = vmatpush.msra.mxu0 %v1167
  %2263 = vmatpush.msra.mxu0 %v1154
  %2264 = vmatpush.msra.mxu0 %v1141
  %2265 = vmatpush.msra.mxu0 %v1128
  %2266 = vmatpush.msra.mxu0 %v1115
  %2267 = vmatpush.msra.mxu0 %v1102
  %2268 = vmatpush.msra.mxu0 %v1089
  %2269 = vmatpush.msra.mxu0 %v1076
  %2270 = vmatpush.msra.mxu0 %v1063
  %2271 = vmatmul.f32.gmra.mxu0 %v1304
  %v2272 = vpop.f32.mrf.mxu0
  %v2273 = vadd.f32 %v2253, %v2272
  %2274 = vdwg.mxu0
  %2275 = vmatpush.msra.mxu0 0.0
  %2276 = vmatpush.msra.mxu0 0.0
  %2277 = vmatpush.msra.mxu0 0.0
  %2278 = vmatpush.msra.mxu0 0.0
  %2279 = vmatpush.msra.mxu0 0.0
  %2280 = vmatpush.msra.mxu0 0.0
  %2281 = vmatpush.msra.mxu0 0.0
  %2282 = vmatpush.msra.mxu0 0.0
  %2283 = vmatpush.msra.mxu0 0.0
  %2284 = vmatpush.msra.mxu0 0.0
  %2285 = vmatpush.msra.mxu0 0.0
  %2286 = vmatpush.msra.mxu0 0.0
  %2287 = vmatpush.msra.mxu0 0.0
  %2288 = vmatpush.msra.mxu0 0.0
  %2289 = vmatpush.msra.mxu0 %v1284
  %2290 = vmatpush.msra.mxu0 %v1271
  %2291 = vmatmul.f32.gmra.mxu0 %v1313
  %v2292 = vpop.f32.mrf.mxu0
  %v2293 = vadd.f32 %v2273, %v2292
  %2294 = vdwg.mxu0
  %2295 = vmatpush.msra.mxu0 %v219
  %2296 = vmatpush.msra.mxu0 %v206
  %2297 = vmatpush.msra.mxu0 %v193
  %2298 = vmatpush.msra.mxu0 %v180
  %2299 = vmatpush.msra.mxu0 %v167
  %2300 = vmatpush.msra.mxu0 %v154
  %2301 = vmatpush.msra.mxu0 %v141
  %2302 = vmatpush.msra.mxu0 %v128
  %2303 = vmatpush.msra.mxu0 %v115
  %2304 = vmatpush.msra.mxu0 %v102
  %2305 = vmatpush.msra.mxu0 %v89
  %2306 = vmatpush.msra.mxu0 %v76
  %2307 = vmatpush.msra.mxu0 %v63
  %2308 = vmatpush.msra.mxu0 %v50
  %2309 = vmatpush.msra.mxu0 %v37
  %2310 = vmatpush.msra.mxu0 %v24
  %2311 = vmatmul.f32.gmra.mxu0 %v1299
  %v2312 = vpop.f32.mrf.mxu0
  %v2313 = vadd.f32 %v1297, %v2312
  %2314 = vdwg.mxu0
  %2315 = vmatpush.msra.mxu0 %v427
  %2316 = vmatpush.msra.mxu0 %v414
  %2317 = vmatpush.msra.mxu0 %v401
  %2318 = vmatpush.msra.mxu0 %v388
  %2319 = vmatpush.msra.mxu0 %v375
  %2320 = vmatpush.msra.mxu0 %v362
  %2321 = vmatpush.msra.mxu0 %v349
  %2322 = vmatpush.msra.mxu0 %v336
  %2323 = vmatpush.msra.mxu0 %v323
  %2324 = vmatpush.msra.mxu0 %v310
  %2325 = vmatpush.msra.mxu0 %v297
  %2326 = vmatpush.msra.mxu0 %v284
  %2327 = vmatpush.msra.mxu0 %v271
  %2328 = vmatpush.msra.mxu0 %v258
  %2329 = vmatpush.msra.mxu0 %v245
  %2330 = vmatpush.msra.mxu0 %v232
  %2331 = vmatmul.f32.gmra.mxu0 %v1300
  %v2332 = vpop.f32.mrf.mxu0
  %v2333 = vadd.f32 %v2313, %v2332
  %2334 = vdwg.mxu0
  %2335 = vmatpush.msra.mxu0 %v635
  %2336 = vmatpush.msra.mxu0 %v622
  %2337 = vmatpush.msra.mxu0 %v609
  %2338 = vmatpush.msra.mxu0 %v596
  %2339 = vmatpush.msra.mxu0 %v583
  %2340 = vmatpush.msra.mxu0 %v570
  %2341 = vmatpush.msra.mxu0 %v557
  %2342 = vmatpush.msra.mxu0 %v544
  %2343 = vmatpush.msra.mxu0 %v531
  %2344 = vmatpush.msra.mxu0 %v518
  %2345 = vmatpush.msra.mxu0 %v505
  %2346 = vmatpush.msra.mxu0 %v492
  %2347 = vmatpush.msra.mxu0 %v479
  %2348 = vmatpush.msra.mxu0 %v466
  %2349 = vmatpush.msra.mxu0 %v453
  %2350 = vmatpush.msra.mxu0 %v440
  %2351 = vmatmul.f32.gmra.mxu0 %v1301
  %v2352 = vpop.f32.mrf.mxu0
  %v2353 = vadd.f32 %v2333, %v2352
  %2354 = vdwg.mxu0
  %2355 = vmatpush.msra.mxu0 %v843
  %2356 = vmatpush.msra.mxu0 %v830
  %2357 = vmatpush.msra.mxu0 %v817
  %2358 = vmatpush.msra.mxu0 %v804
  %2359 = vmatpush.msra.mxu0 %v791
  %2360 = vmatpush.msra.mxu0 %v778
  %2361 = vmatpush.msra.mxu0 %v765
  %2362 = vmatpush.msra.mxu0 %v752
  %2363 = vmatpush.msra.mxu0 %v739
  %2364 = vmatpush.msra.mxu0 %v726
  %2365 = vmatpush.msra.mxu0 %v713
  %2366 = vmatpush.msra.mxu0 %v700
  %2367 = vmatpush.msra.mxu0 %v687
  %2368 = vmatpush.msra.mxu0 %v674
  %2369 = vmatpush.msra.mxu0 %v661
  %2370 = vmatpush.msra.mxu0 %v648
  %2371 = vmatmul.f32.gmra.mxu0 %v1302
  %v2372 = vpop.f32.mrf.mxu0
  %v2373 = vadd.f32 %v2353, %v2372
  %2374 = vdwg.mxu0
  %2375 = vmatpush.msra.mxu0 %v1051
  %2376 = vmatpush.msra.mxu0 %v1038
  %2377 = vmatpush.msra.mxu0 %v1025
  %2378 = vmatpush.msra.mxu0 %v1012
  %2379 = vmatpush.msra.mxu0 %v999
  %2380 = vmatpush.msra.mxu0 %v986
  %2381 = vmatpush.msra.mxu0 %v973
  %2382 = vmatpush.msra.mxu0 %v960
  %2383 = vmatpush.msra.mxu0 %v947
  %2384 = vmatpush.msra.mxu0 %v934
  %2385 = vmatpush.msra.mxu0 %v921
  %2386 = vmatpush.msra.mxu0 %v908
  %2387 = vmatpush.msra.mxu0 %v895
  %2388 = vmatpush.msra.mxu0 %v882
  %2389 = vmatpush.msra.mxu0 %v869
  %2390 = vmatpush.msra.mxu0 %v856
  %2391 = vmatmul.f32.gmra.mxu0 %v1303
  %v2392 = vpop.f32.mrf.mxu0
  %v2393 = vadd.f32 %v2373, %v2392
  %2394 = vdwg.mxu0
  %2395 = vmatpush.msra.mxu0 %v1259
  %2396 = vmatpush.msra.mxu0 %v1246
  %2397 = vmatpush.msra.mxu0 %v1233
  %2398 = vmatpush.msra.mxu0 %v1220
  %2399 = vmatpush.msra.mxu0 %v1207
  %2400 = vmatpush.msra.mxu0 %v1194
  %2401 = vmatpush.msra.mxu0 %v1181
  %2402 = vmatpush.msra.mxu0 %v1168
  %2403 = vmatpush.msra.mxu0 %v1155
  %2404 = vmatpush.msra.mxu0 %v1142
  %2405 = vmatpush.msra.mxu0 %v1129
  %2406 = vmatpush.msra.mxu0 %v1116
  %2407 = vmatpush.msra.mxu0 %v1103
  %2408 = vmatpush.msra.mxu0 %v1090
  %2409 = vmatpush.msra.mxu0 %v1077
  %2410 = vmatpush.msra.mxu0 %v1064
  %2411 = vmatmul.f32.gmra.mxu0 %v1304
  %v2412 = vpop.f32.mrf.mxu0
  %v2413 = vadd.f32 %v2393, %v2412
  %2414 = vdwg.mxu0
  %2415 = vmatpush.msra.mxu0 0.0
  %2416 = vmatpush.msra.mxu0 0.0
  %2417 = vmatpush.msra.mxu0 0.0
  %2418 = vmatpush.msra.mxu0 0.0
  %2419 = vmatpush.msra.mxu0 0.0
  %2420 = vmatpush.msra.mxu0 0.0
  %2421 = vmatpush.msra.mxu0 0.0
  %2422 = vmatpush.msra.mxu0 0.0
  %2423 = vmatpush.msra.mxu0 0.0
  %2424 = vmatpush.msra.mxu0 0.0
  %2425 = vmatpush.msra.mxu0 0.0
  %2426 = vmatpush.msra.mxu0 0.0
  %2427 = vmatpush.msra.mxu0 0.0
  %2428 = vmatpush.msra.mxu0 0.0
  %2429 = vmatpush.msra.mxu0 %v1285
  %2430 = vmatpush.msra.mxu0 %v1272
  %2431 = vmatmul.f32.gmra.mxu0 %v1313
  %v2432 = vpop.f32.mrf.mxu0
  %v2433 = vadd.f32 %v2413, %v2432
  %2434 = vdwg.mxu0
  %2435 = vmatpush.msra.mxu0 %v220
  %2436 = vmatpush.msra.mxu0 %v207
  %2437 = vmatpush.msra.mxu0 %v194
  %2438 = vmatpush.msra.mxu0 %v181
  %2439 = vmatpush.msra.mxu0 %v168
  %2440 = vmatpush.msra.mxu0 %v155
  %2441 = vmatpush.msra.mxu0 %v142
  %2442 = vmatpush.msra.mxu0 %v129
  %2443 = vmatpush.msra.mxu0 %v116
  %2444 = vmatpush.msra.mxu0 %v103
  %2445 = vmatpush.msra.mxu0 %v90
  %2446 = vmatpush.msra.mxu0 %v77
  %2447 = vmatpush.msra.mxu0 %v64
  %2448 = vmatpush.msra.mxu0 %v51
  %2449 = vmatpush.msra.mxu0 %v38
  %2450 = vmatpush.msra.mxu0 %v25
  %2451 = vmatmul.f32.gmra.mxu0 %v1299
  %v2452 = vpop.f32.mrf.mxu0
  %v2453 = vadd.f32 %v1297, %v2452
  %2454 = vdwg.mxu0
  %2455 = vmatpush.msra.mxu0 %v428
  %2456 = vmatpush.msra.mxu0 %v415
  %2457 = vmatpush.msra.mxu0 %v402
  %2458 = vmatpush.msra.mxu0 %v389
  %2459 = vmatpush.msra.mxu0 %v376
  %2460 = vmatpush.msra.mxu0 %v363
  %2461 = vmatpush.msra.mxu0 %v350
  %2462 = vmatpush.msra.mxu0 %v337
  %2463 = vmatpush.msra.mxu0 %v324
  %2464 = vmatpush.msra.mxu0 %v311
  %2465 = vmatpush.msra.mxu0 %v298
  %2466 = vmatpush.msra.mxu0 %v285
  %2467 = vmatpush.msra.mxu0 %v272
  %2468 = vmatpush.msra.mxu0 %v259
  %2469 = vmatpush.msra.mxu0 %v246
  %2470 = vmatpush.msra.mxu0 %v233
  %2471 = vmatmul.f32.gmra.mxu0 %v1300
  %v2472 = vpop.f32.mrf.mxu0
  %v2473 = vadd.f32 %v2453, %v2472
  %2474 = vdwg.mxu0
  %2475 = vmatpush.msra.mxu0 %v636
  %2476 = vmatpush.msra.mxu0 %v623
  %2477 = vmatpush.msra.mxu0 %v610
  %2478 = vmatpush.msra.mxu0 %v597
  %2479 = vmatpush.msra.mxu0 %v584
  %2480 = vmatpush.msra.mxu0 %v571
  %2481 = vmatpush.msra.mxu0 %v558
  %2482 = vmatpush.msra.mxu0 %v545
  %2483 = vmatpush.msra.mxu0 %v532
  %2484 = vmatpush.msra.mxu0 %v519
  %2485 = vmatpush.msra.mxu0 %v506
  %2486 = vmatpush.msra.mxu0 %v493
  %2487 = vmatpush.msra.mxu0 %v480
  %2488 = vmatpush.msra.mxu0 %v467
  %2489 = vmatpush.msra.mxu0 %v454
  %2490 = vmatpush.msra.mxu0 %v441
  %2491 = vmatmul.f32.gmra.mxu0 %v1301
  %v2492 = vpop.f32.mrf.mxu0
  %v2493 = vadd.f32 %v2473, %v2492
  %2494 = vdwg.mxu0
  %2495 = vmatpush.msra.mxu0 %v844
  %2496 = vmatpush.msra.mxu0 %v831
  %2497 = vmatpush.msra.mxu0 %v818
  %2498 = vmatpush.msra.mxu0 %v805
  %2499 = vmatpush.msra.mxu0 %v792
  %2500 = vmatpush.msra.mxu0 %v779
  %2501 = vmatpush.msra.mxu0 %v766
  %2502 = vmatpush.msra.mxu0 %v753
  %2503 = vmatpush.msra.mxu0 %v740
  %2504 = vmatpush.msra.mxu0 %v727
  %2505 = vmatpush.msra.mxu0 %v714
  %2506 = vmatpush.msra.mxu0 %v701
  %2507 = vmatpush.msra.mxu0 %v688
  %2508 = vmatpush.msra.mxu0 %v675
  %2509 = vmatpush.msra.mxu0 %v662
  %2510 = vmatpush.msra.mxu0 %v649
  %2511 = vmatmul.f32.gmra.mxu0 %v1302
  %v2512 = vpop.f32.mrf.mxu0
  %v2513 = vadd.f32 %v2493, %v2512
  %2514 = vdwg.mxu0
  %2515 = vmatpush.msra.mxu0 %v1052
  %2516 = vmatpush.msra.mxu0 %v1039
  %2517 = vmatpush.msra.mxu0 %v1026
  %2518 = vmatpush.msra.mxu0 %v1013
  %2519 = vmatpush.msra.mxu0 %v1000
  %2520 = vmatpush.msra.mxu0 %v987
  %2521 = vmatpush.msra.mxu0 %v974
  %2522 = vmatpush.msra.mxu0 %v961
  %2523 = vmatpush.msra.mxu0 %v948
  %2524 = vmatpush.msra.mxu0 %v935
  %2525 = vmatpush.msra.mxu0 %v922
  %2526 = vmatpush.msra.mxu0 %v909
  %2527 = vmatpush.msra.mxu0 %v896
  %2528 = vmatpush.msra.mxu0 %v883
  %2529 = vmatpush.msra.mxu0 %v870
  %2530 = vmatpush.msra.mxu0 %v857
  %2531 = vmatmul.f32.gmra.mxu0 %v1303
  %v2532 = vpop.f32.mrf.mxu0
  %v2533 = vadd.f32 %v2513, %v2532
  %2534 = vdwg.mxu0
  %2535 = vmatpush.msra.mxu0 %v1260
  %2536 = vmatpush.msra.mxu0 %v1247
  %2537 = vmatpush.msra.mxu0 %v1234
  %2538 = vmatpush.msra.mxu0 %v1221
  %2539 = vmatpush.msra.mxu0 %v1208
  %2540 = vmatpush.msra.mxu0 %v1195
  %2541 = vmatpush.msra.mxu0 %v1182
  %2542 = vmatpush.msra.mxu0 %v1169
  %2543 = vmatpush.msra.mxu0 %v1156
  %2544 = vmatpush.msra.mxu0 %v1143
  %2545 = vmatpush.msra.mxu0 %v1130
  %2546 = vmatpush.msra.mxu0 %v1117
  %2547 = vmatpush.msra.mxu0 %v1104
  %2548 = vmatpush.msra.mxu0 %v1091
  %2549 = vmatpush.msra.mxu0 %v1078
  %2550 = vmatpush.msra.mxu0 %v1065
  %2551 = vmatmul.f32.gmra.mxu0 %v1304
  %v2552 = vpop.f32.mrf.mxu0
  %v2553 = vadd.f32 %v2533, %v2552
  %2554 = vdwg.mxu0
  %2555 = vmatpush.msra.mxu0 0.0
  %2556 = vmatpush.msra.mxu0 0.0
  %2557 = vmatpush.msra.mxu0 0.0
  %2558 = vmatpush.msra.mxu0 0.0
  %2559 = vmatpush.msra.mxu0 0.0
  %2560 = vmatpush.msra.mxu0 0.0
  %2561 = vmatpush.msra.mxu0 0.0
  %2562 = vmatpush.msra.mxu0 0.0
  %2563 = vmatpush.msra.mxu0 0.0
  %2564 = vmatpush.msra.mxu0 0.0
  %2565 = vmatpush.msra.mxu0 0.0
  %2566 = vmatpush.msra.mxu0 0.0
  %2567 = vmatpush.msra.mxu0 0.0
  %2568 = vmatpush.msra.mxu0 0.0
  %2569 = vmatpush.msra.mxu0 %v1286
  %2570 = vmatpush.msra.mxu0 %v1273
  %2571 = vmatmul.f32.gmra.mxu0 %v1313
  %v2572 = vpop.f32.mrf.mxu0
  %v2573 = vadd.f32 %v2553, %v2572
  %2574 = vdwg.mxu0
  %2575 = vmatpush.msra.mxu0 %v221
  %2576 = vmatpush.msra.mxu0 %v208
  %2577 = vmatpush.msra.mxu0 %v195
  %2578 = vmatpush.msra.mxu0 %v182
  %2579 = vmatpush.msra.mxu0 %v169
  %2580 = vmatpush.msra.mxu0 %v156
  %2581 = vmatpush.msra.mxu0 %v143
  %2582 = vmatpush.msra.mxu0 %v130
  %2583 = vmatpush.msra.mxu0 %v117
  %2584 = vmatpush.msra.mxu0 %v104
  %2585 = vmatpush.msra.mxu0 %v91
  %2586 = vmatpush.msra.mxu0 %v78
  %2587 = vmatpush.msra.mxu0 %v65
  %2588 = vmatpush.msra.mxu0 %v52
  %2589 = vmatpush.msra.mxu0 %v39
  %2590 = vmatpush.msra.mxu0 %v26
  %2591 = vmatmul.f32.gmra.mxu0 %v1299
  %v2592 = vpop.f32.mrf.mxu0
  %v2593 = vadd.f32 %v1297, %v2592
  %2594 = vdwg.mxu0
  %2595 = vmatpush.msra.mxu0 %v429
  %2596 = vmatpush.msra.mxu0 %v416
  %2597 = vmatpush.msra.mxu0 %v403
  %2598 = vmatpush.msra.mxu0 %v390
  %2599 = vmatpush.msra.mxu0 %v377
  %2600 = vmatpush.msra.mxu0 %v364
  %2601 = vmatpush.msra.mxu0 %v351
  %2602 = vmatpush.msra.mxu0 %v338
  %2603 = vmatpush.msra.mxu0 %v325
  %2604 = vmatpush.msra.mxu0 %v312
  %2605 = vmatpush.msra.mxu0 %v299
  %2606 = vmatpush.msra.mxu0 %v286
  %2607 = vmatpush.msra.mxu0 %v273
  %2608 = vmatpush.msra.mxu0 %v260
  %2609 = vmatpush.msra.mxu0 %v247
  %2610 = vmatpush.msra.mxu0 %v234
  %2611 = vmatmul.f32.gmra.mxu0 %v1300
  %v2612 = vpop.f32.mrf.mxu0
  %v2613 = vadd.f32 %v2593, %v2612
  %2614 = vdwg.mxu0
  %2615 = vmatpush.msra.mxu0 %v637
  %2616 = vmatpush.msra.mxu0 %v624
  %2617 = vmatpush.msra.mxu0 %v611
  %2618 = vmatpush.msra.mxu0 %v598
  %2619 = vmatpush.msra.mxu0 %v585
  %2620 = vmatpush.msra.mxu0 %v572
  %2621 = vmatpush.msra.mxu0 %v559
  %2622 = vmatpush.msra.mxu0 %v546
  %2623 = vmatpush.msra.mxu0 %v533
  %2624 = vmatpush.msra.mxu0 %v520
  %2625 = vmatpush.msra.mxu0 %v507
  %2626 = vmatpush.msra.mxu0 %v494
  %2627 = vmatpush.msra.mxu0 %v481
  %2628 = vmatpush.msra.mxu0 %v468
  %2629 = vmatpush.msra.mxu0 %v455
  %2630 = vmatpush.msra.mxu0 %v442
  %2631 = vmatmul.f32.gmra.mxu0 %v1301
  %v2632 = vpop.f32.mrf.mxu0
  %v2633 = vadd.f32 %v2613, %v2632
  %2634 = vdwg.mxu0
  %2635 = vmatpush.msra.mxu0 %v845
  %2636 = vmatpush.msra.mxu0 %v832
  %2637 = vmatpush.msra.mxu0 %v819
  %2638 = vmatpush.msra.mxu0 %v806
  %2639 = vmatpush.msra.mxu0 %v793
  %2640 = vmatpush.msra.mxu0 %v780
  %2641 = vmatpush.msra.mxu0 %v767
  %2642 = vmatpush.msra.mxu0 %v754
  %2643 = vmatpush.msra.mxu0 %v741
  %2644 = vmatpush.msra.mxu0 %v728
  %2645 = vmatpush.msra.mxu0 %v715
  %2646 = vmatpush.msra.mxu0 %v702
  %2647 = vmatpush.msra.mxu0 %v689
  %2648 = vmatpush.msra.mxu0 %v676
  %2649 = vmatpush.msra.mxu0 %v663
  %2650 = vmatpush.msra.mxu0 %v650
  %2651 = vmatmul.f32.gmra.mxu0 %v1302
  %v2652 = vpop.f32.mrf.mxu0
  %v2653 = vadd.f32 %v2633, %v2652
  %2654 = vdwg.mxu0
  %2655 = vmatpush.msra.mxu0 %v1053
  %2656 = vmatpush.msra.mxu0 %v1040
  %2657 = vmatpush.msra.mxu0 %v1027
  %2658 = vmatpush.msra.mxu0 %v1014
  %2659 = vmatpush.msra.mxu0 %v1001
  %2660 = vmatpush.msra.mxu0 %v988
  %2661 = vmatpush.msra.mxu0 %v975
  %2662 = vmatpush.msra.mxu0 %v962
  %2663 = vmatpush.msra.mxu0 %v949
  %2664 = vmatpush.msra.mxu0 %v936
  %2665 = vmatpush.msra.mxu0 %v923
  %2666 = vmatpush.msra.mxu0 %v910
  %2667 = vmatpush.msra.mxu0 %v897
  %2668 = vmatpush.msra.mxu0 %v884
  %2669 = vmatpush.msra.mxu0 %v871
  %2670 = vmatpush.msra.mxu0 %v858
  %2671 = vmatmul.f32.gmra.mxu0 %v1303
  %v2672 = vpop.f32.mrf.mxu0
  %v2673 = vadd.f32 %v2653, %v2672
  %2674 = vdwg.mxu0
  %2675 = vmatpush.msra.mxu0 %v1261
  %2676 = vmatpush.msra.mxu0 %v1248
  %2677 = vmatpush.msra.mxu0 %v1235
  %2678 = vmatpush.msra.mxu0 %v1222
  %2679 = vmatpush.msra.mxu0 %v1209
  %2680 = vmatpush.msra.mxu0 %v1196
  %2681 = vmatpush.msra.mxu0 %v1183
  %2682 = vmatpush.msra.mxu0 %v1170
  %2683 = vmatpush.msra.mxu0 %v1157
  %2684 = vmatpush.msra.mxu0 %v1144
  %2685 = vmatpush.msra.mxu0 %v1131
  %2686 = vmatpush.msra.mxu0 %v1118
  %2687 = vmatpush.msra.mxu0 %v1105
  %2688 = vmatpush.msra.mxu0 %v1092
  %2689 = vmatpush.msra.mxu0 %v1079
  %2690 = vmatpush.msra.mxu0 %v1066
  %2691 = vmatmul.f32.gmra.mxu0 %v1304
  %v2692 = vpop.f32.mrf.mxu0
  %v2693 = vadd.f32 %v2673, %v2692
  %2694 = vdwg.mxu0
  %2695 = vmatpush.msra.mxu0 0.0
  %2696 = vmatpush.msra.mxu0 0.0
  %2697 = vmatpush.msra.mxu0 0.0
  %2698 = vmatpush.msra.mxu0 0.0
  %2699 = vmatpush.msra.mxu0 0.0
  %2700 = vmatpush.msra.mxu0 0.0
  %2701 = vmatpush.msra.mxu0 0.0
  %2702 = vmatpush.msra.mxu0 0.0
  %2703 = vmatpush.msra.mxu0 0.0
  %2704 = vmatpush.msra.mxu0 0.0
  %2705 = vmatpush.msra.mxu0 0.0
  %2706 = vmatpush.msra.mxu0 0.0
  %2707 = vmatpush.msra.mxu0 0.0
  %2708 = vmatpush.msra.mxu0 0.0
  %2709 = vmatpush.msra.mxu0 %v1287
  %2710 = vmatpush.msra.mxu0 %v1274
  %2711 = vmatmul.f32.gmra.mxu0 %v1313
  %v2712 = vpop.f32.mrf.mxu0
  %v2713 = vadd.f32 %v2693, %v2712
  %2714 = vdwg.mxu0
  %2715 = vmatpush.msra.mxu0 %v222
  %2716 = vmatpush.msra.mxu0 %v209
  %2717 = vmatpush.msra.mxu0 %v196
  %2718 = vmatpush.msra.mxu0 %v183
  %2719 = vmatpush.msra.mxu0 %v170
  %2720 = vmatpush.msra.mxu0 %v157
  %2721 = vmatpush.msra.mxu0 %v144
  %2722 = vmatpush.msra.mxu0 %v131
  %2723 = vmatpush.msra.mxu0 %v118
  %2724 = vmatpush.msra.mxu0 %v105
  %2725 = vmatpush.msra.mxu0 %v92
  %2726 = vmatpush.msra.mxu0 %v79
  %2727 = vmatpush.msra.mxu0 %v66
  %2728 = vmatpush.msra.mxu0 %v53
  %2729 = vmatpush.msra.mxu0 %v40
  %2730 = vmatpush.msra.mxu0 %v27
  %2731 = vmatmul.f32.gmra.mxu0 %v1299
  %v2732 = vpop.f32.mrf.mxu0
  %v2733 = vadd.f32 %v1297, %v2732
  %2734 = vdwg.mxu0
  %2735 = vmatpush.msra.mxu0 %v430
  %2736 = vmatpush.msra.mxu0 %v417
  %2737 = vmatpush.msra.mxu0 %v404
  %2738 = vmatpush.msra.mxu0 %v391
  %2739 = vmatpush.msra.mxu0 %v378
  %2740 = vmatpush.msra.mxu0 %v365
  %2741 = vmatpush.msra.mxu0 %v352
  %2742 = vmatpush.msra.mxu0 %v339
  %2743 = vmatpush.msra.mxu0 %v326
  %2744 = vmatpush.msra.mxu0 %v313
  %2745 = vmatpush.msra.mxu0 %v300
  %2746 = vmatpush.msra.mxu0 %v287
  %2747 = vmatpush.msra.mxu0 %v274
  %2748 = vmatpush.msra.mxu0 %v261
  %2749 = vmatpush.msra.mxu0 %v248
  %2750 = vmatpush.msra.mxu0 %v235
  %2751 = vmatmul.f32.gmra.mxu0 %v1300
  %v2752 = vpop.f32.mrf.mxu0
  %v2753 = vadd.f32 %v2733, %v2752
  %2754 = vdwg.mxu0
  %2755 = vmatpush.msra.mxu0 %v638
  %2756 = vmatpush.msra.mxu0 %v625
  %2757 = vmatpush.msra.mxu0 %v612
  %2758 = vmatpush.msra.mxu0 %v599
  %2759 = vmatpush.msra.mxu0 %v586
  %2760 = vmatpush.msra.mxu0 %v573
  %2761 = vmatpush.msra.mxu0 %v560
  %2762 = vmatpush.msra.mxu0 %v547
  %2763 = vmatpush.msra.mxu0 %v534
  %2764 = vmatpush.msra.mxu0 %v521
  %2765 = vmatpush.msra.mxu0 %v508
  %2766 = vmatpush.msra.mxu0 %v495
  %2767 = vmatpush.msra.mxu0 %v482
  %2768 = vmatpush.msra.mxu0 %v469
  %2769 = vmatpush.msra.mxu0 %v456
  %2770 = vmatpush.msra.mxu0 %v443
  %2771 = vmatmul.f32.gmra.mxu0 %v1301
  %v2772 = vpop.f32.mrf.mxu0
  %v2773 = vadd.f32 %v2753, %v2772
  %2774 = vdwg.mxu0
  %2775 = vmatpush.msra.mxu0 %v846
  %2776 = vmatpush.msra.mxu0 %v833
  %2777 = vmatpush.msra.mxu0 %v820
  %2778 = vmatpush.msra.mxu0 %v807
  %2779 = vmatpush.msra.mxu0 %v794
  %2780 = vmatpush.msra.mxu0 %v781
  %2781 = vmatpush.msra.mxu0 %v768
  %2782 = vmatpush.msra.mxu0 %v755
  %2783 = vmatpush.msra.mxu0 %v742
  %2784 = vmatpush.msra.mxu0 %v729
  %2785 = vmatpush.msra.mxu0 %v716
  %2786 = vmatpush.msra.mxu0 %v703
  %2787 = vmatpush.msra.mxu0 %v690
  %2788 = vmatpush.msra.mxu0 %v677
  %2789 = vmatpush.msra.mxu0 %v664
  %2790 = vmatpush.msra.mxu0 %v651
  %2791 = vmatmul.f32.gmra.mxu0 %v1302
  %v2792 = vpop.f32.mrf.mxu0
  %v2793 = vadd.f32 %v2773, %v2792
  %2794 = vdwg.mxu0
  %2795 = vmatpush.msra.mxu0 %v1054
  %2796 = vmatpush.msra.mxu0 %v1041
  %2797 = vmatpush.msra.mxu0 %v1028
  %2798 = vmatpush.msra.mxu0 %v1015
  %2799 = vmatpush.msra.mxu0 %v1002
  %2800 = vmatpush.msra.mxu0 %v989
  %2801 = vmatpush.msra.mxu0 %v976
  %2802 = vmatpush.msra.mxu0 %v963
  %2803 = vmatpush.msra.mxu0 %v950
  %2804 = vmatpush.msra.mxu0 %v937
  %2805 = vmatpush.msra.mxu0 %v924
  %2806 = vmatpush.msra.mxu0 %v911
  %2807 = vmatpush.msra.mxu0 %v898
  %2808 = vmatpush.msra.mxu0 %v885
  %2809 = vmatpush.msra.mxu0 %v872
  %2810 = vmatpush.msra.mxu0 %v859
  %2811 = vmatmul.f32.gmra.mxu0 %v1303
  %v2812 = vpop.f32.mrf.mxu0
  %v2813 = vadd.f32 %v2793, %v2812
  %2814 = vdwg.mxu0
  %2815 = vmatpush.msra.mxu0 %v1262
  %2816 = vmatpush.msra.mxu0 %v1249
  %2817 = vmatpush.msra.mxu0 %v1236
  %2818 = vmatpush.msra.mxu0 %v1223
  %2819 = vmatpush.msra.mxu0 %v1210
  %2820 = vmatpush.msra.mxu0 %v1197
  %2821 = vmatpush.msra.mxu0 %v1184
  %2822 = vmatpush.msra.mxu0 %v1171
  %2823 = vmatpush.msra.mxu0 %v1158
  %2824 = vmatpush.msra.mxu0 %v1145
  %2825 = vmatpush.msra.mxu0 %v1132
  %2826 = vmatpush.msra.mxu0 %v1119
  %2827 = vmatpush.msra.mxu0 %v1106
  %2828 = vmatpush.msra.mxu0 %v1093
  %2829 = vmatpush.msra.mxu0 %v1080
  %2830 = vmatpush.msra.mxu0 %v1067
  %2831 = vmatmul.f32.gmra.mxu0 %v1304
  %v2832 = vpop.f32.mrf.mxu0
  %v2833 = vadd.f32 %v2813, %v2832
  %2834 = vdwg.mxu0
  %2835 = vmatpush.msra.mxu0 0.0
  %2836 = vmatpush.msra.mxu0 0.0
  %2837 = vmatpush.msra.mxu0 0.0
  %2838 = vmatpush.msra.mxu0 0.0
  %2839 = vmatpush.msra.mxu0 0.0
  %2840 = vmatpush.msra.mxu0 0.0
  %2841 = vmatpush.msra.mxu0 0.0
  %2842 = vmatpush.msra.mxu0 0.0
  %2843 = vmatpush.msra.mxu0 0.0
  %2844 = vmatpush.msra.mxu0 0.0
  %2845 = vmatpush.msra.mxu0 0.0
  %2846 = vmatpush.msra.mxu0 0.0
  %2847 = vmatpush.msra.mxu0 0.0
  %2848 = vmatpush.msra.mxu0 0.0
  %2849 = vmatpush.msra.mxu0 %v1288
  %2850 = vmatpush.msra.mxu0 %v1275
  %2851 = vmatmul.f32.gmra.mxu0 %v1313
  %v2852 = vpop.f32.mrf.mxu0
  %v2853 = vadd.f32 %v2833, %v2852
  %2854 = vdwg.mxu0
  %2855 = vmatpush.msra.mxu0 %v223
  %2856 = vmatpush.msra.mxu0 %v210
  %2857 = vmatpush.msra.mxu0 %v197
  %2858 = vmatpush.msra.mxu0 %v184
  %2859 = vmatpush.msra.mxu0 %v171
  %2860 = vmatpush.msra.mxu0 %v158
  %2861 = vmatpush.msra.mxu0 %v145
  %2862 = vmatpush.msra.mxu0 %v132
  %2863 = vmatpush.msra.mxu0 %v119
  %2864 = vmatpush.msra.mxu0 %v106
  %2865 = vmatpush.msra.mxu0 %v93
  %2866 = vmatpush.msra.mxu0 %v80
  %2867 = vmatpush.msra.mxu0 %v67
  %2868 = vmatpush.msra.mxu0 %v54
  %2869 = vmatpush.msra.mxu0 %v41
  %2870 = vmatpush.msra.mxu0 %v28
  %2871 = vmatmul.f32.gmra.mxu0 %v1299
  %v2872 = vpop.f32.mrf.mxu0
  %v2873 = vadd.f32 %v1297, %v2872
  %2874 = vdwg.mxu0
  %2875 = vmatpush.msra.mxu0 %v431
  %2876 = vmatpush.msra.mxu0 %v418
  %2877 = vmatpush.msra.mxu0 %v405
  %2878 = vmatpush.msra.mxu0 %v392
  %2879 = vmatpush.msra.mxu0 %v379
  %2880 = vmatpush.msra.mxu0 %v366
  %2881 = vmatpush.msra.mxu0 %v353
  %2882 = vmatpush.msra.mxu0 %v340
  %2883 = vmatpush.msra.mxu0 %v327
  %2884 = vmatpush.msra.mxu0 %v314
  %2885 = vmatpush.msra.mxu0 %v301
  %2886 = vmatpush.msra.mxu0 %v288
  %2887 = vmatpush.msra.mxu0 %v275
  %2888 = vmatpush.msra.mxu0 %v262
  %2889 = vmatpush.msra.mxu0 %v249
  %2890 = vmatpush.msra.mxu0 %v236
  %2891 = vmatmul.f32.gmra.mxu0 %v1300
  %v2892 = vpop.f32.mrf.mxu0
  %v2893 = vadd.f32 %v2873, %v2892
  %2894 = vdwg.mxu0
  %2895 = vmatpush.msra.mxu0 %v639
  %2896 = vmatpush.msra.mxu0 %v626
  %2897 = vmatpush.msra.mxu0 %v613
  %2898 = vmatpush.msra.mxu0 %v600
  %2899 = vmatpush.msra.mxu0 %v587
  %2900 = vmatpush.msra.mxu0 %v574
  %2901 = vmatpush.msra.mxu0 %v561
  %2902 = vmatpush.msra.mxu0 %v548
  %2903 = vmatpush.msra.mxu0 %v535
  %2904 = vmatpush.msra.mxu0 %v522
  %2905 = vmatpush.msra.mxu0 %v509
  %2906 = vmatpush.msra.mxu0 %v496
  %2907 = vmatpush.msra.mxu0 %v483
  %2908 = vmatpush.msra.mxu0 %v470
  %2909 = vmatpush.msra.mxu0 %v457
  %2910 = vmatpush.msra.mxu0 %v444
  %2911 = vmatmul.f32.gmra.mxu0 %v1301
  %v2912 = vpop.f32.mrf.mxu0
  %v2913 = vadd.f32 %v2893, %v2912
  %2914 = vdwg.mxu0
  %2915 = vmatpush.msra.mxu0 %v847
  %2916 = vmatpush.msra.mxu0 %v834
  %2917 = vmatpush.msra.mxu0 %v821
  %2918 = vmatpush.msra.mxu0 %v808
  %2919 = vmatpush.msra.mxu0 %v795
  %2920 = vmatpush.msra.mxu0 %v782
  %2921 = vmatpush.msra.mxu0 %v769
  %2922 = vmatpush.msra.mxu0 %v756
  %2923 = vmatpush.msra.mxu0 %v743
  %2924 = vmatpush.msra.mxu0 %v730
  %2925 = vmatpush.msra.mxu0 %v717
  %2926 = vmatpush.msra.mxu0 %v704
  %2927 = vmatpush.msra.mxu0 %v691
  %2928 = vmatpush.msra.mxu0 %v678
  %2929 = vmatpush.msra.mxu0 %v665
  %2930 = vmatpush.msra.mxu0 %v652
  %2931 = vmatmul.f32.gmra.mxu0 %v1302
  %v2932 = vpop.f32.mrf.mxu0
  %v2933 = vadd.f32 %v2913, %v2932
  %2934 = vdwg.mxu0
  %2935 = vmatpush.msra.mxu0 %v1055
  %2936 = vmatpush.msra.mxu0 %v1042
  %2937 = vmatpush.msra.mxu0 %v1029
  %2938 = vmatpush.msra.mxu0 %v1016
  %2939 = vmatpush.msra.mxu0 %v1003
  %2940 = vmatpush.msra.mxu0 %v990
  %2941 = vmatpush.msra.mxu0 %v977
  %2942 = vmatpush.msra.mxu0 %v964
  %2943 = vmatpush.msra.mxu0 %v951
  %2944 = vmatpush.msra.mxu0 %v938
  %2945 = vmatpush.msra.mxu0 %v925
  %2946 = vmatpush.msra.mxu0 %v912
  %2947 = vmatpush.msra.mxu0 %v899
  %2948 = vmatpush.msra.mxu0 %v886
  %2949 = vmatpush.msra.mxu0 %v873
  %2950 = vmatpush.msra.mxu0 %v860
  %2951 = vmatmul.f32.gmra.mxu0 %v1303
  %v2952 = vpop.f32.mrf.mxu0
  %v2953 = vadd.f32 %v2933, %v2952
  %2954 = vdwg.mxu0
  %2955 = vmatpush.msra.mxu0 %v1263
  %2956 = vmatpush.msra.mxu0 %v1250
  %2957 = vmatpush.msra.mxu0 %v1237
  %2958 = vmatpush.msra.mxu0 %v1224
  %2959 = vmatpush.msra.mxu0 %v1211
  %2960 = vmatpush.msra.mxu0 %v1198
  %2961 = vmatpush.msra.mxu0 %v1185
  %2962 = vmatpush.msra.mxu0 %v1172
  %2963 = vmatpush.msra.mxu0 %v1159
  %2964 = vmatpush.msra.mxu0 %v1146
  %2965 = vmatpush.msra.mxu0 %v1133
  %2966 = vmatpush.msra.mxu0 %v1120
  %2967 = vmatpush.msra.mxu0 %v1107
  %2968 = vmatpush.msra.mxu0 %v1094
  %2969 = vmatpush.msra.mxu0 %v1081
  %2970 = vmatpush.msra.mxu0 %v1068
  %2971 = vmatmul.f32.gmra.mxu0 %v1304
  %v2972 = vpop.f32.mrf.mxu0
  %v2973 = vadd.f32 %v2953, %v2972
  %2974 = vdwg.mxu0
  %2975 = vmatpush.msra.mxu0 0.0
  %2976 = vmatpush.msra.mxu0 0.0
  %2977 = vmatpush.msra.mxu0 0.0
  %2978 = vmatpush.msra.mxu0 0.0
  %2979 = vmatpush.msra.mxu0 0.0
  %2980 = vmatpush.msra.mxu0 0.0
  %2981 = vmatpush.msra.mxu0 0.0
  %2982 = vmatpush.msra.mxu0 0.0
  %2983 = vmatpush.msra.mxu0 0.0
  %2984 = vmatpush.msra.mxu0 0.0
  %2985 = vmatpush.msra.mxu0 0.0
  %2986 = vmatpush.msra.mxu0 0.0
  %2987 = vmatpush.msra.mxu0 0.0
  %2988 = vmatpush.msra.mxu0 0.0
  %2989 = vmatpush.msra.mxu0 %v1289
  %2990 = vmatpush.msra.mxu0 %v1276
  %2991 = vmatmul.f32.gmra.mxu0 %v1313
  %v2992 = vpop.f32.mrf.mxu0
  %v2993 = vadd.f32 %v2973, %v2992
  %2994 = vdwg.mxu0
  %2995 = vmatpush.msra.mxu0 %v224
  %2996 = vmatpush.msra.mxu0 %v211
  %2997 = vmatpush.msra.mxu0 %v198
  %2998 = vmatpush.msra.mxu0 %v185
  %2999 = vmatpush.msra.mxu0 %v172
  %3000 = vmatpush.msra.mxu0 %v159
  %3001 = vmatpush.msra.mxu0 %v146
  %3002 = vmatpush.msra.mxu0 %v133
  %3003 = vmatpush.msra.mxu0 %v120
  %3004 = vmatpush.msra.mxu0 %v107
  %3005 = vmatpush.msra.mxu0 %v94
  %3006 = vmatpush.msra.mxu0 %v81
  %3007 = vmatpush.msra.mxu0 %v68
  %3008 = vmatpush.msra.mxu0 %v55
  %3009 = vmatpush.msra.mxu0 %v42
  %3010 = vmatpush.msra.mxu0 %v29
  %3011 = vmatmul.f32.gmra.mxu0 %v1299
  %v3012 = vpop.f32.mrf.mxu0
  %v3013 = vadd.f32 %v1297, %v3012
  %3014 = vdwg.mxu0
  %3015 = vmatpush.msra.mxu0 %v432
  %3016 = vmatpush.msra.mxu0 %v419
  %3017 = vmatpush.msra.mxu0 %v406
  %3018 = vmatpush.msra.mxu0 %v393
  %3019 = vmatpush.msra.mxu0 %v380
  %3020 = vmatpush.msra.mxu0 %v367
  %3021 = vmatpush.msra.mxu0 %v354
  %3022 = vmatpush.msra.mxu0 %v341
  %3023 = vmatpush.msra.mxu0 %v328
  %3024 = vmatpush.msra.mxu0 %v315
  %3025 = vmatpush.msra.mxu0 %v302
  %3026 = vmatpush.msra.mxu0 %v289
  %3027 = vmatpush.msra.mxu0 %v276
  %3028 = vmatpush.msra.mxu0 %v263
  %3029 = vmatpush.msra.mxu0 %v250
  %3030 = vmatpush.msra.mxu0 %v237
  %3031 = vmatmul.f32.gmra.mxu0 %v1300
  %v3032 = vpop.f32.mrf.mxu0
  %v3033 = vadd.f32 %v3013, %v3032
  %3034 = vdwg.mxu0
  %3035 = vmatpush.msra.mxu0 %v640
  %3036 = vmatpush.msra.mxu0 %v627
  %3037 = vmatpush.msra.mxu0 %v614
  %3038 = vmatpush.msra.mxu0 %v601
  %3039 = vmatpush.msra.mxu0 %v588
  %3040 = vmatpush.msra.mxu0 %v575
  %3041 = vmatpush.msra.mxu0 %v562
  %3042 = vmatpush.msra.mxu0 %v549
  %3043 = vmatpush.msra.mxu0 %v536
  %3044 = vmatpush.msra.mxu0 %v523
  %3045 = vmatpush.msra.mxu0 %v510
  %3046 = vmatpush.msra.mxu0 %v497
  %3047 = vmatpush.msra.mxu0 %v484
  %3048 = vmatpush.msra.mxu0 %v471
  %3049 = vmatpush.msra.mxu0 %v458
  %3050 = vmatpush.msra.mxu0 %v445
  %3051 = vmatmul.f32.gmra.mxu0 %v1301
  %v3052 = vpop.f32.mrf.mxu0
  %v3053 = vadd.f32 %v3033, %v3052
  %3054 = vdwg.mxu0
  %3055 = vmatpush.msra.mxu0 %v848
  %3056 = vmatpush.msra.mxu0 %v835
  %3057 = vmatpush.msra.mxu0 %v822
  %3058 = vmatpush.msra.mxu0 %v809
  %3059 = vmatpush.msra.mxu0 %v796
  %3060 = vmatpush.msra.mxu0 %v783
  %3061 = vmatpush.msra.mxu0 %v770
  %3062 = vmatpush.msra.mxu0 %v757
  %3063 = vmatpush.msra.mxu0 %v744
  %3064 = vmatpush.msra.mxu0 %v731
  %3065 = vmatpush.msra.mxu0 %v718
  %3066 = vmatpush.msra.mxu0 %v705
  %3067 = vmatpush.msra.mxu0 %v692
  %3068 = vmatpush.msra.mxu0 %v679
  %3069 = vmatpush.msra.mxu0 %v666
  %3070 = vmatpush.msra.mxu0 %v653
  %3071 = vmatmul.f32.gmra.mxu0 %v1302
  %v3072 = vpop.f32.mrf.mxu0
  %v3073 = vadd.f32 %v3053, %v3072
  %3074 = vdwg.mxu0
  %3075 = vmatpush.msra.mxu0 %v1056
  %3076 = vmatpush.msra.mxu0 %v1043
  %3077 = vmatpush.msra.mxu0 %v1030
  %3078 = vmatpush.msra.mxu0 %v1017
  %3079 = vmatpush.msra.mxu0 %v1004
  %3080 = vmatpush.msra.mxu0 %v991
  %3081 = vmatpush.msra.mxu0 %v978
  %3082 = vmatpush.msra.mxu0 %v965
  %3083 = vmatpush.msra.mxu0 %v952
  %3084 = vmatpush.msra.mxu0 %v939
  %3085 = vmatpush.msra.mxu0 %v926
  %3086 = vmatpush.msra.mxu0 %v913
  %3087 = vmatpush.msra.mxu0 %v900
  %3088 = vmatpush.msra.mxu0 %v887
  %3089 = vmatpush.msra.mxu0 %v874
  %3090 = vmatpush.msra.mxu0 %v861
  %3091 = vmatmul.f32.gmra.mxu0 %v1303
  %v3092 = vpop.f32.mrf.mxu0
  %v3093 = vadd.f32 %v3073, %v3092
  %3094 = vdwg.mxu0
  %3095 = vmatpush.msra.mxu0 %v1264
  %3096 = vmatpush.msra.mxu0 %v1251
  %3097 = vmatpush.msra.mxu0 %v1238
  %3098 = vmatpush.msra.mxu0 %v1225
  %3099 = vmatpush.msra.mxu0 %v1212
  %3100 = vmatpush.msra.mxu0 %v1199
  %3101 = vmatpush.msra.mxu0 %v1186
  %3102 = vmatpush.msra.mxu0 %v1173
  %3103 = vmatpush.msra.mxu0 %v1160
  %3104 = vmatpush.msra.mxu0 %v1147
  %3105 = vmatpush.msra.mxu0 %v1134
  %3106 = vmatpush.msra.mxu0 %v1121
  %3107 = vmatpush.msra.mxu0 %v1108
  %3108 = vmatpush.msra.mxu0 %v1095
  %3109 = vmatpush.msra.mxu0 %v1082
  %3110 = vmatpush.msra.mxu0 %v1069
  %3111 = vmatmul.f32.gmra.mxu0 %v1304
  %v3112 = vpop.f32.mrf.mxu0
  %v3113 = vadd.f32 %v3093, %v3112
  %3114 = vdwg.mxu0
  %3115 = vmatpush.msra.mxu0 0.0
  %3116 = vmatpush.msra.mxu0 0.0
  %3117 = vmatpush.msra.mxu0 0.0
  %3118 = vmatpush.msra.mxu0 0.0
  %3119 = vmatpush.msra.mxu0 0.0
  %3120 = vmatpush.msra.mxu0 0.0
  %3121 = vmatpush.msra.mxu0 0.0
  %3122 = vmatpush.msra.mxu0 0.0
  %3123 = vmatpush.msra.mxu0 0.0
  %3124 = vmatpush.msra.mxu0 0.0
  %3125 = vmatpush.msra.mxu0 0.0
  %3126 = vmatpush.msra.mxu0 0.0
  %3127 = vmatpush.msra.mxu0 0.0
  %3128 = vmatpush.msra.mxu0 0.0
  %3129 = vmatpush.msra.mxu0 %v1290
  %3130 = vmatpush.msra.mxu0 %v1277
  %3131 = vmatmul.f32.gmra.mxu0 %v1313
  %v3132 = vpop.f32.mrf.mxu0
  %v3133 = vadd.f32 %v3113, %v3132
  %3134 = vdwg.mxu0
  %v3148 = vrot.slane %v1593, 7
  %v3149 = vrot.slane %v1733, 6
  %v3150 = vrot.slane %v1873, 5
  %v3151 = vrot.slane %v2013, 4
  %v3152 = vrot.slane %v2153, 3
  %v3153 = vrot.slane %v2293, 2
  %v3154 = vrot.slane %v2433, 1
  %v3155 = vrot.slane %v2713, 7
  %v3156 = vrot.slane %v2853, 6
  %v3157 = vrot.slane %v2993, 5
  %v3158 = vrot.slane %v3133, 4
  %vm3159 = vcmask 1040384
  %v3160 = vsel %vm3159, %v1453, %v3148
  %vm3161 = vcmask 1042434
  %v3162 = vsel %vm3161, %v3149, %v3150
  %vm3163 = vcmask 1041408
  %v3164 = vsel %vm3163, %v3160, %v3162
  %vm3165 = vcmask 1044484
  %v3166 = vsel %vm3165, %v3151, %v3152
  %vm3167 = vcmask 1046534
  %v3168 = vsel %vm3167, %v3153, %v3154
  %vm3169 = vcmask 1045508
  %v3170 = vsel %vm3169, %v3166, %v3168
  %vm3171 = vcmask 1043456
  %v3172 = vsel %vm3171, %v3164, %v3170
  %v3173 = vsel %vm3159, %v2573, %v3155
  %v3174 = vsel %vm3163, %v3173, %v3156
  %vm3175 = vcmask 1043459
  %v3176 = vsel %vm3175, %v3157, %v3158
  %vm3177 = vcmask 1042432
  %v3178 = vsel %vm3177, %v3174, %v3176
  %3181 = vst [vmem:[%s3] sm:$0xff] %v3172
  %v3182 = vlaneseq
  %vm3183 = vcmp.ge.s32.totalorder %v3182, 0
  %vm3184 = vcmp.lt.s32.totalorder %v3182, 544
  %vm3185 = vmand %vm3183, %vm3184
  %3186 = vst.msk [vmem:[%s3 + $0x8] sm:$0x1f] %vm3185, %v3178
  // Predicated region
  $region14: #{generator_forward.7} parent=0 // pred_check
    _
  $region15: #{generator_forward.7} parent=0 // pred_check_branch
    %3188 = sbr.rel (0) target = $region17
  $region16: #{generator_forward.7} parent=0 // pred_region
    _
  $region17: #{generator_forward.7} parent=0 // pred_fallthru
    _
  // Predicated region
  $region18: #{generator_forward.7} parent=0 // pred_check
    _
  $region19: #{generator_forward.7} parent=0 // pred_check_branch
    %3190 = sbr.rel (0) target = $region21
  $region20: #{generator_forward.7} parent=0 // pred_region
    _
  $region21: #{generator_forward.7} parent=0 // pred_fallthru
    _

</llo_original>
